<compile_context>
chip_gen: v5e
topology: v5e:2x2
jax: 0.10.0
libtpu: 0.0.40
codegen_flags: <defaults>
</compile_context>

<pallas_src>
import math
import jax
import jax.numpy as jnp
from jax import lax
from jax.experimental import pallas as pl
from jax.experimental.pallas import tpu as pltpu

# Model hyper-parameters (small, consistent with the module's __init__ args)
D_MODEL = 32
N_HEADS = 4
D_HEAD = D_MODEL // N_HEADS
D_FF = 64
EPS = 1e-6
NEG_INF = -1e9
SCALE = 1.0 / math.sqrt(D_HEAD)


def _layer_norm(x, a, b):
    # a, b: [1, D]; x: [N, D].  Unbiased std (ddof=1) matches torch .std(-1).
    # Exact divide on purpose: the LN inverse-std feeds the residual stream 3x,
    # approx reciprocal here is what broke the 5e-3 tolerance previously.
    mean = jnp.mean(x, axis=-1, keepdims=True)
    var = jnp.sum((x - mean) ** 2, axis=-1, keepdims=True) / (x.shape[-1] - 1)
    return a * (x - mean) / (jnp.sqrt(var) + EPS) + b


def _mha(q, k, v, mask, w_o, b_o):
    # q: [TQ, D]; k, v: [L, D]; mask broadcastable to [H, TQ, L];
    # w_o: [D, D] (un-split); b_o: [1, D].
    tq, l = q.shape[0], k.shape[0]
    qh = q.reshape(tq, N_HEADS, D_HEAD)
    kh = k.reshape(l, N_HEADS, D_HEAD)
    vh = v.reshape(l, N_HEADS, D_HEAD)
    s = jnp.einsum('qhd,khd->hqk', qh, kh,
                   preferred_element_type=jnp.float32) * SCALE
    s = jnp.where(mask, s, NEG_INF)
    s = s - jnp.max(s, axis=-1, keepdims=True)
    p = jnp.exp(s)
    # Production setting per perf review: approx=True (EUP slot).  Kept exact here
    # to hold a tight correctness tolerance in this test script.
    p = p * pl.reciprocal(jnp.sum(p, axis=-1, keepdims=True), approx=False)
    o = jnp.einsum('hqk,khd->qhd', p, vh, preferred_element_type=jnp.float32)
    o = o.reshape(tq, D_MODEL)        # concat heads back into the lane dim
    return jnp.dot(o, w_o, preferred_element_type=jnp.float32) + b_o


def decoder_layer_kernel(x_ref, mem_ref, srcv_ref,
                         sa_wq_ref, sa_bq_ref, sa_wkv_ref, sa_bkv_ref,
                         sa_wo_ref, sa_bo_ref,
                         ca_wq_ref, ca_bq_ref, ca_wkv_ref, ca_bkv_ref,
                         ca_wo_ref, ca_bo_ref,
                         ff_w1_ref, ff_b1_ref, ff_w2_ref, ff_b2_ref,
                         ln_a_ref, ln_b_ref, out_ref):
    # Grid = (batch, query-block); this step handles TQ query rows of one batch.
    T = x_ref.shape[0]             # full target length (self-attn keys)
    TQ = out_ref.shape[0]          # query rows this step
    q0 = pl.multiple_of(pl.program_id(1) * TQ, TQ)

    ln_a = ln_a_ref[...]           # [3, D]
    ln_b = ln_b_ref[...]           # [3, D]

    # ---- Sublayer 0: masked (causal) self-attention --------------------------
    xq = x_ref[pl.ds(q0, TQ), :]                                    # [TQ, D] residual
    xn_q = _layer_norm(xq, ln_a[0:1, :], ln_b[0:1, :])
    xn_kv = _layer_norm(x_ref[...], ln_a[0:1, :], ln_b[0:1, :])     # [T, D]
    q = jnp.dot(xn_q, sa_wq_ref[...],
                preferred_element_type=jnp.float32) + sa_bq_ref[...]
    kv = jnp.dot(xn_kv, sa_wkv_ref[...],
                 preferred_element_type=jnp.float32) + sa_bkv_ref[...]
    k, v = kv[:, :D_MODEL], kv[:, D_MODEL:]
    # Causal mask derived in-kernel (no metadata DMAs).
    q_pos = q0 + lax.broadcasted_iota(jnp.int32, (TQ, T), 0)
    k_pos = lax.broadcasted_iota(jnp.int32, (TQ, T), 1)
    causal = (q_pos >= k_pos)[None, :, :]                           # [1, TQ, T]
    x = xq + _mha(q, k, v, causal, sa_wo_ref[...], sa_bo_ref[...])

    # ---- Sublayer 1: cross attention over encoder memory ---------------------
    xn = _layer_norm(x, ln_a[1:2, :], ln_b[1:2, :])
    q = jnp.dot(xn, ca_wq_ref[...],
                preferred_element_type=jnp.float32) + ca_bq_ref[...]
    kv = jnp.dot(mem_ref[...], ca_wkv_ref[...],
                 preferred_element_type=jnp.float32) + ca_bkv_ref[...]
    k, v = kv[:, :D_MODEL], kv[:, D_MODEL:]
    src_ok = (srcv_ref[...] > 0.0)[None, :, :]                      # [1, 1, S]
    x = x + _mha(q, k, v, src_ok, ca_wo_ref[...], ca_bo_ref[...])

    # ---- Sublayer 2: position-wise feed-forward -------------------------------
    xn = _layer_norm(x, ln_a[2:3, :], ln_b[2:3, :])
    h = jnp.maximum(
        jnp.dot(xn, ff_w1_ref[...], preferred_element_type=jnp.float32)
        + ff_b1_ref[...], 0.0)
    x = x + jnp.dot(h, ff_w2_ref[...],
                    preferred_element_type=jnp.float32) + ff_b2_ref[...]

    out_ref[...] = x.astype(out_ref.dtype)


# ---------------------------- wrapper ----------------------------------------
def pack_params(params):
    """Pack torch-style per-projection weights ONCE, outside the call path."""
    (sa_w, sa_b, ca_w, ca_b, ff_w1, ff_b1, ff_w2, ff_b2, ln_a, ln_b) = params
    b2 = lambda v: v.reshape(1, -1)
    sa_wq, sa_bq = sa_w[0], b2(sa_b[0])
    sa_wkv = jnp.concatenate([sa_w[1], sa_w[2]], axis=1)          # [D, 2D]
    sa_bkv = b2(jnp.concatenate([sa_b[1], sa_b[2]]))              # [1, 2D]
    sa_wo, sa_bo = sa_w[3], b2(sa_b[3])
    ca_wq, ca_bq = ca_w[0], b2(ca_b[0])
    ca_wkv = jnp.concatenate([ca_w[1], ca_w[2]], axis=1)
    ca_bkv = b2(jnp.concatenate([ca_b[1], ca_b[2]]))
    ca_wo, ca_bo = ca_w[3], b2(ca_b[3])
    return (sa_wq, sa_bq, sa_wkv, sa_bkv, sa_wo, sa_bo,
            ca_wq, ca_bq, ca_wkv, ca_bkv, ca_wo, ca_bo,
            ff_w1, ff_b1, ff_w2, ff_b2, ln_a, ln_b)


def decoder_layer(x, memory, src_valid, packed, *, tq=None):
    """x: [B, T, D], memory: [B, S, D], src_valid: [B, S] 0/1 key padding.
    tgt mask is the standard causal (subsequent) mask, built in-kernel."""
    B, T, D = x.shape
    S = memory.shape[1]
    if tq is None:
        tq = T                      # query-block rows; must be a multiple of 8
    assert T % tq == 0
    srcv = src_valid.reshape(B, 1, S).astype(jnp.float32)

    (sa_wq, sa_bq, sa_wkv, sa_bkv, sa_wo, sa_bo,
     ca_wq, ca_bq, ca_wkv, ca_bkv, ca_wo, ca_bo,
     ff_w1, ff_b1, ff_w2, ff_b2, ln_a, ln_b) = packed
    weights = (sa_wq, sa_bq, sa_wkv, sa_bkv, sa_wo, sa_bo,
               ca_wq, ca_bq, ca_wkv, ca_bkv, ca_wo, ca_bo,
               ff_w1, ff_b1, ff_w2, ff_b2, ln_a, ln_b)

    def resident(shape):            # same block every step -> stays in VMEM
        n = len(shape)
        return pl.BlockSpec(shape, lambda b, i, n=n: (0,) * n)

    in_specs = [
        pl.BlockSpec((None, T, D), lambda b, i: (b, 0, 0)),   # x (full seq, this batch)
        pl.BlockSpec((None, S, D), lambda b, i: (b, 0, 0)),   # memory (this batch)
        pl.BlockSpec((None, 1, S), lambda b, i: (b, 0, 0)),   # src key-valid
    ] + [resident(w.shape) for w in weights]

    out = pl.pallas_call(
        decoder_layer_kernel,
        out_shape=jax.ShapeDtypeStruct((B, T, D), jnp.float32),
        grid=(B, T // tq),
        in_specs=in_specs,
        out_specs=pl.BlockSpec((None, tq, D), lambda b, i: (b, i, 0)),
        compiler_params=pltpu.CompilerParams(
            dimension_semantics=("parallel", "parallel")),
        # NOTE: at production block sizes, raise vmem_limit_bytes here (v6e) and
        # re-budget tiles against 64 MiB VMEM / 2 TCs on v7x.
    )(x, memory, srcv, *weights)
    return out


# ---------------- pure-JAX reference (for correctness check) ----------------
def _ref_decoder_layer(x, memory, tgt_mask, src_mask, params):
    (sa_w, sa_b, ca_w, ca_b, ff_w1, ff_b1, ff_w2, ff_b2, ln_a, ln_b) = params

    def ln(x, a, b):
        mean = jnp.mean(x, axis=-1, keepdims=True)
        var = jnp.sum((x - mean) ** 2, axis=-1, keepdims=True) / (x.shape[-1] - 1)
        return a * (x - mean) / (jnp.sqrt(var) + EPS) + b

    def mha(xq, xkv, w, b, mask):
        q = xq @ w[0] + b[0]
        k = xkv @ w[1] + b[1]
        v = xkv @ w[2] + b[2]

        def split(t):
            B_, L, _ = t.shape
            return t.reshape(B_, L, N_HEADS, D_HEAD).transpose(0, 2, 1, 3)

        qh, kh, vh = split(q), split(k), split(v)
        scores = jnp.einsum("bhtd,bhsd->bhts", qh, kh) / math.sqrt(D_HEAD)
        scores = jnp.where(mask[:, None, :, :] > 0, scores, NEG_INF)
        p = jax.nn.softmax(scores, axis=-1)
        o = jnp.einsum("bhts,bhsd->bhtd", p, vh)
        o = o.transpose(0, 2, 1, 3).reshape(xq.shape[0], xq.shape[1], D_MODEL)
        return o @ w[3] + b[3]

    x = x + mha(ln(x, ln_a[0], ln_b[0]), ln(x, ln_a[0], ln_b[0]), sa_w, sa_b, tgt_mask)
    x = x + mha(ln(x, ln_a[1], ln_b[1]), memory, ca_w, ca_b, src_mask)
    xn = ln(x, ln_a[2], ln_b[2])
    return x + jnp.maximum(xn @ ff_w1 + ff_b1[0], 0.0) @ ff_w2 + ff_b2[0]


def init_params(key):
    ks = jax.random.split(key, 6)
    scale = 1.0 / math.sqrt(D_MODEL)
    sa_w = jax.random.normal(ks[0], (4, D_MODEL, D_MODEL), jnp.float32) * scale
    sa_b = jax.random.normal(ks[1], (4, D_MODEL), jnp.float32) * 0.01
    ca_w = jax.random.normal(ks[2], (4, D_MODEL, D_MODEL), jnp.float32) * scale
    ca_b = jax.random.normal(ks[3], (4, D_MODEL), jnp.float32) * 0.01
    ff_w1 = jax.random.normal(ks[4], (D_MODEL, D_FF), jnp.float32) * scale
    ff_b1 = jnp.zeros((1, D_FF), jnp.float32)
    ff_w2 = jax.random.normal(ks[5], (D_FF, D_MODEL), jnp.float32) / math.sqrt(D_FF)
    ff_b2 = jnp.zeros((1, D_MODEL), jnp.float32)
    ln_a = jnp.ones((3, D_MODEL), jnp.float32)
    ln_b = jnp.zeros((3, D_MODEL), jnp.float32)
    return (sa_w, sa_b, ca_w, ca_b, ff_w1, ff_b1, ff_w2, ff_b2, ln_a, ln_b)


if __name__ == "__main__":
    B, T, S = 2, 8, 10   # batch, target length, source (memory) length
    key = jax.random.PRNGKey(0)
    kx, km, kp = jax.random.split(key, 3)

    x = jax.random.normal(kx, (B, T, D_MODEL), jnp.float32)
    memory = jax.random.normal(km, (B, S, D_MODEL), jnp.float32)
    # src key padding: batch 0 attends to all memory, batch 1 has last 2 padded.
    src_valid = jnp.array([[1.0] * S, [1.0] * (S - 2) + [0.0] * 2], jnp.float32)

    params = init_params(kp)
    packed = pack_params(params)        # packed once, outside the call path

    # NOTE: dropout is a no-op here (eval mode / deterministic forward).
    out = decoder_layer(x, memory, src_valid, packed)
    out = jax.block_until_ready(out)

    # Dense masks only for the pure-JAX reference.
    tgt_mask = jnp.tril(jnp.ones((T, T), jnp.float32))[None].repeat(B, axis=0)
    src_mask = jnp.broadcast_to(src_valid[:, None, :], (B, T, S))
    ref = _ref_decoder_layer(x, memory, tgt_mask, src_mask, params)

    assert out.shape == (B, T, D_MODEL)
    err = float(jnp.max(jnp.abs(out - ref)))
    assert jnp.allclose(out, ref, atol=2e-3, rtol=2e-3), f"max abs err {err}"

    print("KERNEL_OK")
</pallas_src>

<mosaic_0001>
module attributes {stable_mosaic.version = 11 : i64} {
  func.func @decoder_layer_kernel(%arg0: i32, %arg1: i32, %arg2: memref<1x8x32xf32, #tpu.memory_space<vmem>>, %arg3: memref<1x10x32xf32, #tpu.memory_space<vmem>>, %arg4: memref<1x1x10xf32, #tpu.memory_space<vmem>>, %arg5: memref<32x32xf32, #tpu.memory_space<vmem>>, %arg6: memref<1x32xf32, #tpu.memory_space<vmem>>, %arg7: memref<32x64xf32, #tpu.memory_space<vmem>>, %arg8: memref<1x64xf32, #tpu.memory_space<vmem>>, %arg9: memref<32x32xf32, #tpu.memory_space<vmem>>, %arg10: memref<1x32xf32, #tpu.memory_space<vmem>>, %arg11: memref<32x32xf32, #tpu.memory_space<vmem>>, %arg12: memref<1x32xf32, #tpu.memory_space<vmem>>, %arg13: memref<32x64xf32, #tpu.memory_space<vmem>>, %arg14: memref<1x64xf32, #tpu.memory_space<vmem>>, %arg15: memref<32x32xf32, #tpu.memory_space<vmem>>, %arg16: memref<1x32xf32, #tpu.memory_space<vmem>>, %arg17: memref<32x64xf32, #tpu.memory_space<vmem>>, %arg18: memref<1x64xf32, #tpu.memory_space<vmem>>, %arg19: memref<64x32xf32, #tpu.memory_space<vmem>>, %arg20: memref<1x32xf32, #tpu.memory_space<vmem>>, %arg21: memref<3x32xf32, #tpu.memory_space<vmem>>, %arg22: memref<3x32xf32, #tpu.memory_space<vmem>>, %arg23: memref<1x8x32xf32, #tpu.memory_space<vmem>>) attributes {dimension_semantics = [#tpu.dimension_semantics<parallel>, #tpu.dimension_semantics<parallel>], iteration_bounds = array<i64: 2, 1>, scalar_prefetch = 0 : i64, scratch_operands = 0 : i64, tpu.core_type = #tpu.core_type<tc>, window_params = [{transform_indices = @transform_0, window_bounds = array<i64: 1, 8, 32>}, {transform_indices = @transform_1, window_bounds = array<i64: 1, 10, 32>}, {transform_indices = @transform_2, window_bounds = array<i64: 1, 1, 10>}, {pipeline_mode = #tpu.pipeline_mode<synchronous>, transform_indices = @transform_3, window_bounds = array<i64: 32, 32>}, {pipeline_mode = #tpu.pipeline_mode<synchronous>, transform_indices = @transform_4, window_bounds = array<i64: 1, 32>}, {pipeline_mode = #tpu.pipeline_mode<synchronous>, transform_indices = @transform_5, window_bounds = array<i64: 32, 64>}, {pipeline_mode = #tpu.pipeline_mode<synchronous>, transform_indices = @transform_6, window_bounds = array<i64: 1, 64>}, {pipeline_mode = #tpu.pipeline_mode<synchronous>, transform_indices = @transform_7, window_bounds = array<i64: 32, 32>}, {pipeline_mode = #tpu.pipeline_mode<synchronous>, transform_indices = @transform_8, window_bounds = array<i64: 1, 32>}, {pipeline_mode = #tpu.pipeline_mode<synchronous>, transform_indices = @transform_9, window_bounds = array<i64: 32, 32>}, {pipeline_mode = #tpu.pipeline_mode<synchronous>, transform_indices = @transform_10, window_bounds = array<i64: 1, 32>}, {pipeline_mode = #tpu.pipeline_mode<synchronous>, transform_indices = @transform_11, window_bounds = array<i64: 32, 64>}, {pipeline_mode = #tpu.pipeline_mode<synchronous>, transform_indices = @transform_12, window_bounds = array<i64: 1, 64>}, {pipeline_mode = #tpu.pipeline_mode<synchronous>, transform_indices = @transform_13, window_bounds = array<i64: 32, 32>}, {pipeline_mode = #tpu.pipeline_mode<synchronous>, transform_indices = @transform_14, window_bounds = array<i64: 1, 32>}, {pipeline_mode = #tpu.pipeline_mode<synchronous>, transform_indices = @transform_15, window_bounds = array<i64: 32, 64>}, {pipeline_mode = #tpu.pipeline_mode<synchronous>, transform_indices = @transform_16, window_bounds = array<i64: 1, 64>}, {pipeline_mode = #tpu.pipeline_mode<synchronous>, transform_indices = @transform_17, window_bounds = array<i64: 64, 32>}, {pipeline_mode = #tpu.pipeline_mode<synchronous>, transform_indices = @transform_18, window_bounds = array<i64: 1, 32>}, {pipeline_mode = #tpu.pipeline_mode<synchronous>, transform_indices = @transform_19, window_bounds = array<i64: 3, 32>}, {pipeline_mode = #tpu.pipeline_mode<synchronous>, transform_indices = @transform_20, window_bounds = array<i64: 3, 32>}, {transform_indices = @transform_21, window_bounds = array<i64: 1, 8, 32>}]} {
    %c8_i32 = arith.constant 8 : i32
    %0 = arith.muli %arg1, %c8_i32 : i32
    %1 = tpu.assume_multiple %0, 8 : i32
    %c0 = arith.constant 0 : index
    %c0_0 = arith.constant 0 : index
    %2 = vector.load %arg21[%c0, %c0_0] : memref<3x32xf32, #tpu.memory_space<vmem>>, vector<3x32xf32>
    %c0_1 = arith.constant 0 : index
    %c0_2 = arith.constant 0 : index
    %3 = vector.load %arg22[%c0_1, %c0_2] : memref<3x32xf32, #tpu.memory_space<vmem>>, vector<3x32xf32>
    %c0_3 = arith.constant 0 : index
    %4 = arith.index_cast %1 : i32 to index
    %c0_4 = arith.constant 0 : index
    %5 = vector.load %arg2[%c0_3, %4, %c0_4] : memref<1x8x32xf32, #tpu.memory_space<vmem>>, vector<1x8x32xf32>
    %6 = vector.shape_cast %5 : vector<1x8x32xf32> to vector<8x32xf32>
    %7 = vector.extract_strided_slice %2 {offsets = [0, 0], sizes = [1, 32], strides = [1, 1]} : vector<3x32xf32> to vector<1x32xf32>
    %8 = vector.extract_strided_slice %3 {offsets = [0, 0], sizes = [1, 32], strides = [1, 1]} : vector<3x32xf32> to vector<1x32xf32>
    %cst = arith.constant dense<0.000000e+00> : vector<8xf32>
    %9 = vector.multi_reduction <add>, %6, %cst [1] : vector<8x32xf32> to vector<8xf32>
    %10 = vector.shape_cast %9 : vector<8xf32> to vector<8x1xf32>
    %cst_5 = arith.constant 3.200000e+01 : f32
    %11 = vector.broadcast %cst_5 : f32 to vector<8x1xf32>
    %12 = arith.divf %10, %11 : vector<8x1xf32>
    %13 = vector.broadcast %12 : vector<8x1xf32> to vector<8x32xf32>
    %14 = arith.subf %6, %13 : vector<8x32xf32>
    %15 = arith.mulf %14, %14 : vector<8x32xf32>
    %cst_6 = arith.constant dense<0.000000e+00> : vector<8xf32>
    %16 = vector.multi_reduction <add>, %15, %cst_6 [1] : vector<8x32xf32> to vector<8xf32>
    %17 = vector.shape_cast %16 : vector<8xf32> to vector<8x1xf32>
    %cst_7 = arith.constant 3.100000e+01 : f32
    %18 = vector.broadcast %cst_7 : f32 to vector<8x1xf32>
    %19 = arith.divf %17, %18 : vector<8x1xf32>
    %20 = vector.broadcast %12 : vector<8x1xf32> to vector<8x32xf32>
    %21 = arith.subf %6, %20 : vector<8x32xf32>
    %22 = vector.broadcast %7 : vector<1x32xf32> to vector<8x32xf32>
    %23 = arith.mulf %22, %21 : vector<8x32xf32>
    %24 = math.sqrt %19 : vector<8x1xf32>
    %cst_8 = arith.constant 9.99999997E-7 : f32
    %25 = vector.broadcast %cst_8 : f32 to vector<8x1xf32>
    %26 = arith.addf %24, %25 : vector<8x1xf32>
    %27 = vector.broadcast %26 : vector<8x1xf32> to vector<8x32xf32>
    %28 = arith.divf %23, %27 : vector<8x32xf32>
    %29 = vector.broadcast %8 : vector<1x32xf32> to vector<8x32xf32>
    %30 = arith.addf %28, %29 : vector<8x32xf32>
    %c0_9 = arith.constant 0 : index
    %c0_10 = arith.constant 0 : index
    %c0_11 = arith.constant 0 : index
    %31 = vector.load %arg2[%c0_9, %c0_10, %c0_11] : memref<1x8x32xf32, #tpu.memory_space<vmem>>, vector<1x8x32xf32>
    %32 = vector.shape_cast %31 : vector<1x8x32xf32> to vector<8x32xf32>
    %33 = vector.extract_strided_slice %2 {offsets = [0, 0], sizes = [1, 32], strides = [1, 1]} : vector<3x32xf32> to vector<1x32xf32>
    %34 = vector.extract_strided_slice %3 {offsets = [0, 0], sizes = [1, 32], strides = [1, 1]} : vector<3x32xf32> to vector<1x32xf32>
    %cst_12 = arith.constant dense<0.000000e+00> : vector<8xf32>
    %35 = vector.multi_reduction <add>, %32, %cst_12 [1] : vector<8x32xf32> to vector<8xf32>
    %36 = vector.shape_cast %35 : vector<8xf32> to vector<8x1xf32>
    %cst_13 = arith.constant 3.200000e+01 : f32
    %37 = vector.broadcast %cst_13 : f32 to vector<8x1xf32>
    %38 = arith.divf %36, %37 : vector<8x1xf32>
    %39 = vector.broadcast %38 : vector<8x1xf32> to vector<8x32xf32>
    %40 = arith.subf %32, %39 : vector<8x32xf32>
    %41 = arith.mulf %40, %40 : vector<8x32xf32>
    %cst_14 = arith.constant dense<0.000000e+00> : vector<8xf32>
    %42 = vector.multi_reduction <add>, %41, %cst_14 [1] : vector<8x32xf32> to vector<8xf32>
    %43 = vector.shape_cast %42 : vector<8xf32> to vector<8x1xf32>
    %cst_15 = arith.constant 3.100000e+01 : f32
    %44 = vector.broadcast %cst_15 : f32 to vector<8x1xf32>
    %45 = arith.divf %43, %44 : vector<8x1xf32>
    %46 = vector.broadcast %38 : vector<8x1xf32> to vector<8x32xf32>
    %47 = arith.subf %32, %46 : vector<8x32xf32>
    %48 = vector.broadcast %33 : vector<1x32xf32> to vector<8x32xf32>
    %49 = arith.mulf %48, %47 : vector<8x32xf32>
    %50 = math.sqrt %45 : vector<8x1xf32>
    %cst_16 = arith.constant 9.99999997E-7 : f32
    %51 = vector.broadcast %cst_16 : f32 to vector<8x1xf32>
    %52 = arith.addf %50, %51 : vector<8x1xf32>
    %53 = vector.broadcast %52 : vector<8x1xf32> to vector<8x32xf32>
    %54 = arith.divf %49, %53 : vector<8x32xf32>
    %55 = vector.broadcast %34 : vector<1x32xf32> to vector<8x32xf32>
    %56 = arith.addf %54, %55 : vector<8x32xf32>
    %c0_17 = arith.constant 0 : index
    %c0_18 = arith.constant 0 : index
    %57 = vector.load %arg5[%c0_17, %c0_18] : memref<32x32xf32, #tpu.memory_space<vmem>>, vector<32x32xf32>
    %cst_19 = arith.constant dense<0.000000e+00> : vector<8x32xf32>
    %58 = tpu.matmul %30, %57, %cst_19 {dimension_numbers = #tpu.dot_dimension_numbers<[1], [0], [0], [1], [0, 0, 1, 1], [], []>} : vector<8x32xf32>, vector<32x32xf32>, vector<8x32xf32> -> vector<8x32xf32>
    %c0_20 = arith.constant 0 : index
    %c0_21 = arith.constant 0 : index
    %59 = vector.load %arg6[%c0_20, %c0_21] : memref<1x32xf32, #tpu.memory_space<vmem>>, vector<1x32xf32>
    %60 = vector.broadcast %59 : vector<1x32xf32> to vector<8x32xf32>
    %61 = arith.addf %58, %60 : vector<8x32xf32>
    %c0_22 = arith.constant 0 : index
    %c0_23 = arith.constant 0 : index
    %62 = vector.load %arg7[%c0_22, %c0_23] : memref<32x64xf32, #tpu.memory_space<vmem>>, vector<32x64xf32>
    %cst_24 = arith.constant dense<0.000000e+00> : vector<8x64xf32>
    %63 = tpu.matmul %56, %62, %cst_24 {dimension_numbers = #tpu.dot_dimension_numbers<[1], [0], [0], [1], [0, 0, 1, 1], [], []>} : vector<8x32xf32>, vector<32x64xf32>, vector<8x64xf32> -> vector<8x64xf32>
    %c0_25 = arith.constant 0 : index
    %c0_26 = arith.constant 0 : index
    %64 = vector.load %arg8[%c0_25, %c0_26] : memref<1x64xf32, #tpu.memory_space<vmem>>, vector<1x64xf32>
    %65 = vector.broadcast %64 : vector<1x64xf32> to vector<8x64xf32>
    %66 = arith.addf %63, %65 : vector<8x64xf32>
    %67 = vector.extract_strided_slice %66 {offsets = [0, 0], sizes = [8, 32], strides = [1, 1]} : vector<8x64xf32> to vector<8x32xf32>
    %68 = vector.extract_strided_slice %66 {offsets = [0, 32], sizes = [8, 32], strides = [1, 1]} : vector<8x64xf32> to vector<8x32xf32>
    %69 = tpu.iota {dimensions = array<i32: 0>} : vector<8x8xi32>
    %70 = vector.broadcast %1 : i32 to vector<8x8xi32>
    %71 = arith.addi %70, %69 : vector<8x8xi32>
    %72 = tpu.iota {dimensions = array<i32: 1>} : vector<8x8xi32>
    %73 = arith.cmpi sge, %71, %72 : vector<8x8xi32>
    %74 = vector.shape_cast %73 : vector<8x8xi1> to vector<1x8x8xi1>
    %c0_27 = arith.constant 0 : index
    %c0_28 = arith.constant 0 : index
    %75 = vector.load %arg9[%c0_27, %c0_28] : memref<32x32xf32, #tpu.memory_space<vmem>>, vector<32x32xf32>
    %c0_29 = arith.constant 0 : index
    %c0_30 = arith.constant 0 : index
    %76 = vector.load %arg10[%c0_29, %c0_30] : memref<1x32xf32, #tpu.memory_space<vmem>>, vector<1x32xf32>
    %77 = vector.shape_cast %61 : vector<8x32xf32> to vector<8x4x8xf32>
    %78 = vector.shape_cast %67 : vector<8x32xf32> to vector<8x4x8xf32>
    %79 = vector.shape_cast %68 : vector<8x32xf32> to vector<8x4x8xf32>
    "tpu.trace_start"() <{level = 10 : i32, message = "qhd,khd->hqk"}> : () -> ()
    %cst_31 = arith.constant dense<0.000000e+00> : vector<4x8x8xf32>
    %80 = tpu.matmul %77, %78, %cst_31 {dimension_numbers = #tpu.dot_dimension_numbers<[2], [2], [0], [0], [0, 1, 0, 0, 1, 0], [1], [1]>} : vector<8x4x8xf32>, vector<8x4x8xf32>, vector<4x8x8xf32> -> vector<4x8x8xf32>
    "tpu.trace_stop"() : () -> ()
    %cst_32 = arith.constant 0.353553385 : f32
    %81 = vector.broadcast %cst_32 : f32 to vector<4x8x8xf32>
    %82 = arith.mulf %80, %81 : vector<4x8x8xf32>
    %cst_33 = arith.constant -1.000000e+09 : f32
    %83 = vector.shape_cast %74 : vector<1x8x8xi1> to vector<1x8x8xi1>
    %84 = vector.broadcast %83 : vector<1x8x8xi1> to vector<4x8x8xi1>
    %85 = vector.broadcast %cst_33 : f32 to vector<4x8x8xf32>
    %86 = arith.select %84, %82, %85 : vector<4x8x8xi1>, vector<4x8x8xf32>
    %cst_34 = arith.constant dense<0xFF800000> : vector<4x8xf32>
    %87 = vector.multi_reduction <maximumf>, %86, %cst_34 [2] : vector<4x8x8xf32> to vector<4x8xf32>
    %88 = vector.shape_cast %87 : vector<4x8xf32> to vector<4x8x1xf32>
    %89 = vector.broadcast %88 : vector<4x8x1xf32> to vector<4x8x8xf32>
    %90 = arith.subf %86, %89 : vector<4x8x8xf32>
    %91 = math.exp %90 : vector<4x8x8xf32>
    %cst_35 = arith.constant dense<0.000000e+00> : vector<4x8xf32>
    %92 = vector.multi_reduction <add>, %91, %cst_35 [2] : vector<4x8x8xf32> to vector<4x8xf32>
    %93 = vector.shape_cast %92 : vector<4x8xf32> to vector<4x8x1xf32>
    %94 = tpu.reciprocal %93 : vector<4x8x1xf32> -> vector<4x8x1xf32>
    %95 = vector.broadcast %94 : vector<4x8x1xf32> to vector<4x8x8xf32>
    %96 = arith.mulf %91, %95 : vector<4x8x8xf32>
    "tpu.trace_start"() <{level = 10 : i32, message = "hqk,khd->qhd"}> : () -> ()
    %cst_36 = arith.constant dense<0.000000e+00> : vector<4x8x8xf32>
    %97 = tpu.matmul %79, %96, %cst_36 {dimension_numbers = #tpu.dot_dimension_numbers<[0], [2], [2], [1], [0, 1, 0, 2, 1, 1], [1], [0]>} : vector<8x4x8xf32>, vector<4x8x8xf32>, vector<4x8x8xf32> -> vector<4x8x8xf32>
    %98 = tpu.transpose %97, [2, 0, 1] : vector<4x8x8xf32> -> vector<8x4x8xf32>
    "tpu.trace_stop"() : () -> ()
    %99 = vector.shape_cast %98 : vector<8x4x8xf32> to vector<8x32xf32>
    %cst_37 = arith.constant dense<0.000000e+00> : vector<8x32xf32>
    %100 = tpu.matmul %99, %75, %cst_37 {dimension_numbers = #tpu.dot_dimension_numbers<[1], [0], [0], [1], [0, 0, 1, 1], [], []>} : vector<8x32xf32>, vector<32x32xf32>, vector<8x32xf32> -> vector<8x32xf32>
    %101 = vector.broadcast %76 : vector<1x32xf32> to vector<8x32xf32>
    %102 = arith.addf %100, %101 : vector<8x32xf32>
    %103 = arith.addf %6, %102 : vector<8x32xf32>
    %104 = vector.extract_strided_slice %2 {offsets = [1, 0], sizes = [1, 32], strides = [1, 1]} : vector<3x32xf32> to vector<1x32xf32>
    %105 = vector.extract_strided_slice %3 {offsets = [1, 0], sizes = [1, 32], strides = [1, 1]} : vector<3x32xf32> to vector<1x32xf32>
    %cst_38 = arith.constant dense<0.000000e+00> : vector<8xf32>
    %106 = vector.multi_reduction <add>, %103, %cst_38 [1] : vector<8x32xf32> to vector<8xf32>
    %107 = vector.shape_cast %106 : vector<8xf32> to vector<8x1xf32>
    %cst_39 = arith.constant 3.200000e+01 : f32
    %108 = vector.broadcast %cst_39 : f32 to vector<8x1xf32>
    %109 = arith.divf %107, %108 : vector<8x1xf32>
    %110 = vector.broadcast %109 : vector<8x1xf32> to vector<8x32xf32>
    %111 = arith.subf %103, %110 : vector<8x32xf32>
    %112 = arith.mulf %111, %111 : vector<8x32xf32>
    %cst_40 = arith.constant dense<0.000000e+00> : vector<8xf32>
    %113 = vector.multi_reduction <add>, %112, %cst_40 [1] : vector<8x32xf32> to vector<8xf32>
    %114 = vector.shape_cast %113 : vector<8xf32> to vector<8x1xf32>
    %cst_41 = arith.constant 3.100000e+01 : f32
    %115 = vector.broadcast %cst_41 : f32 to vector<8x1xf32>
    %116 = arith.divf %114, %115 : vector<8x1xf32>
    %117 = vector.broadcast %109 : vector<8x1xf32> to vector<8x32xf32>
    %118 = arith.subf %103, %117 : vector<8x32xf32>
    %119 = vector.broadcast %104 : vector<1x32xf32> to vector<8x32xf32>
    %120 = arith.mulf %119, %118 : vector<8x32xf32>
    %121 = math.sqrt %116 : vector<8x1xf32>
    %cst_42 = arith.constant 9.99999997E-7 : f32
    %122 = vector.broadcast %cst_42 : f32 to vector<8x1xf32>
    %123 = arith.addf %121, %122 : vector<8x1xf32>
    %124 = vector.broadcast %123 : vector<8x1xf32> to vector<8x32xf32>
    %125 = arith.divf %120, %124 : vector<8x32xf32>
    %126 = vector.broadcast %105 : vector<1x32xf32> to vector<8x32xf32>
    %127 = arith.addf %125, %126 : vector<8x32xf32>
    %c0_43 = arith.constant 0 : index
    %c0_44 = arith.constant 0 : index
    %128 = vector.load %arg11[%c0_43, %c0_44] : memref<32x32xf32, #tpu.memory_space<vmem>>, vector<32x32xf32>
    %cst_45 = arith.constant dense<0.000000e+00> : vector<8x32xf32>
    %129 = tpu.matmul %127, %128, %cst_45 {dimension_numbers = #tpu.dot_dimension_numbers<[1], [0], [0], [1], [0, 0, 1, 1], [], []>} : vector<8x32xf32>, vector<32x32xf32>, vector<8x32xf32> -> vector<8x32xf32>
    %c0_46 = arith.constant 0 : index
    %c0_47 = arith.constant 0 : index
    %130 = vector.load %arg12[%c0_46, %c0_47] : memref<1x32xf32, #tpu.memory_space<vmem>>, vector<1x32xf32>
    %131 = vector.broadcast %130 : vector<1x32xf32> to vector<8x32xf32>
    %132 = arith.addf %129, %131 : vector<8x32xf32>
    %c0_48 = arith.constant 0 : index
    %c0_49 = arith.constant 0 : index
    %c0_50 = arith.constant 0 : index
    %133 = vector.load %arg3[%c0_48, %c0_49, %c0_50] : memref<1x10x32xf32, #tpu.memory_space<vmem>>, vector<1x10x32xf32>
    %134 = vector.shape_cast %133 : vector<1x10x32xf32> to vector<10x32xf32>
    %c0_51 = arith.constant 0 : index
    %c0_52 = arith.constant 0 : index
    %135 = vector.load %arg13[%c0_51, %c0_52] : memref<32x64xf32, #tpu.memory_space<vmem>>, vector<32x64xf32>
    %cst_53 = arith.constant dense<0.000000e+00> : vector<10x64xf32>
    %136 = tpu.matmul %134, %135, %cst_53 {dimension_numbers = #tpu.dot_dimension_numbers<[1], [0], [0], [1], [0, 0, 1, 1], [], []>} : vector<10x32xf32>, vector<32x64xf32>, vector<10x64xf32> -> vector<10x64xf32>
    %c0_54 = arith.constant 0 : index
    %c0_55 = arith.constant 0 : index
    %137 = vector.load %arg14[%c0_54, %c0_55] : memref<1x64xf32, #tpu.memory_space<vmem>>, vector<1x64xf32>
    %138 = vector.broadcast %137 : vector<1x64xf32> to vector<10x64xf32>
    %139 = arith.addf %136, %138 : vector<10x64xf32>
    %140 = vector.extract_strided_slice %139 {offsets = [0, 0], sizes = [10, 32], strides = [1, 1]} : vector<10x64xf32> to vector<10x32xf32>
    %141 = vector.extract_strided_slice %139 {offsets = [0, 32], sizes = [10, 32], strides = [1, 1]} : vector<10x64xf32> to vector<10x32xf32>
    %c0_56 = arith.constant 0 : index
    %c0_57 = arith.constant 0 : index
    %c0_58 = arith.constant 0 : index
    %142 = vector.load %arg4[%c0_56, %c0_57, %c0_58] : memref<1x1x10xf32, #tpu.memory_space<vmem>>, vector<1x1x10xf32>
    %143 = vector.shape_cast %142 : vector<1x1x10xf32> to vector<1x10xf32>
    %cst_59 = arith.constant 0.000000e+00 : f32
    %144 = vector.broadcast %cst_59 : f32 to vector<1x10xf32>
    %145 = arith.cmpf ogt, %143, %144 : vector<1x10xf32>
    %146 = vector.shape_cast %145 : vector<1x10xi1> to vector<1x1x10xi1>
    %c0_60 = arith.constant 0 : index
    %c0_61 = arith.constant 0 : index
    %147 = vector.load %arg15[%c0_60, %c0_61] : memref<32x32xf32, #tpu.memory_space<vmem>>, vector<32x32xf32>
    %c0_62 = arith.constant 0 : index
    %c0_63 = arith.constant 0 : index
    %148 = vector.load %arg16[%c0_62, %c0_63] : memref<1x32xf32, #tpu.memory_space<vmem>>, vector<1x32xf32>
    %149 = vector.shape_cast %132 : vector<8x32xf32> to vector<8x4x8xf32>
    %150 = vector.shape_cast %140 : vector<10x32xf32> to vector<10x4x8xf32>
    %151 = vector.shape_cast %141 : vector<10x32xf32> to vector<10x4x8xf32>
    "tpu.trace_start"() <{level = 10 : i32, message = "qhd,khd->hqk"}> : () -> ()
    %cst_64 = arith.constant dense<0.000000e+00> : vector<4x8x10xf32>
    %152 = tpu.matmul %149, %150, %cst_64 {dimension_numbers = #tpu.dot_dimension_numbers<[2], [2], [0], [0], [0, 1, 0, 0, 1, 0], [1], [1]>} : vector<8x4x8xf32>, vector<10x4x8xf32>, vector<4x8x10xf32> -> vector<4x8x10xf32>
    "tpu.trace_stop"() : () -> ()
    %cst_65 = arith.constant 0.353553385 : f32
    %153 = vector.broadcast %cst_65 : f32 to vector<4x8x10xf32>
    %154 = arith.mulf %152, %153 : vector<4x8x10xf32>
    %cst_66 = arith.constant -1.000000e+09 : f32
    %155 = vector.shape_cast %146 : vector<1x1x10xi1> to vector<1x1x10xi1>
    %156 = vector.broadcast %155 : vector<1x1x10xi1> to vector<4x8x10xi1>
    %157 = vector.broadcast %cst_66 : f32 to vector<4x8x10xf32>
    %158 = arith.select %156, %154, %157 : vector<4x8x10xi1>, vector<4x8x10xf32>
    %cst_67 = arith.constant dense<0xFF800000> : vector<4x8xf32>
    %159 = vector.multi_reduction <maximumf>, %158, %cst_67 [2] : vector<4x8x10xf32> to vector<4x8xf32>
    %160 = vector.shape_cast %159 : vector<4x8xf32> to vector<4x8x1xf32>
    %161 = vector.broadcast %160 : vector<4x8x1xf32> to vector<4x8x10xf32>
    %162 = arith.subf %158, %161 : vector<4x8x10xf32>
    %163 = math.exp %162 : vector<4x8x10xf32>
    %cst_68 = arith.constant dense<0.000000e+00> : vector<4x8xf32>
    %164 = vector.multi_reduction <add>, %163, %cst_68 [2] : vector<4x8x10xf32> to vector<4x8xf32>
    %165 = vector.shape_cast %164 : vector<4x8xf32> to vector<4x8x1xf32>
    %166 = tpu.reciprocal %165 : vector<4x8x1xf32> -> vector<4x8x1xf32>
    %167 = vector.broadcast %166 : vector<4x8x1xf32> to vector<4x8x10xf32>
    %168 = arith.mulf %163, %167 : vector<4x8x10xf32>
    "tpu.trace_start"() <{level = 10 : i32, message = "hqk,khd->qhd"}> : () -> ()
    %cst_69 = arith.constant dense<0.000000e+00> : vector<4x8x8xf32>
    %169 = tpu.matmul %151, %168, %cst_69 {dimension_numbers = #tpu.dot_dimension_numbers<[0], [2], [2], [1], [0, 1, 0, 2, 1, 1], [1], [0]>} : vector<10x4x8xf32>, vector<4x8x10xf32>, vector<4x8x8xf32> -> vector<4x8x8xf32>
    %170 = tpu.transpose %169, [2, 0, 1] : vector<4x8x8xf32> -> vector<8x4x8xf32>
    "tpu.trace_stop"() : () -> ()
    %171 = vector.shape_cast %170 : vector<8x4x8xf32> to vector<8x32xf32>
    %cst_70 = arith.constant dense<0.000000e+00> : vector<8x32xf32>
    %172 = tpu.matmul %171, %147, %cst_70 {dimension_numbers = #tpu.dot_dimension_numbers<[1], [0], [0], [1], [0, 0, 1, 1], [], []>} : vector<8x32xf32>, vector<32x32xf32>, vector<8x32xf32> -> vector<8x32xf32>
    %173 = vector.broadcast %148 : vector<1x32xf32> to vector<8x32xf32>
    %174 = arith.addf %172, %173 : vector<8x32xf32>
    %175 = arith.addf %103, %174 : vector<8x32xf32>
    %176 = vector.extract_strided_slice %2 {offsets = [2, 0], sizes = [1, 32], strides = [1, 1]} : vector<3x32xf32> to vector<1x32xf32>
    %177 = vector.extract_strided_slice %3 {offsets = [2, 0], sizes = [1, 32], strides = [1, 1]} : vector<3x32xf32> to vector<1x32xf32>
    %cst_71 = arith.constant dense<0.000000e+00> : vector<8xf32>
    %178 = vector.multi_reduction <add>, %175, %cst_71 [1] : vector<8x32xf32> to vector<8xf32>
    %179 = vector.shape_cast %178 : vector<8xf32> to vector<8x1xf32>
    %cst_72 = arith.constant 3.200000e+01 : f32
    %180 = vector.broadcast %cst_72 : f32 to vector<8x1xf32>
    %181 = arith.divf %179, %180 : vector<8x1xf32>
    %182 = vector.broadcast %181 : vector<8x1xf32> to vector<8x32xf32>
    %183 = arith.subf %175, %182 : vector<8x32xf32>
    %184 = arith.mulf %183, %183 : vector<8x32xf32>
    %cst_73 = arith.constant dense<0.000000e+00> : vector<8xf32>
    %185 = vector.multi_reduction <add>, %184, %cst_73 [1] : vector<8x32xf32> to vector<8xf32>
    %186 = vector.shape_cast %185 : vector<8xf32> to vector<8x1xf32>
    %cst_74 = arith.constant 3.100000e+01 : f32
    %187 = vector.broadcast %cst_74 : f32 to vector<8x1xf32>
    %188 = arith.divf %186, %187 : vector<8x1xf32>
    %189 = vector.broadcast %181 : vector<8x1xf32> to vector<8x32xf32>
    %190 = arith.subf %175, %189 : vector<8x32xf32>
    %191 = vector.broadcast %176 : vector<1x32xf32> to vector<8x32xf32>
    %192 = arith.mulf %191, %190 : vector<8x32xf32>
    %193 = math.sqrt %188 : vector<8x1xf32>
    %cst_75 = arith.constant 9.99999997E-7 : f32
    %194 = vector.broadcast %cst_75 : f32 to vector<8x1xf32>
    %195 = arith.addf %193, %194 : vector<8x1xf32>
    %196 = vector.broadcast %195 : vector<8x1xf32> to vector<8x32xf32>
    %197 = arith.divf %192, %196 : vector<8x32xf32>
    %198 = vector.broadcast %177 : vector<1x32xf32> to vector<8x32xf32>
    %199 = arith.addf %197, %198 : vector<8x32xf32>
    %c0_76 = arith.constant 0 : index
    %c0_77 = arith.constant 0 : index
    %200 = vector.load %arg17[%c0_76, %c0_77] : memref<32x64xf32, #tpu.memory_space<vmem>>, vector<32x64xf32>
    %cst_78 = arith.constant dense<0.000000e+00> : vector<8x64xf32>
    %201 = tpu.matmul %199, %200, %cst_78 {dimension_numbers = #tpu.dot_dimension_numbers<[1], [0], [0], [1], [0, 0, 1, 1], [], []>} : vector<8x32xf32>, vector<32x64xf32>, vector<8x64xf32> -> vector<8x64xf32>
    %c0_79 = arith.constant 0 : index
    %c0_80 = arith.constant 0 : index
    %202 = vector.load %arg18[%c0_79, %c0_80] : memref<1x64xf32, #tpu.memory_space<vmem>>, vector<1x64xf32>
    %203 = vector.broadcast %202 : vector<1x64xf32> to vector<8x64xf32>
    %204 = arith.addf %201, %203 : vector<8x64xf32>
    %cst_81 = arith.constant 0.000000e+00 : f32
    %205 = vector.broadcast %cst_81 : f32 to vector<8x64xf32>
    %206 = arith.maximumf %204, %205 : vector<8x64xf32>
    %c0_82 = arith.constant 0 : index
    %c0_83 = arith.constant 0 : index
    %207 = vector.load %arg19[%c0_82, %c0_83] : memref<64x32xf32, #tpu.memory_space<vmem>>, vector<64x32xf32>
    %cst_84 = arith.constant dense<0.000000e+00> : vector<8x32xf32>
    %208 = tpu.matmul %206, %207, %cst_84 {dimension_numbers = #tpu.dot_dimension_numbers<[1], [0], [0], [1], [0, 0, 1, 1], [], []>} : vector<8x64xf32>, vector<64x32xf32>, vector<8x32xf32> -> vector<8x32xf32>
    %209 = arith.addf %175, %208 : vector<8x32xf32>
    %c0_85 = arith.constant 0 : index
    %c0_86 = arith.constant 0 : index
    %210 = vector.load %arg20[%c0_85, %c0_86] : memref<1x32xf32, #tpu.memory_space<vmem>>, vector<1x32xf32>
    %211 = vector.broadcast %210 : vector<1x32xf32> to vector<8x32xf32>
    %212 = arith.addf %209, %211 : vector<8x32xf32>
    %c0_87 = arith.constant 0 : index
    %c0_88 = arith.constant 0 : index
    %c0_89 = arith.constant 0 : index
    %213 = vector.load %arg23[%c0_87, %c0_88, %c0_89] : memref<1x8x32xf32, #tpu.memory_space<vmem>>, vector<1x8x32xf32>
    %214 = vector.shape_cast %213 : vector<1x8x32xf32> to vector<8x32xf32>
    %215 = vector.shape_cast %212 : vector<8x32xf32> to vector<1x8x32xf32>
    tpu.vector_store %arg23[%c0_87, %c0_88, %c0_89], %215 {strides = array<i32>} : memref<1x8x32xf32, #tpu.memory_space<vmem>>, vector<1x8x32xf32>,
    return
  }
  func.func @transform_0(%arg0: i32, %arg1: i32) -> (i32, i32, i32) {
    %c0_i32 = arith.constant 0 : i32
    %c0_i32_0 = arith.constant 0 : i32
    %c0_i32_1 = arith.constant 0 : i32
    return %arg0, %c0_i32, %c0_i32_0 : i32, i32, i32
  }
  func.func @transform_1(%arg0: i32, %arg1: i32) -> (i32, i32, i32) {
    %c0_i32 = arith.constant 0 : i32
    %c0_i32_0 = arith.constant 0 : i32
    %c0_i32_1 = arith.constant 0 : i32
    return %arg0, %c0_i32, %c0_i32_0 : i32, i32, i32
  }
  func.func @transform_2(%arg0: i32, %arg1: i32) -> (i32, i32, i32) {
    %c0_i32 = arith.constant 0 : i32
    %c0_i32_0 = arith.constant 0 : i32
    %c0_i32_1 = arith.constant 0 : i32
    return %arg0, %c0_i32, %c0_i32_0 : i32, i32, i32
  }
  func.func @transform_3(%arg0: i32, %arg1: i32) -> (i32, i32) {
    %c0_i32 = arith.constant 0 : i32
    %c0_i32_0 = arith.constant 0 : i32
    %c0_i32_1 = arith.constant 0 : i32
    return %c0_i32, %c0_i32_0 : i32, i32
  }
  func.func @transform_4(%arg0: i32, %arg1: i32) -> (i32, i32) {
    %c0_i32 = arith.constant 0 : i32
    %c0_i32_0 = arith.constant 0 : i32
    %c0_i32_1 = arith.constant 0 : i32
    return %c0_i32, %c0_i32_0 : i32, i32
  }
  func.func @transform_5(%arg0: i32, %arg1: i32) -> (i32, i32) {
    %c0_i32 = arith.constant 0 : i32
    %c0_i32_0 = arith.constant 0 : i32
    %c0_i32_1 = arith.constant 0 : i32
    return %c0_i32, %c0_i32_0 : i32, i32
  }
  func.func @transform_6(%arg0: i32, %arg1: i32) -> (i32, i32) {
    %c0_i32 = arith.constant 0 : i32
    %c0_i32_0 = arith.constant 0 : i32
    %c0_i32_1 = arith.constant 0 : i32
    return %c0_i32, %c0_i32_0 : i32, i32
  }
  func.func @transform_7(%arg0: i32, %arg1: i32) -> (i32, i32) {
    %c0_i32 = arith.constant 0 : i32
    %c0_i32_0 = arith.constant 0 : i32
    %c0_i32_1 = arith.constant 0 : i32
    return %c0_i32, %c0_i32_0 : i32, i32
  }
  func.func @transform_8(%arg0: i32, %arg1: i32) -> (i32, i32) {
    %c0_i32 = arith.constant 0 : i32
    %c0_i32_0 = arith.constant 0 : i32
    %c0_i32_1 = arith.constant 0 : i32
    return %c0_i32, %c0_i32_0 : i32, i32
  }
  func.func @transform_9(%arg0: i32, %arg1: i32) -> (i32, i32) {
    %c0_i32 = arith.constant 0 : i32
    %c0_i32_0 = arith.constant 0 : i32
    %c0_i32_1 = arith.constant 0 : i32
    return %c0_i32, %c0_i32_0 : i32, i32
  }
  func.func @transform_10(%arg0: i32, %arg1: i32) -> (i32, i32) {
    %c0_i32 = arith.constant 0 : i32
    %c0_i32_0 = arith.constant 0 : i32
    %c0_i32_1 = arith.constant 0 : i32
    return %c0_i32, %c0_i32_0 : i32, i32
  }
  func.func @transform_11(%arg0: i32, %arg1: i32) -> (i32, i32) {
    %c0_i32 = arith.constant 0 : i32
    %c0_i32_0 = arith.constant 0 : i32
    %c0_i32_1 = arith.constant 0 : i32
    return %c0_i32, %c0_i32_0 : i32, i32
  }
  func.func @transform_12(%arg0: i32, %arg1: i32) -> (i32, i32) {
    %c0_i32 = arith.constant 0 : i32
    %c0_i32_0 = arith.constant 0 : i32
    %c0_i32_1 = arith.constant 0 : i32
    return %c0_i32, %c0_i32_0 : i32, i32
  }
  func.func @transform_13(%arg0: i32, %arg1: i32) -> (i32, i32) {
    %c0_i32 = arith.constant 0 : i32
    %c0_i32_0 = arith.constant 0 : i32
    %c0_i32_1 = arith.constant 0 : i32
    return %c0_i32, %c0_i32_0 : i32, i32
  }
  func.func @transform_14(%arg0: i32, %arg1: i32) -> (i32, i32) {
    %c0_i32 = arith.constant 0 : i32
    %c0_i32_0 = arith.constant 0 : i32
    %c0_i32_1 = arith.constant 0 : i32
    return %c0_i32, %c0_i32_0 : i32, i32
  }
  func.func @transform_15(%arg0: i32, %arg1: i32) -> (i32, i32) {
    %c0_i32 = arith.constant 0 : i32
    %c0_i32_0 = arith.constant 0 : i32
    %c0_i32_1 = arith.constant 0 : i32
    return %c0_i32, %c0_i32_0 : i32, i32
  }
  func.func @transform_16(%arg0: i32, %arg1: i32) -> (i32, i32) {
    %c0_i32 = arith.constant 0 : i32
    %c0_i32_0 = arith.constant 0 : i32
    %c0_i32_1 = arith.constant 0 : i32
    return %c0_i32, %c0_i32_0 : i32, i32
  }
  func.func @transform_17(%arg0: i32, %arg1: i32) -> (i32, i32) {
    %c0_i32 = arith.constant 0 : i32
    %c0_i32_0 = arith.constant 0 : i32
    %c0_i32_1 = arith.constant 0 : i32
    return %c0_i32, %c0_i32_0 : i32, i32
  }
  func.func @transform_18(%arg0: i32, %arg1: i32) -> (i32, i32) {
    %c0_i32 = arith.constant 0 : i32
    %c0_i32_0 = arith.constant 0 : i32
    %c0_i32_1 = arith.constant 0 : i32
    return %c0_i32, %c0_i32_0 : i32, i32
  }
  func.func @transform_19(%arg0: i32, %arg1: i32) -> (i32, i32) {
    %c0_i32 = arith.constant 0 : i32
    %c0_i32_0 = arith.constant 0 : i32
    %c0_i32_1 = arith.constant 0 : i32
    return %c0_i32, %c0_i32_0 : i32, i32
  }
  func.func @transform_20(%arg0: i32, %arg1: i32) -> (i32, i32) {
    %c0_i32 = arith.constant 0 : i32
    %c0_i32_0 = arith.constant 0 : i32
    %c0_i32_1 = arith.constant 0 : i32
    return %c0_i32, %c0_i32_0 : i32, i32
  }
  func.func @transform_21(%arg0: i32, %arg1: i32) -> (i32, i32, i32) {
    %c0_i32 = arith.constant 0 : i32
    %c0_i32_0 = arith.constant 0 : i32
    return %arg0, %arg1, %c0_i32 : i32, i32, i32
  }
}

</mosaic_0001>

<llo_original>
// kernel: tpu_custom_call.1
$region0: #{tpu_custom_call.1}
  #allocation0 [shape = 'u32[]', space=smem, size = 0x4, offset = 0x4, fixed_abs, tag = 'smem constant byte address 0x4 - core index']
  #allocation1 [shape = 'u32[72,128]{1,0:T(1,128)}', space=vmem, size = 0x9000, scoped, tag = 'internal scratch']
  %s0 = inlined_call_operand.hbm [shape: f32[2,8,32], index: 0, kind: input, shape index: {}]
  %s1 = inlined_call_operand.vmem [shape: f32[2,10,32], index: 1, kind: input, shape index: {}]
  %s2 = inlined_call_operand.hbm [shape: f32[2,1,10], index: 2, kind: input, shape index: {}]
  %s3 = inlined_call_operand.vmem [shape: f32[32,32], index: 3, kind: input, shape index: {}]
  %s4 = inlined_call_operand.vmem [shape: f32[1,32], index: 4, kind: input, shape index: {}]
  %s5 = inlined_call_operand.vmem [shape: f32[32,64], index: 5, kind: input, shape index: {}]
  %s6 = inlined_call_operand.hbm [shape: f32[1,64], index: 6, kind: input, shape index: {}]
  %s7 = inlined_call_operand.vmem [shape: f32[32,32], index: 7, kind: input, shape index: {}]
  %s8 = inlined_call_operand.hbm [shape: f32[1,32], index: 8, kind: input, shape index: {}]
  %s9 = inlined_call_operand.hbm [shape: f32[32,32], index: 9, kind: input, shape index: {}]
  %s10 = inlined_call_operand.hbm [shape: f32[1,32], index: 10, kind: input, shape index: {}]
  %s11 = inlined_call_operand.hbm [shape: f32[32,64], index: 11, kind: input, shape index: {}]
  %s12 = inlined_call_operand.hbm [shape: f32[1,64], index: 12, kind: input, shape index: {}]
  %s13 = inlined_call_operand.hbm [shape: f32[32,32], index: 13, kind: input, shape index: {}]
  %s14 = inlined_call_operand.hbm [shape: f32[1,32], index: 14, kind: input, shape index: {}]
  %s15 = inlined_call_operand.vmem [shape: f32[32,64], index: 15, kind: input, shape index: {}]
  %s16 = inlined_call_operand.hbm [shape: f32[1,64], index: 16, kind: input, shape index: {}]
  %s17 = inlined_call_operand.vmem [shape: f32[64,32], index: 17, kind: input, shape index: {}]
  %s18 = inlined_call_operand.hbm [shape: f32[1,32], index: 18, kind: input, shape index: {}]
  %s19 = inlined_call_operand.vmem [shape: f32[3,32], index: 19, kind: input, shape index: {}]
  %s20 = inlined_call_operand.hbm [shape: f32[3,32], index: 20, kind: input, shape index: {}]
  %s21 = inlined_call_operand.hbm [shape: f32[2,8,32], index: 21, kind: output, shape index: {}]
  %s22 = sld [smem:[#allocation0]]
  $region169: #{tpu_custom_call.1} parent=0
    _
  %s24 = ssub.s32 1, %s22
  %s25 = scalar_select 0, %s24, %s22
  $region1: #{tpu_custom_call.1} parent=0
    #allocation2 [shape = 'u8[8192]{0}', space=vmem, size = 0x2000, scoped, tag = 'input window, operand 0']
    #allocation3 [shape = 's32[2]{0}', space=sflag, size = 0x8, scoped, tag = 'scoped memory for tpu_custom_call.1']
    #allocation4 [shape = 's32[2]{0}', space=sflag, size = 0x8, scoped, tag = 'scoped memory for tpu_custom_call.1']
    #allocation5 [shape = 'u8[1024]{0}', space=vmem, size = 0x400, scoped, tag = 'input window, operand 2']
    #allocation6 [shape = 's32[2]{0}', space=sflag, size = 0x8, scoped, tag = 'scoped memory for tpu_custom_call.1']
    #allocation7 [shape = 'u8[512]{0}', space=vmem, size = 0x400, scoped, tag = 'input window, operand 6, single buffered']
    #allocation8 [shape = 'u8[512]{0}', space=vmem, size = 0x400, scoped, tag = 'input window, operand 8, single buffered']
    #allocation9 [shape = 's32[1]{0}', space=sflag, size = 0x4, scoped, tag = 'scoped memory for tpu_custom_call.1']
    #allocation10 [shape = 'u8[16384]{0}', space=vmem, size = 0x4000, scoped, tag = 'input window, operand 9, single buffered']
    #allocation11 [shape = 'u8[512]{0}', space=vmem, size = 0x400, scoped, tag = 'input window, operand 10, single buffered']
    #allocation12 [shape = 's32[1]{0}', space=sflag, size = 0x4, scoped, tag = 'scoped memory for tpu_custom_call.1']
    #allocation13 [shape = 'u8[16384]{0}', space=vmem, size = 0x4000, scoped, tag = 'input window, operand 11, single buffered']
    #allocation14 [shape = 'u8[512]{0}', space=vmem, size = 0x400, scoped, tag = 'input window, operand 12, single buffered']
    #allocation15 [shape = 's32[1]{0}', space=sflag, size = 0x4, scoped, tag = 'scoped memory for tpu_custom_call.1']
    #allocation16 [shape = 'u8[16384]{0}', space=vmem, size = 0x4000, scoped, tag = 'input window, operand 13, single buffered']
    #allocation17 [shape = 'u8[512]{0}', space=vmem, size = 0x400, scoped, tag = 'input window, operand 14, single buffered']
    #allocation18 [shape = 's32[1]{0}', space=sflag, size = 0x4, scoped, tag = 'scoped memory for tpu_custom_call.1']
    #allocation19 [shape = 'u8[512]{0}', space=vmem, size = 0x400, scoped, tag = 'input window, operand 16, single buffered']
    #allocation20 [shape = 'u8[512]{0}', space=vmem, size = 0x400, scoped, tag = 'input window, operand 18, single buffered']
    #allocation21 [shape = 's32[1]{0}', space=sflag, size = 0x4, scoped, tag = 'scoped memory for tpu_custom_call.1']
    #allocation22 [shape = 'u8[2048]{0}', space=vmem, size = 0x800, scoped, tag = 'input window, operand 20, single buffered']
    #allocation23 [shape = 'u8[8192]{0}', space=vmem, size = 0x2000, scoped, tag = 'output window, operand 0']
    %26 = vsyncpa [#allocation3], 0
    %s27 = scalar_lea.sflag [#allocation3], 1
    %28 = vsyncpa %s27, 0
    %29 = vsyncpa [#allocation6], 0
    %s30 = scalar_lea.sflag [#allocation6], 1
    %31 = vsyncpa %s30, 0
    %32 = vsyncpa [#allocation9], 0
    %33 = vsyncpa [#allocation12], 0
    %34 = vsyncpa [#allocation15], 0
    %35 = vsyncpa [#allocation18], 0
    %36 = vsyncpa [#allocation21], 0
    %37 = vsyncpa [#allocation4], 0
    %s38 = scalar_lea.sflag [#allocation4], 1
    %39 = vsyncpa %s38, 0
    loop: start=0, step=1, limit=4
    $region2: #{tpu_custom_call.1} parent=1 // loop_pre_header
      _
    $region3: #{tpu_custom_call.1} parent=1 // loop_header
      %s41 = sphi 0, %s45
      %p42 = scmp.ge.s32.totalorder %s41, 4
      %s48 = sphi 0, %s60
      %s49 = sphi 0, %s56
      %s50 = sphi 0, %s48
      %s51 = sphi 0, %s49
      %s52 = sphi 0, %s50
      %s53 = sphi 0, %s51
      %s63 = sphi 0, %s65
      %s66 = sphi 0, %s63
      %s67 = sphi 0, %s66
      %s83 = sphi 0, %s67
      %s89 = sphi 0, %s91
      %s92 = sphi 0, %s89
      %s93 = sphi 0, %s92
      %s109 = sphi 0, %s93
      %s115 = sphi 0, %s117
      %s118 = sphi 0, %s115
      %s119 = sphi 0, %s118
      %s135 = sphi 0, %s119
      %s139 = sphi 0, %s139
      %s141 = sphi 0, %s139
      %s142 = sphi 0, %s141
      %s156 = sphi 0, %s142
      %s160 = sphi 0, %s160
      %s162 = sphi 0, %s160
      %s163 = sphi 0, %s162
      %s177 = sphi 0, %s163
      %s181 = sphi 0, %s181
      %s183 = sphi 0, %s181
      %s184 = sphi 0, %s183
      %s198 = sphi 0, %s184
      %s202 = sphi 0, %s202
      %s204 = sphi 0, %s202
      %s205 = sphi 0, %s204
      %s219 = sphi 0, %s205
      %s223 = sphi 0, %s223
      %s225 = sphi 0, %s223
      %s226 = sphi 0, %s225
      %s240 = sphi 0, %s226
      %s244 = sphi 0, %s244
      %s246 = sphi 0, %s244
      %s247 = sphi 0, %s246
      %s261 = sphi 0, %s247
      %s265 = sphi 0, %s265
      %s267 = sphi 0, %s265
      %s268 = sphi 0, %s267
      %s282 = sphi 0, %s268
      %s286 = sphi 0, %s286
      %s288 = sphi 0, %s286
      %s289 = sphi 0, %s288
      %s303 = sphi 0, %s289
      %s307 = sphi 0, %s307
      %s309 = sphi 0, %s307
      %s310 = sphi 0, %s309
      %s324 = sphi 0, %s310
      %s328 = sphi 0, %s328
      %s330 = sphi 0, %s328
      %s331 = sphi 0, %s330
      %s345 = sphi 0, %s331
      %s349 = sphi 0, %s349
      %s351 = sphi 0, %s349
      %s352 = sphi 0, %s351
      %s366 = sphi 0, %s352
      %s370 = sphi 0, %s370
      %s372 = sphi 0, %s370
      %s373 = sphi 0, %s372
      %s387 = sphi 0, %s373
      %s391 = sphi 0, %s391
      %s393 = sphi 0, %s391
      %s394 = sphi 0, %s393
      %s408 = sphi 0, %s394
      %s412 = sphi 0, %s412
      %s414 = sphi 0, %s412
      %s415 = sphi 0, %s414
      %s429 = sphi 0, %s415
      %s433 = sphi 0, %s433
      %s435 = sphi 0, %s433
      %s436 = sphi 0, %s435
      %s450 = sphi 0, %s436
      %s454 = sphi 0, %s454
      %s456 = sphi 0, %s454
      %s457 = sphi 0, %s456
      %s471 = sphi 0, %s457
      %s475 = sphi 0, %s475
      %s477 = sphi 0, %s475
      %s478 = sphi 0, %s477
      %s492 = sphi 0, %s478
      %s496 = sphi 0, %s496
      %s498 = sphi 0, %s496
      %s499 = sphi 0, %s498
      %s513 = sphi 0, %s499
      %s521 = sphi 0, %s523
      %s524 = sphi 0, %s521
      %s525 = sphi 0, %s524
      %s541 = sphi 0, %s525
    $region4: #{tpu_custom_call.1} parent=1 // loop_header_branch
      %44 = sbr.rel (%p42) target = $region8
    $region5: #{tpu_custom_call.1} parent=1 // loop_body
      %s46 = ssub.s32 %s41, 1
      %s47 = ssub.s32 %s41, 2
      %s54 = sadd.s32 1, %s49
      %p55 = scmp.ge.s32.totalorder %s54, 1
      %s56 = scalar_select %p55, 0, %s54
      %s57 = sadd.s32 1, %s48
      %s58 = scalar_select %p55, %s57, %s48
      %p59 = scmp.ge.s32.totalorder %s58, 2
      %s60 = scalar_select %p59, 0, %s58
      %s61 = ssub.s32 %s48, %s60
      %p62 = scmp.eq.s32.totalorder %s61, 0
      %s64 = sadd.s32 %s63, 1
      %s65 = scalar_select %p62, %s63, %s64
      %p68 = pneg %p62
      %p69 = scmp.eq.s32.totalorder %s41, 1
      %p70 = por %p68, %p69
      %p71 = scmp.ne.s32.totalorder %s63, %s66
      %p72 = scmp.eq.s32.totalorder %s41, 0
      %p73 = por %p71, %p72
      %p74 = scmp.ne.s32.totalorder %s63, %s66
      %p75 = scmp.eq.s32.totalorder %s46, 1
      %p76 = por %p74, %p75
      %p77 = scmp.ne.s32.totalorder %s66, %s67
      %p78 = scmp.eq.s32.totalorder %s46, 0
      %p79 = por %p77, %p78
      %p80 = scmp.ne.s32.totalorder %s66, %s67
      %p81 = scmp.eq.s32.totalorder %s47, 1
      %p82 = por %p80, %p81
      %p84 = scmp.ne.s32.totalorder %s67, %s83
      %p85 = scmp.eq.s32.totalorder %s47, 0
      %p86 = por %p84, %p85
      %s87 = ssub.s32 %s48, %s60
      %p88 = scmp.eq.s32.totalorder %s87, 0
      %s90 = sadd.s32 %s89, 1
      %s91 = scalar_select %p88, %s89, %s90
      %p94 = pneg %p88
      %p95 = scmp.eq.s32.totalorder %s41, 1
      %p96 = por %p94, %p95
      %p97 = scmp.ne.s32.totalorder %s89, %s92
      %p98 = scmp.eq.s32.totalorder %s41, 0
      %p99 = por %p97, %p98
      %p100 = scmp.ne.s32.totalorder %s89, %s92
      %p101 = scmp.eq.s32.totalorder %s46, 1
      %p102 = por %p100, %p101
      %p103 = scmp.ne.s32.totalorder %s92, %s93
      %p104 = scmp.eq.s32.totalorder %s46, 0
      %p105 = por %p103, %p104
      %p106 = scmp.ne.s32.totalorder %s92, %s93
      %p107 = scmp.eq.s32.totalorder %s47, 1
      %p108 = por %p106, %p107
      %p110 = scmp.ne.s32.totalorder %s93, %s109
      %p111 = scmp.eq.s32.totalorder %s47, 0
      %p112 = por %p110, %p111
      %s113 = ssub.s32 %s48, %s60
      %p114 = scmp.eq.s32.totalorder %s113, 0
      %s116 = sadd.s32 %s115, 1
      %s117 = scalar_select %p114, %s115, %s116
      %p120 = pneg %p114
      %p121 = scmp.eq.s32.totalorder %s41, 1
      %p122 = por %p120, %p121
      %p123 = scmp.ne.s32.totalorder %s115, %s118
      %p124 = scmp.eq.s32.totalorder %s41, 0
      %p125 = por %p123, %p124
      %p126 = scmp.ne.s32.totalorder %s115, %s118
      %p127 = scmp.eq.s32.totalorder %s46, 1
      %p128 = por %p126, %p127
      %p129 = scmp.ne.s32.totalorder %s118, %s119
      %p130 = scmp.eq.s32.totalorder %s46, 0
      %p131 = por %p129, %p130
      %p132 = scmp.ne.s32.totalorder %s118, %s119
      %p133 = scmp.eq.s32.totalorder %s47, 1
      %p134 = por %p132, %p133
      %p136 = scmp.ne.s32.totalorder %s119, %s135
      %p137 = scmp.eq.s32.totalorder %s47, 0
      %p138 = por %p136, %p137
      %s140 = sadd.s32 %s139, 1
      %p143 = scmp.eq.s32.totalorder %s41, 1
      %p144 = scmp.ne.s32.totalorder %s139, %s141
      %p145 = scmp.eq.s32.totalorder %s41, 0
      %p146 = por %p144, %p145
      %p147 = scmp.ne.s32.totalorder %s139, %s141
      %p148 = scmp.eq.s32.totalorder %s46, 1
      %p149 = por %p147, %p148
      %p150 = scmp.ne.s32.totalorder %s141, %s142
      %p151 = scmp.eq.s32.totalorder %s46, 0
      %p152 = por %p150, %p151
      %p153 = scmp.ne.s32.totalorder %s141, %s142
      %p154 = scmp.eq.s32.totalorder %s47, 1
      %p155 = por %p153, %p154
      %p157 = scmp.ne.s32.totalorder %s142, %s156
      %p158 = scmp.eq.s32.totalorder %s47, 0
      %p159 = por %p157, %p158
      %s161 = sadd.s32 %s160, 1
      %p164 = scmp.eq.s32.totalorder %s41, 1
      %p165 = scmp.ne.s32.totalorder %s160, %s162
      %p166 = scmp.eq.s32.totalorder %s41, 0
      %p167 = por %p165, %p166
      %p168 = scmp.ne.s32.totalorder %s160, %s162
      %p169 = scmp.eq.s32.totalorder %s46, 1
      %p170 = por %p168, %p169
      %p171 = scmp.ne.s32.totalorder %s162, %s163
      %p172 = scmp.eq.s32.totalorder %s46, 0
      %p173 = por %p171, %p172
      %p174 = scmp.ne.s32.totalorder %s162, %s163
      %p175 = scmp.eq.s32.totalorder %s47, 1
      %p176 = por %p174, %p175
      %p178 = scmp.ne.s32.totalorder %s163, %s177
      %p179 = scmp.eq.s32.totalorder %s47, 0
      %p180 = por %p178, %p179
      %s182 = sadd.s32 %s181, 1
      %p185 = scmp.eq.s32.totalorder %s41, 1
      %p186 = scmp.ne.s32.totalorder %s181, %s183
      %p187 = scmp.eq.s32.totalorder %s41, 0
      %p188 = por %p186, %p187
      %p189 = scmp.ne.s32.totalorder %s181, %s183
      %p190 = scmp.eq.s32.totalorder %s46, 1
      %p191 = por %p189, %p190
      %p192 = scmp.ne.s32.totalorder %s183, %s184
      %p193 = scmp.eq.s32.totalorder %s46, 0
      %p194 = por %p192, %p193
      %p195 = scmp.ne.s32.totalorder %s183, %s184
      %p196 = scmp.eq.s32.totalorder %s47, 1
      %p197 = por %p195, %p196
      %p199 = scmp.ne.s32.totalorder %s184, %s198
      %p200 = scmp.eq.s32.totalorder %s47, 0
      %p201 = por %p199, %p200
      %s203 = sadd.s32 %s202, 1
      %p206 = scmp.eq.s32.totalorder %s41, 1
      %p207 = scmp.ne.s32.totalorder %s202, %s204
      %p208 = scmp.eq.s32.totalorder %s41, 0
      %p209 = por %p207, %p208
      %p210 = scmp.ne.s32.totalorder %s202, %s204
      %p211 = scmp.eq.s32.totalorder %s46, 1
      %p212 = por %p210, %p211
      %p213 = scmp.ne.s32.totalorder %s204, %s205
      %p214 = scmp.eq.s32.totalorder %s46, 0
      %p215 = por %p213, %p214
      %p216 = scmp.ne.s32.totalorder %s204, %s205
      %p217 = scmp.eq.s32.totalorder %s47, 1
      %p218 = por %p216, %p217
      %p220 = scmp.ne.s32.totalorder %s205, %s219
      %p221 = scmp.eq.s32.totalorder %s47, 0
      %p222 = por %p220, %p221
      %s224 = sadd.s32 %s223, 1
      %p227 = scmp.eq.s32.totalorder %s41, 1
      %p228 = scmp.ne.s32.totalorder %s223, %s225
      %p229 = scmp.eq.s32.totalorder %s41, 0
      %p230 = por %p228, %p229
      %p231 = scmp.ne.s32.totalorder %s223, %s225
      %p232 = scmp.eq.s32.totalorder %s46, 1
      %p233 = por %p231, %p232
      %p234 = scmp.ne.s32.totalorder %s225, %s226
      %p235 = scmp.eq.s32.totalorder %s46, 0
      %p236 = por %p234, %p235
      %p237 = scmp.ne.s32.totalorder %s225, %s226
      %p238 = scmp.eq.s32.totalorder %s47, 1
      %p239 = por %p237, %p238
      %p241 = scmp.ne.s32.totalorder %s226, %s240
      %p242 = scmp.eq.s32.totalorder %s47, 0
      %p243 = por %p241, %p242
      %s245 = sadd.s32 %s244, 1
      %p248 = scmp.eq.s32.totalorder %s41, 1
      %p249 = scmp.ne.s32.totalorder %s244, %s246
      %p250 = scmp.eq.s32.totalorder %s41, 0
      %p251 = por %p249, %p250
      %p252 = scmp.ne.s32.totalorder %s244, %s246
      %p253 = scmp.eq.s32.totalorder %s46, 1
      %p254 = por %p252, %p253
      %p255 = scmp.ne.s32.totalorder %s246, %s247
      %p256 = scmp.eq.s32.totalorder %s46, 0
      %p257 = por %p255, %p256
      %p258 = scmp.ne.s32.totalorder %s246, %s247
      %p259 = scmp.eq.s32.totalorder %s47, 1
      %p260 = por %p258, %p259
      %p262 = scmp.ne.s32.totalorder %s247, %s261
      %p263 = scmp.eq.s32.totalorder %s47, 0
      %p264 = por %p262, %p263
      %s266 = sadd.s32 %s265, 1
      %p269 = scmp.eq.s32.totalorder %s41, 1
      %p270 = scmp.ne.s32.totalorder %s265, %s267
      %p271 = scmp.eq.s32.totalorder %s41, 0
      %p272 = por %p270, %p271
      %p273 = scmp.ne.s32.totalorder %s265, %s267
      %p274 = scmp.eq.s32.totalorder %s46, 1
      %p275 = por %p273, %p274
      %p276 = scmp.ne.s32.totalorder %s267, %s268
      %p277 = scmp.eq.s32.totalorder %s46, 0
      %p278 = por %p276, %p277
      %p279 = scmp.ne.s32.totalorder %s267, %s268
      %p280 = scmp.eq.s32.totalorder %s47, 1
      %p281 = por %p279, %p280
      %p283 = scmp.ne.s32.totalorder %s268, %s282
      %p284 = scmp.eq.s32.totalorder %s47, 0
      %p285 = por %p283, %p284
      %s287 = sadd.s32 %s286, 1
      %p290 = scmp.eq.s32.totalorder %s41, 1
      %p291 = scmp.ne.s32.totalorder %s286, %s288
      %p292 = scmp.eq.s32.totalorder %s41, 0
      %p293 = por %p291, %p292
      %p294 = scmp.ne.s32.totalorder %s286, %s288
      %p295 = scmp.eq.s32.totalorder %s46, 1
      %p296 = por %p294, %p295
      %p297 = scmp.ne.s32.totalorder %s288, %s289
      %p298 = scmp.eq.s32.totalorder %s46, 0
      %p299 = por %p297, %p298
      %p300 = scmp.ne.s32.totalorder %s288, %s289
      %p301 = scmp.eq.s32.totalorder %s47, 1
      %p302 = por %p300, %p301
      %p304 = scmp.ne.s32.totalorder %s289, %s303
      %p305 = scmp.eq.s32.totalorder %s47, 0
      %p306 = por %p304, %p305
      %s308 = sadd.s32 %s307, 1
      %p311 = scmp.eq.s32.totalorder %s41, 1
      %p312 = scmp.ne.s32.totalorder %s307, %s309
      %p313 = scmp.eq.s32.totalorder %s41, 0
      %p314 = por %p312, %p313
      %p315 = scmp.ne.s32.totalorder %s307, %s309
      %p316 = scmp.eq.s32.totalorder %s46, 1
      %p317 = por %p315, %p316
      %p318 = scmp.ne.s32.totalorder %s309, %s310
      %p319 = scmp.eq.s32.totalorder %s46, 0
      %p320 = por %p318, %p319
      %p321 = scmp.ne.s32.totalorder %s309, %s310
      %p322 = scmp.eq.s32.totalorder %s47, 1
      %p323 = por %p321, %p322
      %p325 = scmp.ne.s32.totalorder %s310, %s324
      %p326 = scmp.eq.s32.totalorder %s47, 0
      %p327 = por %p325, %p326
      %s329 = sadd.s32 %s328, 1
      %p332 = scmp.eq.s32.totalorder %s41, 1
      %p333 = scmp.ne.s32.totalorder %s328, %s330
      %p334 = scmp.eq.s32.totalorder %s41, 0
      %p335 = por %p333, %p334
      %p336 = scmp.ne.s32.totalorder %s328, %s330
      %p337 = scmp.eq.s32.totalorder %s46, 1
      %p338 = por %p336, %p337
      %p339 = scmp.ne.s32.totalorder %s330, %s331
      %p340 = scmp.eq.s32.totalorder %s46, 0
      %p341 = por %p339, %p340
      %p342 = scmp.ne.s32.totalorder %s330, %s331
      %p343 = scmp.eq.s32.totalorder %s47, 1
      %p344 = por %p342, %p343
      %p346 = scmp.ne.s32.totalorder %s331, %s345
      %p347 = scmp.eq.s32.totalorder %s47, 0
      %p348 = por %p346, %p347
      %s350 = sadd.s32 %s349, 1
      %p353 = scmp.eq.s32.totalorder %s41, 1
      %p354 = scmp.ne.s32.totalorder %s349, %s351
      %p355 = scmp.eq.s32.totalorder %s41, 0
      %p356 = por %p354, %p355
      %p357 = scmp.ne.s32.totalorder %s349, %s351
      %p358 = scmp.eq.s32.totalorder %s46, 1
      %p359 = por %p357, %p358
      %p360 = scmp.ne.s32.totalorder %s351, %s352
      %p361 = scmp.eq.s32.totalorder %s46, 0
      %p362 = por %p360, %p361
      %p363 = scmp.ne.s32.totalorder %s351, %s352
      %p364 = scmp.eq.s32.totalorder %s47, 1
      %p365 = por %p363, %p364
      %p367 = scmp.ne.s32.totalorder %s352, %s366
      %p368 = scmp.eq.s32.totalorder %s47, 0
      %p369 = por %p367, %p368
      %s371 = sadd.s32 %s370, 1
      %p374 = scmp.eq.s32.totalorder %s41, 1
      %p375 = scmp.ne.s32.totalorder %s370, %s372
      %p376 = scmp.eq.s32.totalorder %s41, 0
      %p377 = por %p375, %p376
      %p378 = scmp.ne.s32.totalorder %s370, %s372
      %p379 = scmp.eq.s32.totalorder %s46, 1
      %p380 = por %p378, %p379
      %p381 = scmp.ne.s32.totalorder %s372, %s373
      %p382 = scmp.eq.s32.totalorder %s46, 0
      %p383 = por %p381, %p382
      %p384 = scmp.ne.s32.totalorder %s372, %s373
      %p385 = scmp.eq.s32.totalorder %s47, 1
      %p386 = por %p384, %p385
      %p388 = scmp.ne.s32.totalorder %s373, %s387
      %p389 = scmp.eq.s32.totalorder %s47, 0
      %p390 = por %p388, %p389
      %s392 = sadd.s32 %s391, 1
      %p395 = scmp.eq.s32.totalorder %s41, 1
      %p396 = scmp.ne.s32.totalorder %s391, %s393
      %p397 = scmp.eq.s32.totalorder %s41, 0
      %p398 = por %p396, %p397
      %p399 = scmp.ne.s32.totalorder %s391, %s393
      %p400 = scmp.eq.s32.totalorder %s46, 1
      %p401 = por %p399, %p400
      %p402 = scmp.ne.s32.totalorder %s393, %s394
      %p403 = scmp.eq.s32.totalorder %s46, 0
      %p404 = por %p402, %p403
      %p405 = scmp.ne.s32.totalorder %s393, %s394
      %p406 = scmp.eq.s32.totalorder %s47, 1
      %p407 = por %p405, %p406
      %p409 = scmp.ne.s32.totalorder %s394, %s408
      %p410 = scmp.eq.s32.totalorder %s47, 0
      %p411 = por %p409, %p410
      %s413 = sadd.s32 %s412, 1
      %p416 = scmp.eq.s32.totalorder %s41, 1
      %p417 = scmp.ne.s32.totalorder %s412, %s414
      %p418 = scmp.eq.s32.totalorder %s41, 0
      %p419 = por %p417, %p418
      %p420 = scmp.ne.s32.totalorder %s412, %s414
      %p421 = scmp.eq.s32.totalorder %s46, 1
      %p422 = por %p420, %p421
      %p423 = scmp.ne.s32.totalorder %s414, %s415
      %p424 = scmp.eq.s32.totalorder %s46, 0
      %p425 = por %p423, %p424
      %p426 = scmp.ne.s32.totalorder %s414, %s415
      %p427 = scmp.eq.s32.totalorder %s47, 1
      %p428 = por %p426, %p427
      %p430 = scmp.ne.s32.totalorder %s415, %s429
      %p431 = scmp.eq.s32.totalorder %s47, 0
      %p432 = por %p430, %p431
      %s434 = sadd.s32 %s433, 1
      %p437 = scmp.eq.s32.totalorder %s41, 1
      %p438 = scmp.ne.s32.totalorder %s433, %s435
      %p439 = scmp.eq.s32.totalorder %s41, 0
      %p440 = por %p438, %p439
      %p441 = scmp.ne.s32.totalorder %s433, %s435
      %p442 = scmp.eq.s32.totalorder %s46, 1
      %p443 = por %p441, %p442
      %p444 = scmp.ne.s32.totalorder %s435, %s436
      %p445 = scmp.eq.s32.totalorder %s46, 0
      %p446 = por %p444, %p445
      %p447 = scmp.ne.s32.totalorder %s435, %s436
      %p448 = scmp.eq.s32.totalorder %s47, 1
      %p449 = por %p447, %p448
      %p451 = scmp.ne.s32.totalorder %s436, %s450
      %p452 = scmp.eq.s32.totalorder %s47, 0
      %p453 = por %p451, %p452
      %s455 = sadd.s32 %s454, 1
      %p458 = scmp.eq.s32.totalorder %s41, 1
      %p459 = scmp.ne.s32.totalorder %s454, %s456
      %p460 = scmp.eq.s32.totalorder %s41, 0
      %p461 = por %p459, %p460
      %p462 = scmp.ne.s32.totalorder %s454, %s456
      %p463 = scmp.eq.s32.totalorder %s46, 1
      %p464 = por %p462, %p463
      %p465 = scmp.ne.s32.totalorder %s456, %s457
      %p466 = scmp.eq.s32.totalorder %s46, 0
      %p467 = por %p465, %p466
      %p468 = scmp.ne.s32.totalorder %s456, %s457
      %p469 = scmp.eq.s32.totalorder %s47, 1
      %p470 = por %p468, %p469
      %p472 = scmp.ne.s32.totalorder %s457, %s471
      %p473 = scmp.eq.s32.totalorder %s47, 0
      %p474 = por %p472, %p473
      %s476 = sadd.s32 %s475, 1
      %p479 = scmp.eq.s32.totalorder %s41, 1
      %p480 = scmp.ne.s32.totalorder %s475, %s477
      %p481 = scmp.eq.s32.totalorder %s41, 0
      %p482 = por %p480, %p481
      %p483 = scmp.ne.s32.totalorder %s475, %s477
      %p484 = scmp.eq.s32.totalorder %s46, 1
      %p485 = por %p483, %p484
      %p486 = scmp.ne.s32.totalorder %s477, %s478
      %p487 = scmp.eq.s32.totalorder %s46, 0
      %p488 = por %p486, %p487
      %p489 = scmp.ne.s32.totalorder %s477, %s478
      %p490 = scmp.eq.s32.totalorder %s47, 1
      %p491 = por %p489, %p490
      %p493 = scmp.ne.s32.totalorder %s478, %s492
      %p494 = scmp.eq.s32.totalorder %s47, 0
      %p495 = por %p493, %p494
      %s497 = sadd.s32 %s496, 1
      %p500 = scmp.eq.s32.totalorder %s41, 1
      %p501 = scmp.ne.s32.totalorder %s496, %s498
      %p502 = scmp.eq.s32.totalorder %s41, 0
      %p503 = por %p501, %p502
      %p504 = scmp.ne.s32.totalorder %s496, %s498
      %p505 = scmp.eq.s32.totalorder %s46, 1
      %p506 = por %p504, %p505
      %p507 = scmp.ne.s32.totalorder %s498, %s499
      %p508 = scmp.eq.s32.totalorder %s46, 0
      %p509 = por %p507, %p508
      %p510 = scmp.ne.s32.totalorder %s498, %s499
      %p511 = scmp.eq.s32.totalorder %s47, 1
      %p512 = por %p510, %p511
      %p514 = scmp.ne.s32.totalorder %s499, %s513
      %p515 = scmp.eq.s32.totalorder %s47, 0
      %p516 = por %p514, %p515
      %s517 = ssub.s32 %s48, %s60
      %s518 = ssub.s32 %s49, %s56
      %s519 = sor.u32 %s517, %s518
      %p520 = scmp.eq.s32.totalorder %s519, 0
      %s522 = sadd.s32 %s521, 1
      %s523 = scalar_select %p520, %s521, %s522
      %p526 = pneg %p520
      %p527 = scmp.eq.s32.totalorder %s41, 1
      %p528 = por %p526, %p527
      %p529 = scmp.ne.s32.totalorder %s521, %s524
      %p530 = scmp.eq.s32.totalorder %s41, 0
      %p531 = por %p529, %p530
      %p532 = scmp.ne.s32.totalorder %s521, %s524
      %p533 = scmp.eq.s32.totalorder %s46, 1
      %p534 = por %p532, %p533
      %p535 = scmp.ne.s32.totalorder %s524, %s525
      %p536 = scmp.eq.s32.totalorder %s46, 0
      %p537 = por %p535, %p536
      %p538 = scmp.ne.s32.totalorder %s524, %s525
      %p539 = scmp.eq.s32.totalorder %s47, 1
      %p540 = por %p538, %p539
      %p542 = scmp.ne.s32.totalorder %s525, %s541
      %p543 = scmp.eq.s32.totalorder %s47, 0
      %p544 = por %p542, %p543
      %p545 = scmp.le.s32.totalorder 1, %s41
      %p546 = scmp.lt.s32.totalorder %s41, 3
      %p547 = pnand %p545, %p546
      %p548 = pneg %p547
      // Predicated region
      $region9: #{tpu_custom_call.1} parent=5 // pred_check
        _
      $region10: #{tpu_custom_call.1} parent=5 // pred_check_branch
        %550 = sbr.rel (%p547) target = $region12
      $region11: #{tpu_custom_call.1} parent=5 // pred_region
        %s551 = ssub.s32 %s41, 1
        // Predicated region
        $region13: #{tpu_custom_call.1} parent=11 // pred_check
          %p552 = pneg %p152
        $region14: #{tpu_custom_call.1} parent=11 // pred_check_branch
          %554 = sbr.rel (%p552) target = $region16
        $region15: #{tpu_custom_call.1} parent=11 // pred_region
          _
        $region16: #{tpu_custom_call.1} parent=11 // pred_fallthru
          _
        // Predicated region
        $region17: #{tpu_custom_call.1} parent=11 // pred_check
          %p555 = pneg %p173
        $region18: #{tpu_custom_call.1} parent=11 // pred_check_branch
          %557 = sbr.rel (%p555) target = $region20
        $region19: #{tpu_custom_call.1} parent=11 // pred_region
          _
        $region20: #{tpu_custom_call.1} parent=11 // pred_fallthru
          _
        // Predicated region
        $region21: #{tpu_custom_call.1} parent=11 // pred_check
          %p558 = pneg %p194
        $region22: #{tpu_custom_call.1} parent=11 // pred_check_branch
          %560 = sbr.rel (%p558) target = $region24
        $region23: #{tpu_custom_call.1} parent=11 // pred_region
          _
        $region24: #{tpu_custom_call.1} parent=11 // pred_fallthru
          _
        // Predicated region
        $region25: #{tpu_custom_call.1} parent=11 // pred_check
          %p561 = pneg %p215
        $region26: #{tpu_custom_call.1} parent=11 // pred_check_branch
          %563 = sbr.rel (%p561) target = $region28
        $region27: #{tpu_custom_call.1} parent=11 // pred_region
          %565 = vsyncadd [#allocation6], 0
          %s567 = sshll.u32 %s6, 4
          %s568 = int_to_ptr.hbm [resolvable:$true] %s567
          %s569 = sshll.u32 [#allocation7], 4
          %s570 = int_to_ptr.vmem [resolvable:$true] %s569
          %572 = dma.hbm_to_vmem [thread:$0]  %s568, 16, %s570, [#allocation6]
        $region28: #{tpu_custom_call.1} parent=11 // pred_fallthru
          _
        // Predicated region
        $region29: #{tpu_custom_call.1} parent=11 // pred_check
          %p573 = pneg %p236
        $region30: #{tpu_custom_call.1} parent=11 // pred_check_branch
          %575 = sbr.rel (%p573) target = $region32
        $region31: #{tpu_custom_call.1} parent=11 // pred_region
          _
        $region32: #{tpu_custom_call.1} parent=11 // pred_fallthru
          _
        // Predicated region
        $region33: #{tpu_custom_call.1} parent=11 // pred_check
          %p576 = pneg %p257
        $region34: #{tpu_custom_call.1} parent=11 // pred_check_branch
          %578 = sbr.rel (%p576) target = $region36
        $region35: #{tpu_custom_call.1} parent=11 // pred_region
          %580 = vsyncadd [#allocation9], 0
          %s582 = sshll.u32 %s8, 4
          %s583 = int_to_ptr.hbm [resolvable:$true] %s582
          %s584 = sshll.u32 [#allocation8], 4
          %s585 = int_to_ptr.vmem [resolvable:$true] %s584
          %587 = dma.hbm_to_vmem [thread:$0]  %s583, 16, %s585, [#allocation9]
        $region36: #{tpu_custom_call.1} parent=11 // pred_fallthru
          _
        // Predicated region
        $region37: #{tpu_custom_call.1} parent=11 // pred_check
          %p588 = pneg %p278
        $region38: #{tpu_custom_call.1} parent=11 // pred_check_branch
          %590 = sbr.rel (%p588) target = $region40
        $region39: #{tpu_custom_call.1} parent=11 // pred_region
          %592 = vsyncadd [#allocation9], 0
          %s593 = sshll.u32 %s9, 4
          %s594 = int_to_ptr.hbm [resolvable:$true] %s593
          %s595 = sshll.u32 [#allocation10], 4
          %s596 = int_to_ptr.vmem [resolvable:$true] %s595
          %601 = dma.hbm_to_vmem [thread:$0]  %s594, 512, %s596, [#allocation9], 128, 128, 8
        $region40: #{tpu_custom_call.1} parent=11 // pred_fallthru
          _
        // Predicated region
        $region41: #{tpu_custom_call.1} parent=11 // pred_check
          %p602 = pneg %p299
        $region42: #{tpu_custom_call.1} parent=11 // pred_check_branch
          %604 = sbr.rel (%p602) target = $region44
        $region43: #{tpu_custom_call.1} parent=11 // pred_region
          %606 = vsyncadd [#allocation12], 0
          %s608 = sshll.u32 %s10, 4
          %s609 = int_to_ptr.hbm [resolvable:$true] %s608
          %s610 = sshll.u32 [#allocation11], 4
          %s611 = int_to_ptr.vmem [resolvable:$true] %s610
          %613 = dma.hbm_to_vmem [thread:$0]  %s609, 16, %s611, [#allocation12]
        $region44: #{tpu_custom_call.1} parent=11 // pred_fallthru
          _
        // Predicated region
        $region45: #{tpu_custom_call.1} parent=11 // pred_check
          %p614 = pneg %p320
        $region46: #{tpu_custom_call.1} parent=11 // pred_check_branch
          %616 = sbr.rel (%p614) target = $region48
        $region47: #{tpu_custom_call.1} parent=11 // pred_region
          %618 = vsyncadd [#allocation12], 0
          %s619 = sshll.u32 %s11, 4
          %s620 = int_to_ptr.hbm [resolvable:$true] %s619
          %s621 = sshll.u32 [#allocation13], 4
          %s622 = int_to_ptr.vmem [resolvable:$true] %s621
          %627 = dma.hbm_to_vmem [thread:$0]  %s620, 512, %s622, [#allocation12], 128, 128, 8
        $region48: #{tpu_custom_call.1} parent=11 // pred_fallthru
          _
        // Predicated region
        $region49: #{tpu_custom_call.1} parent=11 // pred_check
          %p628 = pneg %p341
        $region50: #{tpu_custom_call.1} parent=11 // pred_check_branch
          %630 = sbr.rel (%p628) target = $region52
        $region51: #{tpu_custom_call.1} parent=11 // pred_region
          %632 = vsyncadd [#allocation15], 0
          %s634 = sshll.u32 %s12, 4
          %s635 = int_to_ptr.hbm [resolvable:$true] %s634
          %s636 = sshll.u32 [#allocation14], 4
          %s637 = int_to_ptr.vmem [resolvable:$true] %s636
          %639 = dma.hbm_to_vmem [thread:$0]  %s635, 16, %s637, [#allocation15]
        $region52: #{tpu_custom_call.1} parent=11 // pred_fallthru
          _
        // Predicated region
        $region53: #{tpu_custom_call.1} parent=11 // pred_check
          %p640 = pneg %p362
        $region54: #{tpu_custom_call.1} parent=11 // pred_check_branch
          %642 = sbr.rel (%p640) target = $region56
        $region55: #{tpu_custom_call.1} parent=11 // pred_region
          %644 = vsyncadd [#allocation15], 0
          %s645 = sshll.u32 %s13, 4
          %s646 = int_to_ptr.hbm [resolvable:$true] %s645
          %s647 = sshll.u32 [#allocation16], 4
          %s648 = int_to_ptr.vmem [resolvable:$true] %s647
          %653 = dma.hbm_to_vmem [thread:$0]  %s646, 512, %s648, [#allocation15], 128, 128, 8
        $region56: #{tpu_custom_call.1} parent=11 // pred_fallthru
          _
        // Predicated region
        $region57: #{tpu_custom_call.1} parent=11 // pred_check
          %p654 = pneg %p383
        $region58: #{tpu_custom_call.1} parent=11 // pred_check_branch
          %656 = sbr.rel (%p654) target = $region60
        $region59: #{tpu_custom_call.1} parent=11 // pred_region
          %658 = vsyncadd [#allocation18], 0
          %s660 = sshll.u32 %s14, 4
          %s661 = int_to_ptr.hbm [resolvable:$true] %s660
          %s662 = sshll.u32 [#allocation17], 4
          %s663 = int_to_ptr.vmem [resolvable:$true] %s662
          %665 = dma.hbm_to_vmem [thread:$0]  %s661, 16, %s663, [#allocation18]
        $region60: #{tpu_custom_call.1} parent=11 // pred_fallthru
          _
        // Predicated region
        $region61: #{tpu_custom_call.1} parent=11 // pred_check
          %p666 = pneg %p404
        $region62: #{tpu_custom_call.1} parent=11 // pred_check_branch
          %668 = sbr.rel (%p666) target = $region64
        $region63: #{tpu_custom_call.1} parent=11 // pred_region
          _
        $region64: #{tpu_custom_call.1} parent=11 // pred_fallthru
          _
        // Predicated region
        $region65: #{tpu_custom_call.1} parent=11 // pred_check
          %p669 = pneg %p425
        $region66: #{tpu_custom_call.1} parent=11 // pred_check_branch
          %671 = sbr.rel (%p669) target = $region68
        $region67: #{tpu_custom_call.1} parent=11 // pred_region
          %673 = vsyncadd [#allocation18], 0
          %s675 = sshll.u32 %s16, 4
          %s676 = int_to_ptr.hbm [resolvable:$true] %s675
          %s677 = sshll.u32 [#allocation19], 4
          %s678 = int_to_ptr.vmem [resolvable:$true] %s677
          %680 = dma.hbm_to_vmem [thread:$0]  %s676, 16, %s678, [#allocation18]
        $region68: #{tpu_custom_call.1} parent=11 // pred_fallthru
          _
        // Predicated region
        $region69: #{tpu_custom_call.1} parent=11 // pred_check
          %p681 = pneg %p446
        $region70: #{tpu_custom_call.1} parent=11 // pred_check_branch
          %683 = sbr.rel (%p681) target = $region72
        $region71: #{tpu_custom_call.1} parent=11 // pred_region
          _
        $region72: #{tpu_custom_call.1} parent=11 // pred_fallthru
          _
        // Predicated region
        $region73: #{tpu_custom_call.1} parent=11 // pred_check
          %p684 = pneg %p467
        $region74: #{tpu_custom_call.1} parent=11 // pred_check_branch
          %686 = sbr.rel (%p684) target = $region76
        $region75: #{tpu_custom_call.1} parent=11 // pred_region
          %688 = vsyncadd [#allocation21], 0
          %s690 = sshll.u32 %s18, 4
          %s691 = int_to_ptr.hbm [resolvable:$true] %s690
          %s692 = sshll.u32 [#allocation20], 4
          %s693 = int_to_ptr.vmem [resolvable:$true] %s692
          %695 = dma.hbm_to_vmem [thread:$0]  %s691, 16, %s693, [#allocation21]
        $region76: #{tpu_custom_call.1} parent=11 // pred_fallthru
          _
        // Predicated region
        $region77: #{tpu_custom_call.1} parent=11 // pred_check
          %p696 = pneg %p488
        $region78: #{tpu_custom_call.1} parent=11 // pred_check_branch
          %698 = sbr.rel (%p696) target = $region80
        $region79: #{tpu_custom_call.1} parent=11 // pred_region
          _
        $region80: #{tpu_custom_call.1} parent=11 // pred_fallthru
          _
        // Predicated region
        $region81: #{tpu_custom_call.1} parent=11 // pred_check
          %p699 = pneg %p509
        $region82: #{tpu_custom_call.1} parent=11 // pred_check_branch
          %701 = sbr.rel (%p699) target = $region84
        $region83: #{tpu_custom_call.1} parent=11 // pred_region
          %703 = vsyncadd [#allocation21], 0
          %s705 = sshll.u32 %s20, 4
          %s706 = int_to_ptr.hbm [resolvable:$true] %s705
          %s707 = sshll.u32 [#allocation22], 4
          %s708 = int_to_ptr.vmem [resolvable:$true] %s707
          %710 = dma.hbm_to_vmem [thread:$0]  %s706, 64, %s708, [#allocation21]
        $region84: #{tpu_custom_call.1} parent=11 // pred_fallthru
          _
      $region12: #{tpu_custom_call.1} parent=5 // pred_fallthru
        _
      %p711 = scmp.lt.s32.totalorder %s41, 2
      // Predicated region
      $region85: #{tpu_custom_call.1} parent=5 // pred_check
        %p712 = pneg %p711
      $region86: #{tpu_custom_call.1} parent=5 // pred_check_branch
        %714 = sbr.rel (%p712) target = $region88
      $region87: #{tpu_custom_call.1} parent=5 // pred_region
        // Predicated region
        $region89: #{tpu_custom_call.1} parent=87 // pred_check
          %p715 = pneg %p73
        $region90: #{tpu_custom_call.1} parent=87 // pred_check_branch
          %717 = sbr.rel (%p715) target = $region92
        $region91: #{tpu_custom_call.1} parent=87 // pred_region
          %s718 = sand.u32 %s63, 1
          %s719 = scalar_lea.sflag [#allocation3], %s718
          %s720 = sand.u32 %s63, 1
          %s721 = smul.addr %s720, 8
          %s722 = scalar_lea.vmem [#allocation2], %s721
          %724 = vsyncadd %s719, 0
          %s725 = smul.addr %s48, 8
          %s726 = scalar_lea.hbm %s0, %s725
          %s728 = sshll.u32 %s726, 4
          %s729 = int_to_ptr.hbm [resolvable:$true] %s728
          %s730 = sshll.u32 %s722, 4
          %s731 = int_to_ptr.vmem [resolvable:$true] %s730
          %733 = dma.hbm_to_vmem [thread:$0]  %s729, 128, %s731, %s719
        $region92: #{tpu_custom_call.1} parent=87 // pred_fallthru
          _
        // Predicated region
        $region93: #{tpu_custom_call.1} parent=87 // pred_check
          %p734 = pneg %p99
        $region94: #{tpu_custom_call.1} parent=87 // pred_check_branch
          %736 = sbr.rel (%p734) target = $region96
        $region95: #{tpu_custom_call.1} parent=87 // pred_region
          %p737 = scmp.lt.s32.totalorder %s48, 1
          %s738 = scalar_select %p737, %s48, 1
          %s739 = smul.addr %s738, 2
          %s740 = smul.addr %s739, 8
          %s741 = scalar_lea.vmem %s1, %s740
        $region96: #{tpu_custom_call.1} parent=87 // pred_fallthru
          _
        // Predicated region
        $region97: #{tpu_custom_call.1} parent=87 // pred_check
          %p742 = pneg %p125
        $region98: #{tpu_custom_call.1} parent=87 // pred_check_branch
          %744 = sbr.rel (%p742) target = $region100
        $region99: #{tpu_custom_call.1} parent=87 // pred_region
          %s745 = sand.u32 %s41, 1
          %s746 = scalar_lea.sflag [#allocation6], %s745
          %s747 = sand.u32 %s115, 1
          %s748 = scalar_lea.vmem [#allocation5], %s747
          %750 = vsyncadd %s746, 0
          %s751 = scalar_lea.hbm %s2, %s48
          %s753 = sshll.u32 %s751, 4
          %s754 = int_to_ptr.hbm [resolvable:$true] %s753
          %s755 = sshll.u32 %s748, 4
          %s756 = int_to_ptr.vmem [resolvable:$true] %s755
          %758 = dma.hbm_to_vmem [thread:$0]  %s754, 16, %s756, %s746
        $region100: #{tpu_custom_call.1} parent=87 // pred_fallthru
          _
      $region88: #{tpu_custom_call.1} parent=5 // pred_fallthru
        _
      %p759 = scmp.le.s32.totalorder 1, %s41
      %p760 = scmp.lt.s32.totalorder %s41, 3
      %p761 = pnand %p759, %p760
      %p762 = pneg %p761
      // Predicated region
      $region101: #{tpu_custom_call.1} parent=5 // pred_check
        _
      $region102: #{tpu_custom_call.1} parent=5 // pred_check_branch
        %764 = sbr.rel (%p761) target = $region104
      $region103: #{tpu_custom_call.1} parent=5 // pred_region
        %s765 = ssub.s32 %s41, 1
        %s766 = sand.u32 %s66, 1
        %s767 = scalar_lea.sflag [#allocation3], %s766
        %s768 = sand.u32 %s66, 1
        %s769 = smul.addr %s768, 8
        %s770 = scalar_lea.vmem [#allocation2], %s769
        // Predicated region
        $region105: #{tpu_custom_call.1} parent=103 // pred_check
          %p771 = pneg %p79
        $region106: #{tpu_custom_call.1} parent=103 // pred_check_branch
          %773 = sbr.rel (%p771) target = $region108
        $region107: #{tpu_custom_call.1} parent=103 // pred_region
          %775 = dma.done %s767, 128
        $region108: #{tpu_custom_call.1} parent=103 // pred_fallthru
          _
        %s776 = sand.u32 %s46, 1
        %s777 = scalar_lea.sflag [#allocation6], %s776
        %s778 = sand.u32 %s118, 1
        %s779 = scalar_lea.vmem [#allocation5], %s778
        // Predicated region
        $region109: #{tpu_custom_call.1} parent=103 // pred_check
          %p780 = pneg %p131
        $region110: #{tpu_custom_call.1} parent=103 // pred_check_branch
          %782 = sbr.rel (%p780) target = $region112
        $region111: #{tpu_custom_call.1} parent=103 // pred_region
          %784 = dma.done %s777, 16
        $region112: #{tpu_custom_call.1} parent=103 // pred_fallthru
          _
        // Predicated region
        $region113: #{tpu_custom_call.1} parent=103 // pred_check
          %p785 = pneg %p215
        $region114: #{tpu_custom_call.1} parent=103 // pred_check_branch
          %787 = sbr.rel (%p785) target = $region116
        $region115: #{tpu_custom_call.1} parent=103 // pred_region
          %789 = dma.done [#allocation6], 16
        $region116: #{tpu_custom_call.1} parent=103 // pred_fallthru
          _
        // Predicated region
        $region117: #{tpu_custom_call.1} parent=103 // pred_check
          %p790 = pneg %p257
        $region118: #{tpu_custom_call.1} parent=103 // pred_check_branch
          %792 = sbr.rel (%p790) target = $region120
        $region119: #{tpu_custom_call.1} parent=103 // pred_region
          %794 = dma.done [#allocation9], 16
        $region120: #{tpu_custom_call.1} parent=103 // pred_fallthru
          _
        // Predicated region
        $region121: #{tpu_custom_call.1} parent=103 // pred_check
          %p795 = pneg %p278
        $region122: #{tpu_custom_call.1} parent=103 // pred_check_branch
          %797 = sbr.rel (%p795) target = $region124
        $region123: #{tpu_custom_call.1} parent=103 // pred_region
          %799 = dma.done [#allocation9], 512
        $region124: #{tpu_custom_call.1} parent=103 // pred_fallthru
          _
        // Predicated region
        $region125: #{tpu_custom_call.1} parent=103 // pred_check
          %p800 = pneg %p299
        $region126: #{tpu_custom_call.1} parent=103 // pred_check_branch
          %802 = sbr.rel (%p800) target = $region128
        $region127: #{tpu_custom_call.1} parent=103 // pred_region
          %804 = dma.done [#allocation12], 16
        $region128: #{tpu_custom_call.1} parent=103 // pred_fallthru
          _
        // Predicated region
        $region129: #{tpu_custom_call.1} parent=103 // pred_check
          %p805 = pneg %p320
        $region130: #{tpu_custom_call.1} parent=103 // pred_check_branch
          %807 = sbr.rel (%p805) target = $region132
        $region131: #{tpu_custom_call.1} parent=103 // pred_region
          %809 = dma.done [#allocation12], 512
        $region132: #{tpu_custom_call.1} parent=103 // pred_fallthru
          _
        // Predicated region
        $region133: #{tpu_custom_call.1} parent=103 // pred_check
          %p810 = pneg %p341
        $region134: #{tpu_custom_call.1} parent=103 // pred_check_branch
          %812 = sbr.rel (%p810) target = $region136
        $region135: #{tpu_custom_call.1} parent=103 // pred_region
          %814 = dma.done [#allocation15], 16
        $region136: #{tpu_custom_call.1} parent=103 // pred_fallthru
          _
        // Predicated region
        $region137: #{tpu_custom_call.1} parent=103 // pred_check
          %p815 = pneg %p362
        $region138: #{tpu_custom_call.1} parent=103 // pred_check_branch
          %817 = sbr.rel (%p815) target = $region140
        $region139: #{tpu_custom_call.1} parent=103 // pred_region
          %819 = dma.done [#allocation15], 512
        $region140: #{tpu_custom_call.1} parent=103 // pred_fallthru
          _
        // Predicated region
        $region141: #{tpu_custom_call.1} parent=103 // pred_check
          %p820 = pneg %p383
        $region142: #{tpu_custom_call.1} parent=103 // pred_check_branch
          %822 = sbr.rel (%p820) target = $region144
        $region143: #{tpu_custom_call.1} parent=103 // pred_region
          %824 = dma.done [#allocation18], 16
        $region144: #{tpu_custom_call.1} parent=103 // pred_fallthru
          _
        // Predicated region
        $region145: #{tpu_custom_call.1} parent=103 // pred_check
          %p825 = pneg %p425
        $region146: #{tpu_custom_call.1} parent=103 // pred_check_branch
          %827 = sbr.rel (%p825) target = $region148
        $region147: #{tpu_custom_call.1} parent=103 // pred_region
          %829 = dma.done [#allocation18], 16
        $region148: #{tpu_custom_call.1} parent=103 // pred_fallthru
          _
        // Predicated region
        $region149: #{tpu_custom_call.1} parent=103 // pred_check
          %p830 = pneg %p467
        $region150: #{tpu_custom_call.1} parent=103 // pred_check_branch
          %832 = sbr.rel (%p830) target = $region152
        $region151: #{tpu_custom_call.1} parent=103 // pred_region
          %834 = dma.done [#allocation21], 16
        $region152: #{tpu_custom_call.1} parent=103 // pred_fallthru
          _
        // Predicated region
        $region153: #{tpu_custom_call.1} parent=103 // pred_check
          %p835 = pneg %p509
        $region154: #{tpu_custom_call.1} parent=103 // pred_check_branch
          %837 = sbr.rel (%p835) target = $region156
        $region155: #{tpu_custom_call.1} parent=103 // pred_region
          %839 = dma.done [#allocation21], 64
        $region156: #{tpu_custom_call.1} parent=103 // pred_fallthru
          _
        %s840 = sand.u32 %s66, 1
        %s841 = scalar_lea.sflag [#allocation3], %s840
        %s842 = sand.u32 %s66, 1
        %s843 = smul.addr %s842, 8
        %s844 = scalar_lea.vmem [#allocation2], %s843
        %p845 = pneg %p79
        %p846 = pneg %p76
        %p847 = scmp.lt.s32.totalorder %s50, 1
        %s848 = scalar_select %p847, %s50, 1
        %s849 = smul.addr %s848, 2
        %s850 = smul.addr %s849, 8
        %s851 = scalar_lea.vmem %s1, %s850
        %p852 = pneg %p105
        %p853 = pneg %p102
        %s854 = sand.u32 %s46, 1
        %s855 = scalar_lea.sflag [#allocation6], %s854
        %s856 = sand.u32 %s118, 1
        %s857 = scalar_lea.vmem [#allocation5], %s856
        %p858 = pneg %p131
        %p859 = pneg %p128
        %p860 = pneg %p152
        %p861 = pneg %p149
        %p862 = pneg %p173
        %p863 = pneg %p170
        %p864 = pneg %p194
        %p865 = pneg %p191
        %p866 = pneg %p215
        %p867 = pneg %p212
        %p868 = pneg %p236
        %p869 = pneg %p233
        %p870 = pneg %p257
        %p871 = pneg %p254
        %p872 = pneg %p278
        %p873 = pneg %p275
        %p874 = pneg %p299
        %p875 = pneg %p296
        %p876 = pneg %p320
        %p877 = pneg %p317
        %p878 = pneg %p341
        %p879 = pneg %p338
        %p880 = pneg %p362
        %p881 = pneg %p359
        %p882 = pneg %p383
        %p883 = pneg %p380
        %p884 = pneg %p404
        %p885 = pneg %p401
        %p886 = pneg %p425
        %p887 = pneg %p422
        %p888 = pneg %p446
        %p889 = pneg %p443
        %p890 = pneg %p467
        %p891 = pneg %p464
        %p892 = pneg %p488
        %p893 = pneg %p485
        %p894 = pneg %p509
        %p895 = pneg %p506
        %p896 = pneg %p537
        %p897 = pneg %p534
        %s898 = sand.u32 %s524, 1
        %s899 = scalar_lea.sflag [#allocation4], %s898
        %s900 = sand.u32 %s524, 1
        %s901 = smul.addr %s900, 8
        %s902 = scalar_lea.vmem [#allocation23], %s901
        %p903 = scmp.lt.s32.totalorder %s50, 1
        %s904 = scalar_select %p903, %s50, 1
        %s905 = smul.addr %s904, 2
        %s906 = smul.addr %s905, 8
        %s907 = scalar_lea.vmem %s1, %s906
        %s908 = smul.u32 %s51, 8
        %v909 = vld [vmem:[%s19] sm:$0x7]
        %v910 = vld [vmem:[#allocation22] sm:$0x7]
        %s911 = scalar_lea.vmem %s770, %s908 [#allocation2]
        %v912 = vld [vmem:[%s911] sm:$0xff]
        %vm913 = vcmask 261120
        %v914 = vsel %vm913, %v912, 0.0
        %915 = vadd.xlane.f32.xlu0 %v914
        %v916 = vpop.xlane.xlu0 %915
        %v917 = vrcp.pop 32.0
        %v918 = vmul.f32 32.0, %v917
        %v919 = vsub.f32 1.0, %v918
        %v920 = vmul.f32 %v917, %v919
        %v921 = vadd.f32 %v917, %v920
        %vm922 = vweird.f32 %v917
        %v923 = vsel %vm922, %v917, %v921
        %v924 = vmul.f32 %v916, %v923
        %v925 = vsub.f32 %v912, %v924
        %v926 = vmul.f32 %v925, %v925
        %v927 = vsel %vm913, %v926, 0.0
        %928 = vadd.xlane.f32.xlu0 %v927
        %v929 = vpop.xlane.xlu0 %928
        %v930 = vrcp.pop 31.0
        %v931 = vmul.f32 31.0, %v930
        %v932 = vsub.f32 1.0, %v931
        %v933 = vmul.f32 %v930, %v932
        %v934 = vadd.f32 %v930, %v933
        %vm935 = vweird.f32 %v930
        %v936 = vsel %vm935, %v930, %v934
        %v937 = vmul.f32 %v929, %v936
        %v938 = vperm.slane %v909, 0
        %v939 = vmul.f32 %v938, %v925
        %v940 = vrsqrt.pop %v937
        %v941 = vmul.f32 %v940, %v937
        %v942 = vmul.f32 %v941, %v940
        %v943 = vmul.f32 0.5, %v942
        %v944 = vsub.f32 1.5, %v943
        %v945 = vmul.f32 %v940, %v944
        %v946 = vmul.f32 %v937, %v945
        %vm947 = vcmp.eq.f32.partialorder %v937, inf
        %v948 = vsel %vm947, %v937, %v946
        %vm949 = vcmp.eq.f32.partialorder %v937, 0.0
        %v950 = vand.u32 %v937, 2147483648
        %v951 = vsel %vm949, %v950, %v948
        %v952 = vadd.f32 %v951, 1e-06
        %v953 = vrcp.pop %v952
        %v954 = vmul.f32 %v952, %v953
        %v955 = vsub.f32 1.0, %v954
        %v956 = vmul.f32 %v953, %v955
        %v957 = vadd.f32 %v953, %v956
        %vm958 = vweird.f32 %v952
        %vm959 = vweird.f32 %v953
        %vm960 = vmor %vm958, %vm959
        %v961 = vsel %vm960, %v953, %v957
        %v962 = vand.u32 2147483647, %v952
        %vm963 = vcmp.eq.f32.partialorder %v962, 8.507059e+37
        %v964 = vand.u32 %v952, 2147483648
        %v965 = vor.u32 1.1754944e-38, %v964
        %v966 = vsel %vm963, %v965, %v961
        %v967 = vmul.f32 %v939, %v966
        %v968 = vperm.slane %v910, 0
        %v969 = vadd.f32 %v967, %v968
        %v970 = vld [vmem:[%s770] sm:$0xff]
        %v971 = vsel %vm913, %v970, 0.0
        %972 = vadd.xlane.f32.xlu0 %v971
        %v973 = vpop.xlane.xlu0 %972
        %v974 = vmul.f32 %v973, %v923
        %v975 = vsub.f32 %v970, %v974
        %v976 = vmul.f32 %v975, %v975
        %v977 = vsel %vm913, %v976, 0.0
        %978 = vadd.xlane.f32.xlu0 %v977
        %v979 = vpop.xlane.xlu0 %978
        %v980 = vmul.f32 %v979, %v936
        %v981 = vmul.f32 %v938, %v975
        %v982 = vrsqrt.pop %v980
        %v983 = vmul.f32 %v982, %v980
        %v984 = vmul.f32 %v983, %v982
        %v985 = vmul.f32 0.5, %v984
        %v986 = vsub.f32 1.5, %v985
        %v987 = vmul.f32 %v982, %v986
        %v988 = vmul.f32 %v980, %v987
        %vm989 = vcmp.eq.f32.partialorder %v980, inf
        %v990 = vsel %vm989, %v980, %v988
        %vm991 = vcmp.eq.f32.partialorder %v980, 0.0
        %v992 = vand.u32 %v980, 2147483648
        %v993 = vsel %vm991, %v992, %v990
        %v994 = vadd.f32 %v993, 1e-06
        %v995 = vrcp.pop %v994
        %v996 = vmul.f32 %v994, %v995
        %v997 = vsub.f32 1.0, %v996
        %v998 = vmul.f32 %v995, %v997
        %v999 = vadd.f32 %v995, %v998
        %vm1000 = vweird.f32 %v994
        %vm1001 = vweird.f32 %v995
        %vm1002 = vmor %vm1000, %vm1001
        %v1003 = vsel %vm1002, %v995, %v999
        %v1004 = vand.u32 2147483647, %v994
        %vm1005 = vcmp.eq.f32.partialorder %v1004, 8.507059e+37
        %v1006 = vand.u32 %v994, 2147483648
        %v1007 = vor.u32 1.1754944e-38, %v1006
        %v1008 = vsel %vm1005, %v1007, %v1003
        %v1009 = vmul.f32 %v981, %v1008
        %v1010 = vadd.f32 %v1009, %v968
        %v1011 = vld [vmem:[%s3] sm:$0xff]
        %v1012 = vld [vmem:[%s3 + $0x8] sm:$0xff]
        %v1013 = vld [vmem:[%s3 + $0x10] sm:$0xff]
        %v1014 = vld [vmem:[%s3 + $0x18] sm:$0xff]
        %v1015 = vld [vmem:[%s4] sm:$0x1]
        %v1017 = vperm.slane %v1015, 0
        %v1020 = vsel %vm913, %v969, 0
        %1022 = vmatpush.msra.mxu0 0.0
        %1023 = vmatpush.msra.mxu0 0.0
        %1024 = vmatpush.msra.mxu0 0.0
        %1025 = vmatpush.msra.mxu0 0.0
        %1026 = vmatpush.msra.mxu0 0.0
        %1027 = vmatpush.msra.mxu0 0.0
        %1028 = vmatpush.msra.mxu0 0.0
        %1029 = vmatpush.msra.mxu0 0.0
        %1030 = vmatpush.msra.mxu0 0.0
        %1031 = vmatpush.msra.mxu0 0.0
        %1032 = vmatpush.msra.mxu0 0.0
        %1033 = vmatpush.msra.mxu0 0.0
        %1034 = vmatpush.msra.mxu0 %v1014
        %1035 = vmatpush.msra.mxu0 %v1013
        %1036 = vmatpush.msra.mxu0 %v1012
        %1037 = vmatpush.msra.mxu0 %v1011
        %1038 = vmatmul.f32.gmra.mxu0 %v1020
        %v1039 = vpop.f32.mrf.mxu0
        %v1040 = vadd.f32 %v1017, %v1039
        %1041 = vdwg.mxu0
        %v1042 = vld [vmem:[%s5] sm:$0xff]
        %v1043 = vld [vmem:[%s5 + $0x8] sm:$0xff]
        %v1044 = vld [vmem:[%s5 + $0x10] sm:$0xff]
        %v1045 = vld [vmem:[%s5 + $0x18] sm:$0xff]
        %v1046 = vld [vmem:[#allocation7] sm:$0x1]
        %v1048 = vperm.slane %v1046, 0
        %v1051 = vsel %vm913, %v1010, 0
        %1053 = vmatpush.msra.mxu0 0.0
        %1054 = vmatpush.msra.mxu0 0.0
        %1055 = vmatpush.msra.mxu0 0.0
        %1056 = vmatpush.msra.mxu0 0.0
        %1057 = vmatpush.msra.mxu0 0.0
        %1058 = vmatpush.msra.mxu0 0.0
        %1059 = vmatpush.msra.mxu0 0.0
        %1060 = vmatpush.msra.mxu0 0.0
        %1061 = vmatpush.msra.mxu0 0.0
        %1062 = vmatpush.msra.mxu0 0.0
        %1063 = vmatpush.msra.mxu0 0.0
        %1064 = vmatpush.msra.mxu0 0.0
        %1065 = vmatpush.msra.mxu0 %v1045
        %1066 = vmatpush.msra.mxu0 %v1044
        %1067 = vmatpush.msra.mxu0 %v1043
        %1068 = vmatpush.msra.mxu0 %v1042
        %1069 = vmatmul.f32.gmra.mxu0 %v1051
        %v1070 = vpop.f32.mrf.mxu0
        %v1071 = vadd.f32 %v1048, %v1070
        %1072 = vdwg.mxu0
        %v1073 = vlaneseq
        %v1074 = vshrl.u32 %v1073, 7
        %v1075 = vstv %s908
        %v1076 = vadd.s32 %v1075, %v1074
        %v1077 = vlaneseq
        %v1078 = vand.u32 %v1077, 127
        %vm1079 = vcmp.ge.s32.totalorder %v1076, %v1078
        %v1080 = vld [vmem:[%s7] sm:$0xff]
        %v1081 = vld [vmem:[%s7 + $0x8] sm:$0xff]
        %v1082 = vld [vmem:[%s7 + $0x10] sm:$0xff]
        %v1083 = vld [vmem:[%s7 + $0x18] sm:$0xff]
        %v1084 = vld [vmem:[#allocation8] sm:$0x1]
        %1086 = vrot.lane.b32.xlu0 %v1040, 120
        %v1087 = vpop.permute.xlu0 %1086
        %1088 = vrot.lane.b32.xlu0 %v1040, 112
        %v1089 = vpop.permute.xlu0 %1088
        %1090 = vrot.lane.b32.xlu0 %v1040, 104
        %v1091 = vpop.permute.xlu0 %1090
        %1093 = vrot.lane.b32.xlu0 %v1071, 120
        %v1094 = vpop.permute.xlu0 %1093
        %1096 = vrot.lane.b32.xlu0 %v1071, 112
        %v1097 = vpop.permute.xlu0 %1096
        %1099 = vrot.lane.b32.xlu0 %v1071, 104
        %v1100 = vpop.permute.xlu0 %1099
        %1102 = vxpose.xlu0.b32.start [1/16] %v1071, 128
        %1103 = vxpose.xlu0.b32.cont [2/16] 0.0, 128
        %1104 = vxpose.xlu0.b32.cont [3/16] 0.0, 128
        %1105 = vxpose.xlu0.b32.cont [4/16] 0.0, 128
        %1106 = vxpose.xlu0.b32.cont [5/16] 0.0, 128
        %1107 = vxpose.xlu0.b32.cont [6/16] 0.0, 128
        %1108 = vxpose.xlu0.b32.cont [7/16] 0.0, 128
        %1109 = vxpose.xlu0.b32.cont [8/16] 0.0, 128
        %1110 = vxpose.xlu0.b32.cont [9/16] 0.0, 128
        %1111 = vxpose.xlu0.b32.cont [10/16] 0.0, 128
        %1112 = vxpose.xlu0.b32.cont [11/16] 0.0, 128
        %1113 = vxpose.xlu0.b32.cont [12/16] 0.0, 128
        %1114 = vxpose.xlu0.b32.cont [13/16] 0.0, 128
        %1115 = vxpose.xlu0.b32.cont [14/16] 0.0, 128
        %1116 = vxpose.xlu0.b32.cont [15/16] 0.0, 128
        %1117 = vxpose.xlu0.b32.end [16/16] 0.0, 128
        %v1118 = vpop.trf.xlu0
        %v1119 = vpop.trf.xlu0
        %v1120 = vpop.trf.xlu0
        %v1121 = vpop.trf.xlu0
        %v1122 = vpop.trf.xlu0
        %v1123 = vpop.trf.xlu0
        %v1124 = vpop.trf.xlu0
        %v1125 = vpop.trf.xlu0
        %v1126 = vpop.trf.xlu0
        %v1127 = vpop.trf.xlu0
        %v1128 = vpop.trf.xlu0
        %v1129 = vpop.trf.xlu0
        %v1130 = vpop.trf.xlu0
        %v1131 = vpop.trf.xlu0
        %v1132 = vpop.trf.xlu0
        %v1133 = vpop.trf.xlu0
        %1134 = vxpose.xlu0.b32.start [1/16] %v1094, 128
        %1135 = vxpose.xlu0.b32.cont [2/16] 0.0, 128
        %1136 = vxpose.xlu0.b32.cont [3/16] 0.0, 128
        %1137 = vxpose.xlu0.b32.cont [4/16] 0.0, 128
        %1138 = vxpose.xlu0.b32.cont [5/16] 0.0, 128
        %1139 = vxpose.xlu0.b32.cont [6/16] 0.0, 128
        %1140 = vxpose.xlu0.b32.cont [7/16] 0.0, 128
        %1141 = vxpose.xlu0.b32.cont [8/16] 0.0, 128
        %1142 = vxpose.xlu0.b32.cont [9/16] 0.0, 128
        %1143 = vxpose.xlu0.b32.cont [10/16] 0.0, 128
        %1144 = vxpose.xlu0.b32.cont [11/16] 0.0, 128
        %1145 = vxpose.xlu0.b32.cont [12/16] 0.0, 128
        %1146 = vxpose.xlu0.b32.cont [13/16] 0.0, 128
        %1147 = vxpose.xlu0.b32.cont [14/16] 0.0, 128
        %1148 = vxpose.xlu0.b32.cont [15/16] 0.0, 128
        %1149 = vxpose.xlu0.b32.end [16/16] 0.0, 128
        %v1150 = vpop.trf.xlu0
        %v1151 = vpop.trf.xlu0
        %v1152 = vpop.trf.xlu0
        %v1153 = vpop.trf.xlu0
        %v1154 = vpop.trf.xlu0
        %v1155 = vpop.trf.xlu0
        %v1156 = vpop.trf.xlu0
        %v1157 = vpop.trf.xlu0
        %v1158 = vpop.trf.xlu0
        %v1159 = vpop.trf.xlu0
        %v1160 = vpop.trf.xlu0
        %v1161 = vpop.trf.xlu0
        %v1162 = vpop.trf.xlu0
        %v1163 = vpop.trf.xlu0
        %v1164 = vpop.trf.xlu0
        %v1165 = vpop.trf.xlu0
        %1166 = vxpose.xlu0.b32.start [1/16] %v1097, 128
        %1167 = vxpose.xlu0.b32.cont [2/16] 0.0, 128
        %1168 = vxpose.xlu0.b32.cont [3/16] 0.0, 128
        %1169 = vxpose.xlu0.b32.cont [4/16] 0.0, 128
        %1170 = vxpose.xlu0.b32.cont [5/16] 0.0, 128
        %1171 = vxpose.xlu0.b32.cont [6/16] 0.0, 128
        %1172 = vxpose.xlu0.b32.cont [7/16] 0.0, 128
        %1173 = vxpose.xlu0.b32.cont [8/16] 0.0, 128
        %1174 = vxpose.xlu0.b32.cont [9/16] 0.0, 128
        %1175 = vxpose.xlu0.b32.cont [10/16] 0.0, 128
        %1176 = vxpose.xlu0.b32.cont [11/16] 0.0, 128
        %1177 = vxpose.xlu0.b32.cont [12/16] 0.0, 128
        %1178 = vxpose.xlu0.b32.cont [13/16] 0.0, 128
        %1179 = vxpose.xlu0.b32.cont [14/16] 0.0, 128
        %1180 = vxpose.xlu0.b32.cont [15/16] 0.0, 128
        %1181 = vxpose.xlu0.b32.end [16/16] 0.0, 128
        %v1182 = vpop.trf.xlu0
        %v1183 = vpop.trf.xlu0
        %v1184 = vpop.trf.xlu0
        %v1185 = vpop.trf.xlu0
        %v1186 = vpop.trf.xlu0
        %v1187 = vpop.trf.xlu0
        %v1188 = vpop.trf.xlu0
        %v1189 = vpop.trf.xlu0
        %v1190 = vpop.trf.xlu0
        %v1191 = vpop.trf.xlu0
        %v1192 = vpop.trf.xlu0
        %v1193 = vpop.trf.xlu0
        %v1194 = vpop.trf.xlu0
        %v1195 = vpop.trf.xlu0
        %v1196 = vpop.trf.xlu0
        %v1197 = vpop.trf.xlu0
        %1198 = vxpose.xlu0.b32.start [1/16] %v1100, 128
        %1199 = vxpose.xlu0.b32.cont [2/16] 0.0, 128
        %1200 = vxpose.xlu0.b32.cont [3/16] 0.0, 128
        %1201 = vxpose.xlu0.b32.cont [4/16] 0.0, 128
        %1202 = vxpose.xlu0.b32.cont [5/16] 0.0, 128
        %1203 = vxpose.xlu0.b32.cont [6/16] 0.0, 128
        %1204 = vxpose.xlu0.b32.cont [7/16] 0.0, 128
        %1205 = vxpose.xlu0.b32.cont [8/16] 0.0, 128
        %1206 = vxpose.xlu0.b32.cont [9/16] 0.0, 128
        %1207 = vxpose.xlu0.b32.cont [10/16] 0.0, 128
        %1208 = vxpose.xlu0.b32.cont [11/16] 0.0, 128
        %1209 = vxpose.xlu0.b32.cont [12/16] 0.0, 128
        %1210 = vxpose.xlu0.b32.cont [13/16] 0.0, 128
        %1211 = vxpose.xlu0.b32.cont [14/16] 0.0, 128
        %1212 = vxpose.xlu0.b32.cont [15/16] 0.0, 128
        %1213 = vxpose.xlu0.b32.end [16/16] 0.0, 128
        %v1214 = vpop.trf.xlu0
        %v1215 = vpop.trf.xlu0
        %v1216 = vpop.trf.xlu0
        %v1217 = vpop.trf.xlu0
        %v1218 = vpop.trf.xlu0
        %v1219 = vpop.trf.xlu0
        %v1220 = vpop.trf.xlu0
        %v1221 = vpop.trf.xlu0
        %v1222 = vpop.trf.xlu0
        %v1223 = vpop.trf.xlu0
        %v1224 = vpop.trf.xlu0
        %v1225 = vpop.trf.xlu0
        %v1226 = vpop.trf.xlu0
        %v1227 = vpop.trf.xlu0
        %v1228 = vpop.trf.xlu0
        %v1229 = vpop.trf.xlu0
        %vm1230 = vcmask 64512
        %v1231 = vsel %vm1230, %v1040, 0
        %1233 = vmatpush.msra.mxu0 0.0
        %1234 = vmatpush.msra.mxu0 0.0
        %1235 = vmatpush.msra.mxu0 0.0
        %1236 = vmatpush.msra.mxu0 0.0
        %1237 = vmatpush.msra.mxu0 0.0
        %1238 = vmatpush.msra.mxu0 0.0
        %1239 = vmatpush.msra.mxu0 0.0
        %1240 = vmatpush.msra.mxu0 0.0
        %1241 = vmatpush.msra.mxu0 0.0
        %1242 = vmatpush.msra.mxu0 0.0
        %1243 = vmatpush.msra.mxu0 0.0
        %1244 = vmatpush.msra.mxu0 0.0
        %1245 = vmatpush.msra.mxu0 0.0
        %1246 = vmatpush.msra.mxu0 0.0
        %1247 = vmatpush.msra.mxu0 0.0
        %1248 = vmatpush.msra.mxu0 %v1118
        %1249 = vmatmul.f32.gmra.mxu0 %v1231
        %v1250 = vpop.f32.mrf.mxu0
        %v1251 = vadd.f32 0.0, %v1250
        %1252 = vdwg.mxu0
        %v1253 = vsel %vm1230, %v1087, 0
        %1255 = vmatpush.msra.mxu0 0.0
        %1256 = vmatpush.msra.mxu0 0.0
        %1257 = vmatpush.msra.mxu0 0.0
        %1258 = vmatpush.msra.mxu0 0.0
        %1259 = vmatpush.msra.mxu0 0.0
        %1260 = vmatpush.msra.mxu0 0.0
        %1261 = vmatpush.msra.mxu0 0.0
        %1262 = vmatpush.msra.mxu0 0.0
        %1263 = vmatpush.msra.mxu0 0.0
        %1264 = vmatpush.msra.mxu0 0.0
        %1265 = vmatpush.msra.mxu0 0.0
        %1266 = vmatpush.msra.mxu0 0.0
        %1267 = vmatpush.msra.mxu0 0.0
        %1268 = vmatpush.msra.mxu0 0.0
        %1269 = vmatpush.msra.mxu0 0.0
        %1270 = vmatpush.msra.mxu0 %v1150
        %1271 = vmatmul.f32.gmra.mxu0 %v1253
        %v1272 = vpop.f32.mrf.mxu0
        %v1273 = vadd.f32 0.0, %v1272
        %1274 = vdwg.mxu0
        %v1275 = vsel %vm1230, %v1089, 0
        %1277 = vmatpush.msra.mxu0 0.0
        %1278 = vmatpush.msra.mxu0 0.0
        %1279 = vmatpush.msra.mxu0 0.0
        %1280 = vmatpush.msra.mxu0 0.0
        %1281 = vmatpush.msra.mxu0 0.0
        %1282 = vmatpush.msra.mxu0 0.0
        %1283 = vmatpush.msra.mxu0 0.0
        %1284 = vmatpush.msra.mxu0 0.0
        %1285 = vmatpush.msra.mxu0 0.0
        %1286 = vmatpush.msra.mxu0 0.0
        %1287 = vmatpush.msra.mxu0 0.0
        %1288 = vmatpush.msra.mxu0 0.0
        %1289 = vmatpush.msra.mxu0 0.0
        %1290 = vmatpush.msra.mxu0 0.0
        %1291 = vmatpush.msra.mxu0 0.0
        %1292 = vmatpush.msra.mxu0 %v1182
        %1293 = vmatmul.f32.gmra.mxu0 %v1275
        %v1294 = vpop.f32.mrf.mxu0
        %v1295 = vadd.f32 0.0, %v1294
        %1296 = vdwg.mxu0
        %v1297 = vsel %vm1230, %v1091, 0
        %1299 = vmatpush.msra.mxu0 0.0
        %1300 = vmatpush.msra.mxu0 0.0
        %1301 = vmatpush.msra.mxu0 0.0
        %1302 = vmatpush.msra.mxu0 0.0
        %1303 = vmatpush.msra.mxu0 0.0
        %1304 = vmatpush.msra.mxu0 0.0
        %1305 = vmatpush.msra.mxu0 0.0
        %1306 = vmatpush.msra.mxu0 0.0
        %1307 = vmatpush.msra.mxu0 0.0
        %1308 = vmatpush.msra.mxu0 0.0
        %1309 = vmatpush.msra.mxu0 0.0
        %1310 = vmatpush.msra.mxu0 0.0
        %1311 = vmatpush.msra.mxu0 0.0
        %1312 = vmatpush.msra.mxu0 0.0
        %1313 = vmatpush.msra.mxu0 0.0
        %1314 = vmatpush.msra.mxu0 %v1214
        %1315 = vmatmul.f32.gmra.mxu0 %v1297
        %v1316 = vpop.f32.mrf.mxu0
        %v1317 = vadd.f32 0.0, %v1316
        %1318 = vdwg.mxu0
        %v1319 = vmul.f32 %v1251, 0.35355338
        %v1320 = vmul.f32 %v1273, 0.35355338
        %v1321 = vmul.f32 %v1295, 0.35355338
        %v1322 = vmul.f32 %v1317, 0.35355338
        %v1323 = vsel %vm1079, 1, 0
        %vm1324 = vcmp.eq.s32.totalorder %v1323, 1
        %v1325 = vsel %vm1324, %v1319, -1e+09
        %v1326 = vsel %vm1324, %v1320, -1e+09
        %v1327 = vsel %vm1324, %v1321, -1e+09
        %v1328 = vsel %vm1324, %v1322, -1e+09
        %v1329 = vsel %vm1230, %v1325, -inf
        %1330 = vmax.xlane.f32.xlu0 %v1329
        %v1331 = vpop.xlane.xlu0 %1330
        %v1332 = vsel %vm1230, %v1326, -inf
        %1333 = vmax.xlane.f32.xlu0 %v1332
        %v1334 = vpop.xlane.xlu0 %1333
        %v1335 = vsel %vm1230, %v1327, -inf
        %1336 = vmax.xlane.f32.xlu0 %v1335
        %v1337 = vpop.xlane.xlu0 %1336
        %v1338 = vsel %vm1230, %v1328, -inf
        %1339 = vmax.xlane.f32.xlu0 %v1338
        %v1340 = vpop.xlane.xlu0 %1339
        %v1341 = vsub.f32 %v1325, %v1331
        %v1342 = vsub.f32 %v1326, %v1334
        %v1343 = vsub.f32 %v1327, %v1337
        %v1344 = vsub.f32 %v1328, %v1340
        %v1345 = vmul.f32 %v1341, 1.442695
        %v1346 = vpow.pop %v1345
        %v1347 = vmul.f32 %v1342, 1.442695
        %v1348 = vpow.pop %v1347
        %v1349 = vmul.f32 %v1343, 1.442695
        %v1350 = vpow.pop %v1349
        %v1351 = vmul.f32 %v1344, 1.442695
        %v1352 = vpow.pop %v1351
        %v1353 = vsel %vm1230, %v1346, 0.0
        %1354 = vadd.xlane.f32.xlu0 %v1353
        %v1355 = vpop.xlane.xlu0 %1354
        %v1356 = vsel %vm1230, %v1348, 0.0
        %1357 = vadd.xlane.f32.xlu0 %v1356
        %v1358 = vpop.xlane.xlu0 %1357
        %v1359 = vsel %vm1230, %v1350, 0.0
        %1360 = vadd.xlane.f32.xlu0 %v1359
        %v1361 = vpop.xlane.xlu0 %1360
        %v1362 = vsel %vm1230, %v1352, 0.0
        %1363 = vadd.xlane.f32.xlu0 %v1362
        %v1364 = vpop.xlane.xlu0 %1363
        %v1365 = vrcp.pop %v1355
        %v1366 = vmul.f32 %v1355, %v1365
        %v1367 = vsub.f32 1.0, %v1366
        %v1368 = vmul.f32 %v1365, %v1367
        %v1369 = vadd.f32 %v1365, %v1368
        %vm1370 = vweird.f32 %v1355
        %vm1371 = vweird.f32 %v1365
        %vm1372 = vmor %vm1370, %vm1371
        %v1373 = vsel %vm1372, %v1365, %v1369
        %v1374 = vand.u32 2147483647, %v1355
        %vm1375 = vcmp.eq.f32.partialorder %v1374, 8.507059e+37
        %v1376 = vand.u32 %v1355, 2147483648
        %v1377 = vor.u32 1.1754944e-38, %v1376
        %v1378 = vsel %vm1375, %v1377, %v1373
        %v1379 = vrcp.pop %v1358
        %v1380 = vmul.f32 %v1358, %v1379
        %v1381 = vsub.f32 1.0, %v1380
        %v1382 = vmul.f32 %v1379, %v1381
        %v1383 = vadd.f32 %v1379, %v1382
        %vm1384 = vweird.f32 %v1358
        %vm1385 = vweird.f32 %v1379
        %vm1386 = vmor %vm1384, %vm1385
        %v1387 = vsel %vm1386, %v1379, %v1383
        %v1388 = vand.u32 2147483647, %v1358
        %vm1389 = vcmp.eq.f32.partialorder %v1388, 8.507059e+37
        %v1390 = vand.u32 %v1358, 2147483648
        %v1391 = vor.u32 1.1754944e-38, %v1390
        %v1392 = vsel %vm1389, %v1391, %v1387
        %v1393 = vrcp.pop %v1361
        %v1394 = vmul.f32 %v1361, %v1393
        %v1395 = vsub.f32 1.0, %v1394
        %v1396 = vmul.f32 %v1393, %v1395
        %v1397 = vadd.f32 %v1393, %v1396
        %vm1398 = vweird.f32 %v1361
        %vm1399 = vweird.f32 %v1393
        %vm1400 = vmor %vm1398, %vm1399
        %v1401 = vsel %vm1400, %v1393, %v1397
        %v1402 = vand.u32 2147483647, %v1361
        %vm1403 = vcmp.eq.f32.partialorder %v1402, 8.507059e+37
        %v1404 = vand.u32 %v1361, 2147483648
        %v1405 = vor.u32 1.1754944e-38, %v1404
        %v1406 = vsel %vm1403, %v1405, %v1401
        %v1407 = vrcp.pop %v1364
        %v1408 = vmul.f32 %v1364, %v1407
        %v1409 = vsub.f32 1.0, %v1408
        %v1410 = vmul.f32 %v1407, %v1409
        %v1411 = vadd.f32 %v1407, %v1410
        %vm1412 = vweird.f32 %v1364
        %vm1413 = vweird.f32 %v1407
        %vm1414 = vmor %vm1412, %vm1413
        %v1415 = vsel %vm1414, %v1407, %v1411
        %v1416 = vand.u32 2147483647, %v1364
        %vm1417 = vcmp.eq.f32.partialorder %v1416, 8.507059e+37
        %v1418 = vand.u32 %v1364, 2147483648
        %v1419 = vor.u32 1.1754944e-38, %v1418
        %v1420 = vsel %vm1417, %v1419, %v1415
        %v1421 = vmul.f32 %v1346, %v1378
        %v1422 = vmul.f32 %v1348, %v1392
        %v1423 = vmul.f32 %v1350, %v1406
        %v1424 = vmul.f32 %v1352, %v1420
        %1425 = vrot.lane.b32.xlu0 %v1071, 96
        %v1426 = vpop.permute.xlu0 %1425
        %1427 = vrot.lane.b32.xlu0 %v1094, 96
        %v1428 = vpop.permute.xlu0 %1427
        %1429 = vrot.lane.b32.xlu0 %v1097, 96
        %v1430 = vpop.permute.xlu0 %1429
        %1431 = vrot.lane.b32.xlu0 %v1100, 96
        %v1432 = vpop.permute.xlu0 %1431
        %1437 = vxpose.xlu0.b32.start [1/16] %v1426, 128
        %1438 = vxpose.xlu0.b32.cont [2/16] 0.0, 128
        %1439 = vxpose.xlu0.b32.cont [3/16] 0.0, 128
        %1440 = vxpose.xlu0.b32.cont [4/16] 0.0, 128
        %1441 = vxpose.xlu0.b32.cont [5/16] 0.0, 128
        %1442 = vxpose.xlu0.b32.cont [6/16] 0.0, 128
        %1443 = vxpose.xlu0.b32.cont [7/16] 0.0, 128
        %1444 = vxpose.xlu0.b32.cont [8/16] 0.0, 128
        %1445 = vxpose.xlu0.b32.cont [9/16] 0.0, 128
        %1446 = vxpose.xlu0.b32.cont [10/16] 0.0, 128
        %1447 = vxpose.xlu0.b32.cont [11/16] 0.0, 128
        %1448 = vxpose.xlu0.b32.cont [12/16] 0.0, 128
        %1449 = vxpose.xlu0.b32.cont [13/16] 0.0, 128
        %1450 = vxpose.xlu0.b32.cont [14/16] 0.0, 128
        %1451 = vxpose.xlu0.b32.cont [15/16] 0.0, 128
        %1452 = vxpose.xlu0.b32.end [16/16] 0.0, 128
        %v1453 = vpop.trf.xlu0
        %v1454 = vpop.trf.xlu0
        %v1455 = vpop.trf.xlu0
        %v1456 = vpop.trf.xlu0
        %v1457 = vpop.trf.xlu0
        %v1458 = vpop.trf.xlu0
        %v1459 = vpop.trf.xlu0
        %v1460 = vpop.trf.xlu0
        %v1461 = vpop.trf.xlu0
        %v1462 = vpop.trf.xlu0
        %v1463 = vpop.trf.xlu0
        %v1464 = vpop.trf.xlu0
        %v1465 = vpop.trf.xlu0
        %v1466 = vpop.trf.xlu0
        %v1467 = vpop.trf.xlu0
        %v1468 = vpop.trf.xlu0
        %1469 = vxpose.xlu0.b32.start [1/16] %v1428, 128
        %1470 = vxpose.xlu0.b32.cont [2/16] 0.0, 128
        %1471 = vxpose.xlu0.b32.cont [3/16] 0.0, 128
        %1472 = vxpose.xlu0.b32.cont [4/16] 0.0, 128
        %1473 = vxpose.xlu0.b32.cont [5/16] 0.0, 128
        %1474 = vxpose.xlu0.b32.cont [6/16] 0.0, 128
        %1475 = vxpose.xlu0.b32.cont [7/16] 0.0, 128
        %1476 = vxpose.xlu0.b32.cont [8/16] 0.0, 128
        %1477 = vxpose.xlu0.b32.cont [9/16] 0.0, 128
        %1478 = vxpose.xlu0.b32.cont [10/16] 0.0, 128
        %1479 = vxpose.xlu0.b32.cont [11/16] 0.0, 128
        %1480 = vxpose.xlu0.b32.cont [12/16] 0.0, 128
        %1481 = vxpose.xlu0.b32.cont [13/16] 0.0, 128
        %1482 = vxpose.xlu0.b32.cont [14/16] 0.0, 128
        %1483 = vxpose.xlu0.b32.cont [15/16] 0.0, 128
        %1484 = vxpose.xlu0.b32.end [16/16] 0.0, 128
        %v1485 = vpop.trf.xlu0
        %v1486 = vpop.trf.xlu0
        %v1487 = vpop.trf.xlu0
        %v1488 = vpop.trf.xlu0
        %v1489 = vpop.trf.xlu0
        %v1490 = vpop.trf.xlu0
        %v1491 = vpop.trf.xlu0
        %v1492 = vpop.trf.xlu0
        %v1493 = vpop.trf.xlu0
        %v1494 = vpop.trf.xlu0
        %v1495 = vpop.trf.xlu0
        %v1496 = vpop.trf.xlu0
        %v1497 = vpop.trf.xlu0
        %v1498 = vpop.trf.xlu0
        %v1499 = vpop.trf.xlu0
        %v1500 = vpop.trf.xlu0
        %1501 = vxpose.xlu0.b32.start [1/16] %v1430, 128
        %1502 = vxpose.xlu0.b32.cont [2/16] 0.0, 128
        %1503 = vxpose.xlu0.b32.cont [3/16] 0.0, 128
        %1504 = vxpose.xlu0.b32.cont [4/16] 0.0, 128
        %1505 = vxpose.xlu0.b32.cont [5/16] 0.0, 128
        %1506 = vxpose.xlu0.b32.cont [6/16] 0.0, 128
        %1507 = vxpose.xlu0.b32.cont [7/16] 0.0, 128
        %1508 = vxpose.xlu0.b32.cont [8/16] 0.0, 128
        %1509 = vxpose.xlu0.b32.cont [9/16] 0.0, 128
        %1510 = vxpose.xlu0.b32.cont [10/16] 0.0, 128
        %1511 = vxpose.xlu0.b32.cont [11/16] 0.0, 128
        %1512 = vxpose.xlu0.b32.cont [12/16] 0.0, 128
        %1513 = vxpose.xlu0.b32.cont [13/16] 0.0, 128
        %1514 = vxpose.xlu0.b32.cont [14/16] 0.0, 128
        %1515 = vxpose.xlu0.b32.cont [15/16] 0.0, 128
        %1516 = vxpose.xlu0.b32.end [16/16] 0.0, 128
        %v1517 = vpop.trf.xlu0
        %v1518 = vpop.trf.xlu0
        %v1519 = vpop.trf.xlu0
        %v1520 = vpop.trf.xlu0
        %v1521 = vpop.trf.xlu0
        %v1522 = vpop.trf.xlu0
        %v1523 = vpop.trf.xlu0
        %v1524 = vpop.trf.xlu0
        %v1525 = vpop.trf.xlu0
        %v1526 = vpop.trf.xlu0
        %v1527 = vpop.trf.xlu0
        %v1528 = vpop.trf.xlu0
        %v1529 = vpop.trf.xlu0
        %v1530 = vpop.trf.xlu0
        %v1531 = vpop.trf.xlu0
        %v1532 = vpop.trf.xlu0
        %1533 = vxpose.xlu0.b32.start [1/16] %v1432, 128
        %1534 = vxpose.xlu0.b32.cont [2/16] 0.0, 128
        %1535 = vxpose.xlu0.b32.cont [3/16] 0.0, 128
        %1536 = vxpose.xlu0.b32.cont [4/16] 0.0, 128
        %1537 = vxpose.xlu0.b32.cont [5/16] 0.0, 128
        %1538 = vxpose.xlu0.b32.cont [6/16] 0.0, 128
        %1539 = vxpose.xlu0.b32.cont [7/16] 0.0, 128
        %1540 = vxpose.xlu0.b32.cont [8/16] 0.0, 128
        %1541 = vxpose.xlu0.b32.cont [9/16] 0.0, 128
        %1542 = vxpose.xlu0.b32.cont [10/16] 0.0, 128
        %1543 = vxpose.xlu0.b32.cont [11/16] 0.0, 128
        %1544 = vxpose.xlu0.b32.cont [12/16] 0.0, 128
        %1545 = vxpose.xlu0.b32.cont [13/16] 0.0, 128
        %1546 = vxpose.xlu0.b32.cont [14/16] 0.0, 128
        %1547 = vxpose.xlu0.b32.cont [15/16] 0.0, 128
        %1548 = vxpose.xlu0.b32.end [16/16] 0.0, 128
        %v1549 = vpop.trf.xlu0
        %v1550 = vpop.trf.xlu0
        %v1551 = vpop.trf.xlu0
        %v1552 = vpop.trf.xlu0
        %v1553 = vpop.trf.xlu0
        %v1554 = vpop.trf.xlu0
        %v1555 = vpop.trf.xlu0
        %v1556 = vpop.trf.xlu0
        %v1557 = vpop.trf.xlu0
        %v1558 = vpop.trf.xlu0
        %v1559 = vpop.trf.xlu0
        %v1560 = vpop.trf.xlu0
        %v1561 = vpop.trf.xlu0
        %v1562 = vpop.trf.xlu0
        %v1563 = vpop.trf.xlu0
        %v1564 = vpop.trf.xlu0
        %v1566 = vsel %vm1230, %v1453, 0
        %v1569 = vsel %vm1230, %v1421, 0
        %1571 = vmatpush.xpose.msra.mxu0 0.0
        %1572 = vmatpush.xpose.msra.mxu0 0.0
        %1573 = vmatpush.xpose.msra.mxu0 0.0
        %1574 = vmatpush.xpose.msra.mxu0 0.0
        %1575 = vmatpush.xpose.msra.mxu0 0.0
        %1576 = vmatpush.xpose.msra.mxu0 0.0
        %1577 = vmatpush.xpose.msra.mxu0 0.0
        %1578 = vmatpush.xpose.msra.mxu0 0.0
        %1579 = vmatpush.xpose.msra.mxu0 0.0
        %1580 = vmatpush.xpose.msra.mxu0 0.0
        %1581 = vmatpush.xpose.msra.mxu0 0.0
        %1582 = vmatpush.xpose.msra.mxu0 0.0
        %1583 = vmatpush.xpose.msra.mxu0 0.0
        %1584 = vmatpush.xpose.msra.mxu0 0.0
        %1585 = vmatpush.xpose.msra.mxu0 0.0
        %1586 = vmatpush.xpose.msra.mxu0 %v1569
        %1587 = vmatmul.f32.gmra.mxu0 %v1566
        %v1588 = vpop.f32.mrf.mxu0
        %v1589 = vadd.f32 0.0, %v1588
        %1590 = vdwg.mxu0
        %v1592 = vsel %vm1230, %v1485, 0
        %v1595 = vsel %vm1230, %v1422, 0
        %1597 = vmatpush.xpose.msra.mxu0 0.0
        %1598 = vmatpush.xpose.msra.mxu0 0.0
        %1599 = vmatpush.xpose.msra.mxu0 0.0
        %1600 = vmatpush.xpose.msra.mxu0 0.0
        %1601 = vmatpush.xpose.msra.mxu0 0.0
        %1602 = vmatpush.xpose.msra.mxu0 0.0
        %1603 = vmatpush.xpose.msra.mxu0 0.0
        %1604 = vmatpush.xpose.msra.mxu0 0.0
        %1605 = vmatpush.xpose.msra.mxu0 0.0
        %1606 = vmatpush.xpose.msra.mxu0 0.0
        %1607 = vmatpush.xpose.msra.mxu0 0.0
        %1608 = vmatpush.xpose.msra.mxu0 0.0
        %1609 = vmatpush.xpose.msra.mxu0 0.0
        %1610 = vmatpush.xpose.msra.mxu0 0.0
        %1611 = vmatpush.xpose.msra.mxu0 0.0
        %1612 = vmatpush.xpose.msra.mxu0 %v1595
        %1613 = vmatmul.f32.gmra.mxu0 %v1592
        %v1614 = vpop.f32.mrf.mxu0
        %v1615 = vadd.f32 0.0, %v1614
        %1616 = vdwg.mxu0
        %v1618 = vsel %vm1230, %v1517, 0
        %v1621 = vsel %vm1230, %v1423, 0
        %1623 = vmatpush.xpose.msra.mxu0 0.0
        %1624 = vmatpush.xpose.msra.mxu0 0.0
        %1625 = vmatpush.xpose.msra.mxu0 0.0
        %1626 = vmatpush.xpose.msra.mxu0 0.0
        %1627 = vmatpush.xpose.msra.mxu0 0.0
        %1628 = vmatpush.xpose.msra.mxu0 0.0
        %1629 = vmatpush.xpose.msra.mxu0 0.0
        %1630 = vmatpush.xpose.msra.mxu0 0.0
        %1631 = vmatpush.xpose.msra.mxu0 0.0
        %1632 = vmatpush.xpose.msra.mxu0 0.0
        %1633 = vmatpush.xpose.msra.mxu0 0.0
        %1634 = vmatpush.xpose.msra.mxu0 0.0
        %1635 = vmatpush.xpose.msra.mxu0 0.0
        %1636 = vmatpush.xpose.msra.mxu0 0.0
        %1637 = vmatpush.xpose.msra.mxu0 0.0
        %1638 = vmatpush.xpose.msra.mxu0 %v1621
        %1639 = vmatmul.f32.gmra.mxu0 %v1618
        %v1640 = vpop.f32.mrf.mxu0
        %v1641 = vadd.f32 0.0, %v1640
        %1642 = vdwg.mxu0
        %v1644 = vsel %vm1230, %v1549, 0
        %v1647 = vsel %vm1230, %v1424, 0
        %1649 = vmatpush.xpose.msra.mxu0 0.0
        %1650 = vmatpush.xpose.msra.mxu0 0.0
        %1651 = vmatpush.xpose.msra.mxu0 0.0
        %1652 = vmatpush.xpose.msra.mxu0 0.0
        %1653 = vmatpush.xpose.msra.mxu0 0.0
        %1654 = vmatpush.xpose.msra.mxu0 0.0
        %1655 = vmatpush.xpose.msra.mxu0 0.0
        %1656 = vmatpush.xpose.msra.mxu0 0.0
        %1657 = vmatpush.xpose.msra.mxu0 0.0
        %1658 = vmatpush.xpose.msra.mxu0 0.0
        %1659 = vmatpush.xpose.msra.mxu0 0.0
        %1660 = vmatpush.xpose.msra.mxu0 0.0
        %1661 = vmatpush.xpose.msra.mxu0 0.0
        %1662 = vmatpush.xpose.msra.mxu0 0.0
        %1663 = vmatpush.xpose.msra.mxu0 0.0
        %1664 = vmatpush.xpose.msra.mxu0 %v1647
        %1665 = vmatmul.f32.gmra.mxu0 %v1644
        %v1666 = vpop.f32.mrf.mxu0
        %v1667 = vadd.f32 0.0, %v1666
        %1668 = vdwg.mxu0
        %1669 = vxpose.xlu0.b32.start [1/16] %v1589, 128
        %1670 = vxpose.xlu0.b32.cont [2/16] 0.0, 128
        %1671 = vxpose.xlu0.b32.cont [3/16] 0.0, 128
        %1672 = vxpose.xlu0.b32.cont [4/16] 0.0, 128
        %1673 = vxpose.xlu0.b32.cont [5/16] 0.0, 128
        %1674 = vxpose.xlu0.b32.cont [6/16] 0.0, 128
        %1675 = vxpose.xlu0.b32.cont [7/16] 0.0, 128
        %1676 = vxpose.xlu0.b32.cont [8/16] 0.0, 128
        %1677 = vxpose.xlu0.b32.cont [9/16] 0.0, 128
        %1678 = vxpose.xlu0.b32.cont [10/16] 0.0, 128
        %1679 = vxpose.xlu0.b32.cont [11/16] 0.0, 128
        %1680 = vxpose.xlu0.b32.cont [12/16] 0.0, 128
        %1681 = vxpose.xlu0.b32.cont [13/16] 0.0, 128
        %1682 = vxpose.xlu0.b32.cont [14/16] 0.0, 128
        %1683 = vxpose.xlu0.b32.cont [15/16] 0.0, 128
        %1684 = vxpose.xlu0.b32.end [16/16] 0.0, 128
        %v1685 = vpop.trf.xlu0
        %v1686 = vpop.trf.xlu0
        %v1687 = vpop.trf.xlu0
        %v1688 = vpop.trf.xlu0
        %v1689 = vpop.trf.xlu0
        %v1690 = vpop.trf.xlu0
        %v1691 = vpop.trf.xlu0
        %v1692 = vpop.trf.xlu0
        %v1693 = vpop.trf.xlu0
        %v1694 = vpop.trf.xlu0
        %v1695 = vpop.trf.xlu0
        %v1696 = vpop.trf.xlu0
        %v1697 = vpop.trf.xlu0
        %v1698 = vpop.trf.xlu0
        %v1699 = vpop.trf.xlu0
        %v1700 = vpop.trf.xlu0
        %1701 = vxpose.xlu0.b32.start [1/16] %v1615, 128
        %1702 = vxpose.xlu0.b32.cont [2/16] 0.0, 128
        %1703 = vxpose.xlu0.b32.cont [3/16] 0.0, 128
        %1704 = vxpose.xlu0.b32.cont [4/16] 0.0, 128
        %1705 = vxpose.xlu0.b32.cont [5/16] 0.0, 128
        %1706 = vxpose.xlu0.b32.cont [6/16] 0.0, 128
        %1707 = vxpose.xlu0.b32.cont [7/16] 0.0, 128
        %1708 = vxpose.xlu0.b32.cont [8/16] 0.0, 128
        %1709 = vxpose.xlu0.b32.cont [9/16] 0.0, 128
        %1710 = vxpose.xlu0.b32.cont [10/16] 0.0, 128
        %1711 = vxpose.xlu0.b32.cont [11/16] 0.0, 128
        %1712 = vxpose.xlu0.b32.cont [12/16] 0.0, 128
        %1713 = vxpose.xlu0.b32.cont [13/16] 0.0, 128
        %1714 = vxpose.xlu0.b32.cont [14/16] 0.0, 128
        %1715 = vxpose.xlu0.b32.cont [15/16] 0.0, 128
        %1716 = vxpose.xlu0.b32.end [16/16] 0.0, 128
        %v1717 = vpop.trf.xlu0
        %v1718 = vpop.trf.xlu0
        %v1719 = vpop.trf.xlu0
        %v1720 = vpop.trf.xlu0
        %v1721 = vpop.trf.xlu0
        %v1722 = vpop.trf.xlu0
        %v1723 = vpop.trf.xlu0
        %v1724 = vpop.trf.xlu0
        %v1725 = vpop.trf.xlu0
        %v1726 = vpop.trf.xlu0
        %v1727 = vpop.trf.xlu0
        %v1728 = vpop.trf.xlu0
        %v1729 = vpop.trf.xlu0
        %v1730 = vpop.trf.xlu0
        %v1731 = vpop.trf.xlu0
        %v1732 = vpop.trf.xlu0
        %1733 = vxpose.xlu0.b32.start [1/16] %v1641, 128
        %1734 = vxpose.xlu0.b32.cont [2/16] 0.0, 128
        %1735 = vxpose.xlu0.b32.cont [3/16] 0.0, 128
        %1736 = vxpose.xlu0.b32.cont [4/16] 0.0, 128
        %1737 = vxpose.xlu0.b32.cont [5/16] 0.0, 128
        %1738 = vxpose.xlu0.b32.cont [6/16] 0.0, 128
        %1739 = vxpose.xlu0.b32.cont [7/16] 0.0, 128
        %1740 = vxpose.xlu0.b32.cont [8/16] 0.0, 128
        %1741 = vxpose.xlu0.b32.cont [9/16] 0.0, 128
        %1742 = vxpose.xlu0.b32.cont [10/16] 0.0, 128
        %1743 = vxpose.xlu0.b32.cont [11/16] 0.0, 128
        %1744 = vxpose.xlu0.b32.cont [12/16] 0.0, 128
        %1745 = vxpose.xlu0.b32.cont [13/16] 0.0, 128
        %1746 = vxpose.xlu0.b32.cont [14/16] 0.0, 128
        %1747 = vxpose.xlu0.b32.cont [15/16] 0.0, 128
        %1748 = vxpose.xlu0.b32.end [16/16] 0.0, 128
        %v1749 = vpop.trf.xlu0
        %v1750 = vpop.trf.xlu0
        %v1751 = vpop.trf.xlu0
        %v1752 = vpop.trf.xlu0
        %v1753 = vpop.trf.xlu0
        %v1754 = vpop.trf.xlu0
        %v1755 = vpop.trf.xlu0
        %v1756 = vpop.trf.xlu0
        %v1757 = vpop.trf.xlu0
        %v1758 = vpop.trf.xlu0
        %v1759 = vpop.trf.xlu0
        %v1760 = vpop.trf.xlu0
        %v1761 = vpop.trf.xlu0
        %v1762 = vpop.trf.xlu0
        %v1763 = vpop.trf.xlu0
        %v1764 = vpop.trf.xlu0
        %1765 = vxpose.xlu0.b32.start [1/16] %v1667, 128
        %1766 = vxpose.xlu0.b32.cont [2/16] 0.0, 128
        %1767 = vxpose.xlu0.b32.cont [3/16] 0.0, 128
        %1768 = vxpose.xlu0.b32.cont [4/16] 0.0, 128
        %1769 = vxpose.xlu0.b32.cont [5/16] 0.0, 128
        %1770 = vxpose.xlu0.b32.cont [6/16] 0.0, 128
        %1771 = vxpose.xlu0.b32.cont [7/16] 0.0, 128
        %1772 = vxpose.xlu0.b32.cont [8/16] 0.0, 128
        %1773 = vxpose.xlu0.b32.cont [9/16] 0.0, 128
        %1774 = vxpose.xlu0.b32.cont [10/16] 0.0, 128
        %1775 = vxpose.xlu0.b32.cont [11/16] 0.0, 128
        %1776 = vxpose.xlu0.b32.cont [12/16] 0.0, 128
        %1777 = vxpose.xlu0.b32.cont [13/16] 0.0, 128
        %1778 = vxpose.xlu0.b32.cont [14/16] 0.0, 128
        %1779 = vxpose.xlu0.b32.cont [15/16] 0.0, 128
        %1780 = vxpose.xlu0.b32.end [16/16] 0.0, 128
        %v1781 = vpop.trf.xlu0
        %v1782 = vpop.trf.xlu0
        %v1783 = vpop.trf.xlu0
        %v1784 = vpop.trf.xlu0
        %v1785 = vpop.trf.xlu0
        %v1786 = vpop.trf.xlu0
        %v1787 = vpop.trf.xlu0
        %v1788 = vpop.trf.xlu0
        %v1789 = vpop.trf.xlu0
        %v1790 = vpop.trf.xlu0
        %v1791 = vpop.trf.xlu0
        %v1792 = vpop.trf.xlu0
        %v1793 = vpop.trf.xlu0
        %v1794 = vpop.trf.xlu0
        %v1795 = vpop.trf.xlu0
        %v1796 = vpop.trf.xlu0
        %v1797 = vrot.slane %v1749, 4
        %vm1798 = vcmask 1047556
        %v1799 = vsel %vm1798, %v1797, %v1685
        %v1800 = vrot.slane %v1685, 4
        %v1801 = vsel %vm1798, %v1749, %v1800
        %v1803 = vunpack.c.l.s4 1983009808
        %v1804 = vunpack.c.0.s8 %v1803
        %v1805 = vperm.slane %v1799, %v1804
        %v1807 = vunpack.c.l.s4 1983009808
        %v1808 = vunpack.c.0.s8 %v1807
        %v1809 = vperm.slane %v1801, %v1808
        %v1810 = vrot.slane %v1781, 4
        %v1811 = vsel %vm1798, %v1810, %v1717
        %v1812 = vrot.slane %v1717, 4
        %v1813 = vsel %vm1798, %v1781, %v1812
        %v1815 = vunpack.c.l.s4 1983009808
        %v1816 = vunpack.c.0.s8 %v1815
        %v1817 = vperm.slane %v1811, %v1816
        %v1819 = vunpack.c.l.s4 1983009808
        %v1820 = vunpack.c.0.s8 %v1819
        %v1821 = vperm.slane %v1813, %v1820
        %v1822 = vrot.slane %v1817, 4
        %v1823 = vsel %vm1798, %v1822, %v1805
        %v1824 = vrot.slane %v1805, 4
        %v1825 = vsel %vm1798, %v1817, %v1824
        %v1827 = vunpack.c.l.s4 1934713408
        %v1828 = vunpack.c.0.s8 %v1827
        %v1829 = vperm.slane %v1823, %v1828
        %v1831 = vunpack.c.l.s4 1934713408
        %v1832 = vunpack.c.0.s8 %v1831
        %v1833 = vperm.slane %v1825, %v1832
        %v1834 = vrot.slane %v1821, 4
        %v1835 = vsel %vm1798, %v1834, %v1809
        %v1836 = vrot.slane %v1809, 4
        %v1837 = vsel %vm1798, %v1821, %v1836
        %v1839 = vunpack.c.l.s4 1934713408
        %v1840 = vunpack.c.0.s8 %v1839
        %v1841 = vperm.slane %v1835, %v1840
        %v1843 = vunpack.c.l.s4 1934713408
        %v1844 = vunpack.c.0.s8 %v1843
        %v1845 = vperm.slane %v1837, %v1844
        %v1846 = vrot.slane %v1829, 4
        %v1847 = vsel %vm1798, 0.0, %v1846
        %v1848 = vrot.slane %v1833, 4
        %v1849 = vsel %vm1798, 0.0, %v1848
        %v1850 = vrot.slane %v1841, 4
        %v1851 = vsel %vm1798, 0.0, %v1850
        %v1852 = vrot.slane %v1845, 4
        %v1853 = vsel %vm1798, 0.0, %v1852
        %v1854 = vsel %vm1798, %v1848, %v1829
        %v1856 = vunpack.c.l.s4 1983009808
        %v1857 = vunpack.c.0.s8 %v1856
        %v1858 = vperm.slane %v1854, %v1857
        %v1859 = vrot.slane %v1849, 4
        %v1860 = vsel %vm1798, %v1859, %v1847
        %v1862 = vunpack.c.l.s4 1983009808
        %v1863 = vunpack.c.0.s8 %v1862
        %v1864 = vperm.slane %v1860, %v1863
        %v1865 = vsel %vm1798, %v1852, %v1841
        %v1867 = vunpack.c.l.s4 1983009808
        %v1868 = vunpack.c.0.s8 %v1867
        %v1869 = vperm.slane %v1865, %v1868
        %v1870 = vrot.slane %v1853, 4
        %v1871 = vsel %vm1798, %v1870, %v1851
        %v1873 = vunpack.c.l.s4 1983009808
        %v1874 = vunpack.c.0.s8 %v1873
        %v1875 = vperm.slane %v1871, %v1874
        %v1876 = vrot.slane %v1864, 4
        %v1877 = vsel %vm1798, %v1876, %v1858
        %v1878 = vrot.slane %v1858, 4
        %v1879 = vsel %vm1798, %v1864, %v1878
        %v1881 = vunpack.c.l.s4 1934713408
        %v1882 = vunpack.c.0.s8 %v1881
        %v1883 = vperm.slane %v1877, %v1882
        %v1885 = vunpack.c.l.s4 1934713408
        %v1886 = vunpack.c.0.s8 %v1885
        %v1887 = vperm.slane %v1879, %v1886
        %v1888 = vrot.slane %v1875, 4
        %v1889 = vsel %vm1798, %v1888, %v1869
        %v1890 = vrot.slane %v1869, 4
        %v1891 = vsel %vm1798, %v1875, %v1890
        %v1893 = vunpack.c.l.s4 1934713408
        %v1894 = vunpack.c.0.s8 %v1893
        %v1895 = vperm.slane %v1889, %v1894
        %v1897 = vunpack.c.l.s4 1934713408
        %v1898 = vunpack.c.0.s8 %v1897
        %v1899 = vperm.slane %v1891, %v1898
        %v1900 = vrot.slane %v1895, 4
        %v1901 = vsel %vm1798, %v1900, %v1883
        %v1902 = vrot.slane %v1883, 4
        %v1903 = vsel %vm1798, %v1895, %v1902
        %v1904 = vrot.slane %v1899, 4
        %v1905 = vsel %vm1798, %v1904, %v1887
        %v1906 = vrot.slane %v1887, 4
        %v1907 = vsel %vm1798, %v1899, %v1906
        %1909 = vrot.lane.b32.xlu0 %v1903, 8
        %v1910 = vpop.permute.xlu0 %1909
        %1913 = vrot.lane.b32.xlu0 %v1905, 16
        %v1914 = vpop.permute.xlu0 %1913
        %1917 = vrot.lane.b32.xlu0 %v1907, 24
        %v1918 = vpop.permute.xlu0 %1917
        %v1920 = vsel %vm1230, %v1901, %v1910
        %vm1921 = vcmask 130048
        %v1922 = vsel %vm1921, %v1920, %v1914
        %vm1923 = vcmask 195584
        %v1924 = vsel %vm1923, %v1922, %v1918
        %v1926 = vperm.slane %v1084, 0
        %v1929 = vsel %vm913, %v1924, 0
        %1931 = vmatpush.msra.mxu0 0.0
        %1932 = vmatpush.msra.mxu0 0.0
        %1933 = vmatpush.msra.mxu0 0.0
        %1934 = vmatpush.msra.mxu0 0.0
        %1935 = vmatpush.msra.mxu0 0.0
        %1936 = vmatpush.msra.mxu0 0.0
        %1937 = vmatpush.msra.mxu0 0.0
        %1938 = vmatpush.msra.mxu0 0.0
        %1939 = vmatpush.msra.mxu0 0.0
        %1940 = vmatpush.msra.mxu0 0.0
        %1941 = vmatpush.msra.mxu0 0.0
        %1942 = vmatpush.msra.mxu0 0.0
        %1943 = vmatpush.msra.mxu0 %v1083
        %1944 = vmatpush.msra.mxu0 %v1082
        %1945 = vmatpush.msra.mxu0 %v1081
        %1946 = vmatpush.msra.mxu0 %v1080
        %1947 = vmatmul.f32.gmra.mxu0 %v1929
        %v1948 = vpop.f32.mrf.mxu0
        %v1949 = vadd.f32 %v1926, %v1948
        %1950 = vdwg.mxu0
        %v1951 = vadd.f32 %v912, %v1949
        %v1952 = vsel %vm913, %v1951, 0.0
        %1953 = vadd.xlane.f32.xlu0 %v1952
        %v1954 = vpop.xlane.xlu0 %1953
        %v1955 = vmul.f32 %v1954, %v923
        %v1956 = vsub.f32 %v1951, %v1955
        %v1957 = vmul.f32 %v1956, %v1956
        %v1958 = vsel %vm913, %v1957, 0.0
        %1959 = vadd.xlane.f32.xlu0 %v1958
        %v1960 = vpop.xlane.xlu0 %1959
        %v1961 = vmul.f32 %v1960, %v936
        %v1962 = vperm.slane %v909, 1
        %v1963 = vmul.f32 %v1962, %v1956
        %v1964 = vrsqrt.pop %v1961
        %v1965 = vmul.f32 %v1964, %v1961
        %v1966 = vmul.f32 %v1965, %v1964
        %v1967 = vmul.f32 0.5, %v1966
        %v1968 = vsub.f32 1.5, %v1967
        %v1969 = vmul.f32 %v1964, %v1968
        %v1970 = vmul.f32 %v1961, %v1969
        %vm1971 = vcmp.eq.f32.partialorder %v1961, inf
        %v1972 = vsel %vm1971, %v1961, %v1970
        %vm1973 = vcmp.eq.f32.partialorder %v1961, 0.0
        %v1974 = vand.u32 %v1961, 2147483648
        %v1975 = vsel %vm1973, %v1974, %v1972
        %v1976 = vadd.f32 %v1975, 1e-06
        %v1977 = vrcp.pop %v1976
        %v1978 = vmul.f32 %v1976, %v1977
        %v1979 = vsub.f32 1.0, %v1978
        %v1980 = vmul.f32 %v1977, %v1979
        %v1981 = vadd.f32 %v1977, %v1980
        %vm1982 = vweird.f32 %v1976
        %vm1983 = vweird.f32 %v1977
        %vm1984 = vmor %vm1982, %vm1983
        %v1985 = vsel %vm1984, %v1977, %v1981
        %v1986 = vand.u32 2147483647, %v1976
        %vm1987 = vcmp.eq.f32.partialorder %v1986, 8.507059e+37
        %v1988 = vand.u32 %v1976, 2147483648
        %v1989 = vor.u32 1.1754944e-38, %v1988
        %v1990 = vsel %vm1987, %v1989, %v1985
        %v1991 = vmul.f32 %v1963, %v1990
        %v1992 = vperm.slane %v910, 1
        %v1993 = vadd.f32 %v1991, %v1992
        %v1994 = vld [vmem:[#allocation10] sm:$0xff]
        %v1995 = vld [vmem:[#allocation10 + $0x8] sm:$0xff]
        %v1996 = vld [vmem:[#allocation10 + $0x10] sm:$0xff]
        %v1997 = vld [vmem:[#allocation10 + $0x18] sm:$0xff]
        %v1998 = vld [vmem:[#allocation11] sm:$0x1]
        %v2000 = vperm.slane %v1998, 0
        %v2003 = vsel %vm913, %v1993, 0
        %2005 = vmatpush.msra.mxu0 0.0
        %2006 = vmatpush.msra.mxu0 0.0
        %2007 = vmatpush.msra.mxu0 0.0
        %2008 = vmatpush.msra.mxu0 0.0
        %2009 = vmatpush.msra.mxu0 0.0
        %2010 = vmatpush.msra.mxu0 0.0
        %2011 = vmatpush.msra.mxu0 0.0
        %2012 = vmatpush.msra.mxu0 0.0
        %2013 = vmatpush.msra.mxu0 0.0
        %2014 = vmatpush.msra.mxu0 0.0
        %2015 = vmatpush.msra.mxu0 0.0
        %2016 = vmatpush.msra.mxu0 0.0
        %2017 = vmatpush.msra.mxu0 %v1997
        %2018 = vmatpush.msra.mxu0 %v1996
        %2019 = vmatpush.msra.mxu0 %v1995
        %2020 = vmatpush.msra.mxu0 %v1994
        %2021 = vmatmul.f32.gmra.mxu0 %v2003
        %v2022 = vpop.f32.mrf.mxu0
        %v2023 = vadd.f32 %v2000, %v2022
        %2024 = vdwg.mxu0
        %v2025 = vld [vmem:[%s907] sm:$0xff]
        %v2026 = vld [vmem:[%s907 + $0x8] sm:$0x3]
        %v2027 = vld [vmem:[#allocation13] sm:$0xff]
        %v2028 = vld [vmem:[#allocation13 + $0x8] sm:$0xff]
        %v2029 = vld [vmem:[#allocation13 + $0x10] sm:$0xff]
        %v2030 = vld [vmem:[#allocation13 + $0x18] sm:$0xff]
        %v2031 = vld [vmem:[#allocation14] sm:$0x1]
        %v2033 = vperm.slane %v2031, 0
        %v2036 = vsel %vm913, %v2025, 0
        %v2039 = vsel %vm913, %v2026, 0
        %2041 = vmatpush.msra.mxu0 0.0
        %2042 = vmatpush.msra.mxu0 0.0
        %2043 = vmatpush.msra.mxu0 0.0
        %2044 = vmatpush.msra.mxu0 0.0
        %2045 = vmatpush.msra.mxu0 0.0
        %2046 = vmatpush.msra.mxu0 0.0
        %2047 = vmatpush.msra.mxu0 0.0
        %2048 = vmatpush.msra.mxu0 0.0
        %2049 = vmatpush.msra.mxu0 0.0
        %2050 = vmatpush.msra.mxu0 0.0
        %2051 = vmatpush.msra.mxu0 0.0
        %2052 = vmatpush.msra.mxu0 0.0
        %2053 = vmatpush.msra.mxu0 %v2030
        %2054 = vmatpush.msra.mxu0 %v2029
        %2055 = vmatpush.msra.mxu0 %v2028
        %2056 = vmatpush.msra.mxu0 %v2027
        %2057 = vmatmul.f32.gmra.mxu0 %v2036
        %v2058 = vpop.f32.mrf.mxu0
        %v2059 = vadd.f32 %v2033, %v2058
        %2060 = vmatmul.f32.gmra.mxu0 %v2039
        %v2061 = vpop.f32.mrf.mxu0
        %v2062 = vadd.f32 %v2033, %v2061
        %2063 = vdwg.mxu0
        %v2064 = vld [vmem:[%s779] sm:$0x1]
        %vm2065 = vcmp.gt.f32.partialorder %v2064, 0.0
        %v2066 = vld [vmem:[#allocation16] sm:$0xff]
        %v2067 = vld [vmem:[#allocation16 + $0x8] sm:$0xff]
        %v2068 = vld [vmem:[#allocation16 + $0x10] sm:$0xff]
        %v2069 = vld [vmem:[#allocation16 + $0x18] sm:$0xff]
        %v2070 = vld [vmem:[#allocation17] sm:$0x1]
        %2072 = vrot.lane.b32.xlu0 %v2023, 120
        %v2073 = vpop.permute.xlu0 %2072
        %2074 = vrot.lane.b32.xlu0 %v2023, 112
        %v2075 = vpop.permute.xlu0 %2074
        %2076 = vrot.lane.b32.xlu0 %v2023, 104
        %v2077 = vpop.permute.xlu0 %2076
        %2080 = vrot.lane.b32.xlu0 %v2059, 120
        %v2081 = vpop.permute.xlu0 %2080
        %2082 = vrot.lane.b32.xlu0 %v2062, 120
        %v2083 = vpop.permute.xlu0 %2082
        %2086 = vrot.lane.b32.xlu0 %v2059, 112
        %v2087 = vpop.permute.xlu0 %2086
        %2088 = vrot.lane.b32.xlu0 %v2062, 112
        %v2089 = vpop.permute.xlu0 %2088
        %2092 = vrot.lane.b32.xlu0 %v2059, 104
        %v2093 = vpop.permute.xlu0 %2092
        %2094 = vrot.lane.b32.xlu0 %v2062, 104
        %v2095 = vpop.permute.xlu0 %2094
        %2098 = vxpose.xlu0.b32.start [1/16] %v2059, 128
        %2099 = vxpose.xlu0.b32.cont [2/16] %v2062, 128
        %2100 = vxpose.xlu0.b32.cont [3/16] 0.0, 128
        %2101 = vxpose.xlu0.b32.cont [4/16] 0.0, 128
        %2102 = vxpose.xlu0.b32.cont [5/16] 0.0, 128
        %2103 = vxpose.xlu0.b32.cont [6/16] 0.0, 128
        %2104 = vxpose.xlu0.b32.cont [7/16] 0.0, 128
        %2105 = vxpose.xlu0.b32.cont [8/16] 0.0, 128
        %2106 = vxpose.xlu0.b32.cont [9/16] 0.0, 128
        %2107 = vxpose.xlu0.b32.cont [10/16] 0.0, 128
        %2108 = vxpose.xlu0.b32.cont [11/16] 0.0, 128
        %2109 = vxpose.xlu0.b32.cont [12/16] 0.0, 128
        %2110 = vxpose.xlu0.b32.cont [13/16] 0.0, 128
        %2111 = vxpose.xlu0.b32.cont [14/16] 0.0, 128
        %2112 = vxpose.xlu0.b32.cont [15/16] 0.0, 128
        %2113 = vxpose.xlu0.b32.end [16/16] 0.0, 128
        %v2114 = vpop.trf.xlu0
        %v2115 = vpop.trf.xlu0
        %v2116 = vpop.trf.xlu0
        %v2117 = vpop.trf.xlu0
        %v2118 = vpop.trf.xlu0
        %v2119 = vpop.trf.xlu0
        %v2120 = vpop.trf.xlu0
        %v2121 = vpop.trf.xlu0
        %v2122 = vpop.trf.xlu0
        %v2123 = vpop.trf.xlu0
        %v2124 = vpop.trf.xlu0
        %v2125 = vpop.trf.xlu0
        %v2126 = vpop.trf.xlu0
        %v2127 = vpop.trf.xlu0
        %v2128 = vpop.trf.xlu0
        %v2129 = vpop.trf.xlu0
        %2130 = vxpose.xlu0.b32.start [1/16] %v2081, 128
        %2131 = vxpose.xlu0.b32.cont [2/16] %v2083, 128
        %2132 = vxpose.xlu0.b32.cont [3/16] 0.0, 128
        %2133 = vxpose.xlu0.b32.cont [4/16] 0.0, 128
        %2134 = vxpose.xlu0.b32.cont [5/16] 0.0, 128
        %2135 = vxpose.xlu0.b32.cont [6/16] 0.0, 128
        %2136 = vxpose.xlu0.b32.cont [7/16] 0.0, 128
        %2137 = vxpose.xlu0.b32.cont [8/16] 0.0, 128
        %2138 = vxpose.xlu0.b32.cont [9/16] 0.0, 128
        %2139 = vxpose.xlu0.b32.cont [10/16] 0.0, 128
        %2140 = vxpose.xlu0.b32.cont [11/16] 0.0, 128
        %2141 = vxpose.xlu0.b32.cont [12/16] 0.0, 128
        %2142 = vxpose.xlu0.b32.cont [13/16] 0.0, 128
        %2143 = vxpose.xlu0.b32.cont [14/16] 0.0, 128
        %2144 = vxpose.xlu0.b32.cont [15/16] 0.0, 128
        %2145 = vxpose.xlu0.b32.end [16/16] 0.0, 128
        %v2146 = vpop.trf.xlu0
        %v2147 = vpop.trf.xlu0
        %v2148 = vpop.trf.xlu0
        %v2149 = vpop.trf.xlu0
        %v2150 = vpop.trf.xlu0
        %v2151 = vpop.trf.xlu0
        %v2152 = vpop.trf.xlu0
        %v2153 = vpop.trf.xlu0
        %v2154 = vpop.trf.xlu0
        %v2155 = vpop.trf.xlu0
        %v2156 = vpop.trf.xlu0
        %v2157 = vpop.trf.xlu0
        %v2158 = vpop.trf.xlu0
        %v2159 = vpop.trf.xlu0
        %v2160 = vpop.trf.xlu0
        %v2161 = vpop.trf.xlu0
        %2162 = vxpose.xlu0.b32.start [1/16] %v2087, 128
        %2163 = vxpose.xlu0.b32.cont [2/16] %v2089, 128
        %2164 = vxpose.xlu0.b32.cont [3/16] 0.0, 128
        %2165 = vxpose.xlu0.b32.cont [4/16] 0.0, 128
        %2166 = vxpose.xlu0.b32.cont [5/16] 0.0, 128
        %2167 = vxpose.xlu0.b32.cont [6/16] 0.0, 128
        %2168 = vxpose.xlu0.b32.cont [7/16] 0.0, 128
        %2169 = vxpose.xlu0.b32.cont [8/16] 0.0, 128
        %2170 = vxpose.xlu0.b32.cont [9/16] 0.0, 128
        %2171 = vxpose.xlu0.b32.cont [10/16] 0.0, 128
        %2172 = vxpose.xlu0.b32.cont [11/16] 0.0, 128
        %2173 = vxpose.xlu0.b32.cont [12/16] 0.0, 128
        %2174 = vxpose.xlu0.b32.cont [13/16] 0.0, 128
        %2175 = vxpose.xlu0.b32.cont [14/16] 0.0, 128
        %2176 = vxpose.xlu0.b32.cont [15/16] 0.0, 128
        %2177 = vxpose.xlu0.b32.end [16/16] 0.0, 128
        %v2178 = vpop.trf.xlu0
        %v2179 = vpop.trf.xlu0
        %v2180 = vpop.trf.xlu0
        %v2181 = vpop.trf.xlu0
        %v2182 = vpop.trf.xlu0
        %v2183 = vpop.trf.xlu0
        %v2184 = vpop.trf.xlu0
        %v2185 = vpop.trf.xlu0
        %v2186 = vpop.trf.xlu0
        %v2187 = vpop.trf.xlu0
        %v2188 = vpop.trf.xlu0
        %v2189 = vpop.trf.xlu0
        %v2190 = vpop.trf.xlu0
        %v2191 = vpop.trf.xlu0
        %v2192 = vpop.trf.xlu0
        %v2193 = vpop.trf.xlu0
        %2194 = vxpose.xlu0.b32.start [1/16] %v2093, 128
        %2195 = vxpose.xlu0.b32.cont [2/16] %v2095, 128
        %2196 = vxpose.xlu0.b32.cont [3/16] 0.0, 128
        %2197 = vxpose.xlu0.b32.cont [4/16] 0.0, 128
        %2198 = vxpose.xlu0.b32.cont [5/16] 0.0, 128
        %2199 = vxpose.xlu0.b32.cont [6/16] 0.0, 128
        %2200 = vxpose.xlu0.b32.cont [7/16] 0.0, 128
        %2201 = vxpose.xlu0.b32.cont [8/16] 0.0, 128
        %2202 = vxpose.xlu0.b32.cont [9/16] 0.0, 128
        %2203 = vxpose.xlu0.b32.cont [10/16] 0.0, 128
        %2204 = vxpose.xlu0.b32.cont [11/16] 0.0, 128
        %2205 = vxpose.xlu0.b32.cont [12/16] 0.0, 128
        %2206 = vxpose.xlu0.b32.cont [13/16] 0.0, 128
        %2207 = vxpose.xlu0.b32.cont [14/16] 0.0, 128
        %2208 = vxpose.xlu0.b32.cont [15/16] 0.0, 128
        %2209 = vxpose.xlu0.b32.end [16/16] 0.0, 128
        %v2210 = vpop.trf.xlu0
        %v2211 = vpop.trf.xlu0
        %v2212 = vpop.trf.xlu0
        %v2213 = vpop.trf.xlu0
        %v2214 = vpop.trf.xlu0
        %v2215 = vpop.trf.xlu0
        %v2216 = vpop.trf.xlu0
        %v2217 = vpop.trf.xlu0
        %v2218 = vpop.trf.xlu0
        %v2219 = vpop.trf.xlu0
        %v2220 = vpop.trf.xlu0
        %v2221 = vpop.trf.xlu0
        %v2222 = vpop.trf.xlu0
        %v2223 = vpop.trf.xlu0
        %v2224 = vpop.trf.xlu0
        %v2225 = vpop.trf.xlu0
        %v2226 = vsel %vm1230, %v2023, 0
        %2228 = vmatpush.msra.mxu0 0.0
        %2229 = vmatpush.msra.mxu0 0.0
        %2230 = vmatpush.msra.mxu0 0.0
        %2231 = vmatpush.msra.mxu0 0.0
        %2232 = vmatpush.msra.mxu0 0.0
        %2233 = vmatpush.msra.mxu0 0.0
        %2234 = vmatpush.msra.mxu0 0.0
        %2235 = vmatpush.msra.mxu0 0.0
        %2236 = vmatpush.msra.mxu0 0.0
        %2237 = vmatpush.msra.mxu0 0.0
        %2238 = vmatpush.msra.mxu0 0.0
        %2239 = vmatpush.msra.mxu0 0.0
        %2240 = vmatpush.msra.mxu0 0.0
        %2241 = vmatpush.msra.mxu0 0.0
        %2242 = vmatpush.msra.mxu0 0.0
        %2243 = vmatpush.msra.mxu0 %v2114
        %2244 = vmatmul.f32.gmra.mxu0 %v2226
        %v2245 = vpop.f32.mrf.mxu0
        %v2246 = vadd.f32 0.0, %v2245
        %2247 = vdwg.mxu0
        %v2248 = vsel %vm1230, %v2073, 0
        %2250 = vmatpush.msra.mxu0 0.0
        %2251 = vmatpush.msra.mxu0 0.0
        %2252 = vmatpush.msra.mxu0 0.0
        %2253 = vmatpush.msra.mxu0 0.0
        %2254 = vmatpush.msra.mxu0 0.0
        %2255 = vmatpush.msra.mxu0 0.0
        %2256 = vmatpush.msra.mxu0 0.0
        %2257 = vmatpush.msra.mxu0 0.0
        %2258 = vmatpush.msra.mxu0 0.0
        %2259 = vmatpush.msra.mxu0 0.0
        %2260 = vmatpush.msra.mxu0 0.0
        %2261 = vmatpush.msra.mxu0 0.0
        %2262 = vmatpush.msra.mxu0 0.0
        %2263 = vmatpush.msra.mxu0 0.0
        %2264 = vmatpush.msra.mxu0 0.0
        %2265 = vmatpush.msra.mxu0 %v2146
        %2266 = vmatmul.f32.gmra.mxu0 %v2248
        %v2267 = vpop.f32.mrf.mxu0
        %v2268 = vadd.f32 0.0, %v2267
        %2269 = vdwg.mxu0
        %v2270 = vsel %vm1230, %v2075, 0
        %2272 = vmatpush.msra.mxu0 0.0
        %2273 = vmatpush.msra.mxu0 0.0
        %2274 = vmatpush.msra.mxu0 0.0
        %2275 = vmatpush.msra.mxu0 0.0
        %2276 = vmatpush.msra.mxu0 0.0
        %2277 = vmatpush.msra.mxu0 0.0
        %2278 = vmatpush.msra.mxu0 0.0
        %2279 = vmatpush.msra.mxu0 0.0
        %2280 = vmatpush.msra.mxu0 0.0
        %2281 = vmatpush.msra.mxu0 0.0
        %2282 = vmatpush.msra.mxu0 0.0
        %2283 = vmatpush.msra.mxu0 0.0
        %2284 = vmatpush.msra.mxu0 0.0
        %2285 = vmatpush.msra.mxu0 0.0
        %2286 = vmatpush.msra.mxu0 0.0
        %2287 = vmatpush.msra.mxu0 %v2178
        %2288 = vmatmul.f32.gmra.mxu0 %v2270
        %v2289 = vpop.f32.mrf.mxu0
        %v2290 = vadd.f32 0.0, %v2289
        %2291 = vdwg.mxu0
        %v2292 = vsel %vm1230, %v2077, 0
        %2294 = vmatpush.msra.mxu0 0.0
        %2295 = vmatpush.msra.mxu0 0.0
        %2296 = vmatpush.msra.mxu0 0.0
        %2297 = vmatpush.msra.mxu0 0.0
        %2298 = vmatpush.msra.mxu0 0.0
        %2299 = vmatpush.msra.mxu0 0.0
        %2300 = vmatpush.msra.mxu0 0.0
        %2301 = vmatpush.msra.mxu0 0.0
        %2302 = vmatpush.msra.mxu0 0.0
        %2303 = vmatpush.msra.mxu0 0.0
        %2304 = vmatpush.msra.mxu0 0.0
        %2305 = vmatpush.msra.mxu0 0.0
        %2306 = vmatpush.msra.mxu0 0.0
        %2307 = vmatpush.msra.mxu0 0.0
        %2308 = vmatpush.msra.mxu0 0.0
        %2309 = vmatpush.msra.mxu0 %v2210
        %2310 = vmatmul.f32.gmra.mxu0 %v2292
        %v2311 = vpop.f32.mrf.mxu0
        %v2312 = vadd.f32 0.0, %v2311
        %2313 = vdwg.mxu0
        %v2314 = vmul.f32 %v2246, 0.35355338
        %v2315 = vmul.f32 %v2268, 0.35355338
        %v2316 = vmul.f32 %v2290, 0.35355338
        %v2317 = vmul.f32 %v2312, 0.35355338
        %v2318 = vsel %vm2065, 1, 0
        %v2319 = vperm.slane %v2318, 0
        %vm2320 = vcmp.eq.s32.totalorder %v2319, 1
        %v2321 = vsel %vm2320, %v2314, -1e+09
        %v2322 = vsel %vm2320, %v2315, -1e+09
        %v2323 = vsel %vm2320, %v2316, -1e+09
        %v2324 = vsel %vm2320, %v2317, -1e+09
        %vm2325 = vcmask 80896
        %v2326 = vsel %vm2325, %v2321, -inf
        %2327 = vmax.xlane.f32.xlu0 %v2326
        %v2328 = vpop.xlane.xlu0 %2327
        %v2329 = vsel %vm2325, %v2322, -inf
        %2330 = vmax.xlane.f32.xlu0 %v2329
        %v2331 = vpop.xlane.xlu0 %2330
        %v2332 = vsel %vm2325, %v2323, -inf
        %2333 = vmax.xlane.f32.xlu0 %v2332
        %v2334 = vpop.xlane.xlu0 %2333
        %v2335 = vsel %vm2325, %v2324, -inf
        %2336 = vmax.xlane.f32.xlu0 %v2335
        %v2337 = vpop.xlane.xlu0 %2336
        %v2338 = vsub.f32 %v2321, %v2328
        %v2339 = vsub.f32 %v2322, %v2331
        %v2340 = vsub.f32 %v2323, %v2334
        %v2341 = vsub.f32 %v2324, %v2337
        %v2342 = vmul.f32 %v2338, 1.442695
        %v2343 = vpow.pop %v2342
        %v2344 = vmul.f32 %v2339, 1.442695
        %v2345 = vpow.pop %v2344
        %v2346 = vmul.f32 %v2340, 1.442695
        %v2347 = vpow.pop %v2346
        %v2348 = vmul.f32 %v2341, 1.442695
        %v2349 = vpow.pop %v2348
        %v2350 = vsel %vm2325, %v2343, 0.0
        %2351 = vadd.xlane.f32.xlu0 %v2350
        %v2352 = vpop.xlane.xlu0 %2351
        %v2353 = vsel %vm2325, %v2345, 0.0
        %2354 = vadd.xlane.f32.xlu0 %v2353
        %v2355 = vpop.xlane.xlu0 %2354
        %v2356 = vsel %vm2325, %v2347, 0.0
        %2357 = vadd.xlane.f32.xlu0 %v2356
        %v2358 = vpop.xlane.xlu0 %2357
        %v2359 = vsel %vm2325, %v2349, 0.0
        %2360 = vadd.xlane.f32.xlu0 %v2359
        %v2361 = vpop.xlane.xlu0 %2360
        %v2362 = vrcp.pop %v2352
        %v2363 = vmul.f32 %v2352, %v2362
        %v2364 = vsub.f32 1.0, %v2363
        %v2365 = vmul.f32 %v2362, %v2364
        %v2366 = vadd.f32 %v2362, %v2365
        %vm2367 = vweird.f32 %v2352
        %vm2368 = vweird.f32 %v2362
        %vm2369 = vmor %vm2367, %vm2368
        %v2370 = vsel %vm2369, %v2362, %v2366
        %v2371 = vand.u32 2147483647, %v2352
        %vm2372 = vcmp.eq.f32.partialorder %v2371, 8.507059e+37
        %v2373 = vand.u32 %v2352, 2147483648
        %v2374 = vor.u32 1.1754944e-38, %v2373
        %v2375 = vsel %vm2372, %v2374, %v2370
        %v2376 = vrcp.pop %v2355
        %v2377 = vmul.f32 %v2355, %v2376
        %v2378 = vsub.f32 1.0, %v2377
        %v2379 = vmul.f32 %v2376, %v2378
        %v2380 = vadd.f32 %v2376, %v2379
        %vm2381 = vweird.f32 %v2355
        %vm2382 = vweird.f32 %v2376
        %vm2383 = vmor %vm2381, %vm2382
        %v2384 = vsel %vm2383, %v2376, %v2380
        %v2385 = vand.u32 2147483647, %v2355
        %vm2386 = vcmp.eq.f32.partialorder %v2385, 8.507059e+37
        %v2387 = vand.u32 %v2355, 2147483648
        %v2388 = vor.u32 1.1754944e-38, %v2387
        %v2389 = vsel %vm2386, %v2388, %v2384
        %v2390 = vrcp.pop %v2358
        %v2391 = vmul.f32 %v2358, %v2390
        %v2392 = vsub.f32 1.0, %v2391
        %v2393 = vmul.f32 %v2390, %v2392
        %v2394 = vadd.f32 %v2390, %v2393
        %vm2395 = vweird.f32 %v2358
        %vm2396 = vweird.f32 %v2390
        %vm2397 = vmor %vm2395, %vm2396
        %v2398 = vsel %vm2397, %v2390, %v2394
        %v2399 = vand.u32 2147483647, %v2358
        %vm2400 = vcmp.eq.f32.partialorder %v2399, 8.507059e+37
        %v2401 = vand.u32 %v2358, 2147483648
        %v2402 = vor.u32 1.1754944e-38, %v2401
        %v2403 = vsel %vm2400, %v2402, %v2398
        %v2404 = vrcp.pop %v2361
        %v2405 = vmul.f32 %v2361, %v2404
        %v2406 = vsub.f32 1.0, %v2405
        %v2407 = vmul.f32 %v2404, %v2406
        %v2408 = vadd.f32 %v2404, %v2407
        %vm2409 = vweird.f32 %v2361
        %vm2410 = vweird.f32 %v2404
        %vm2411 = vmor %vm2409, %vm2410
        %v2412 = vsel %vm2411, %v2404, %v2408
        %v2413 = vand.u32 2147483647, %v2361
        %vm2414 = vcmp.eq.f32.partialorder %v2413, 8.507059e+37
        %v2415 = vand.u32 %v2361, 2147483648
        %v2416 = vor.u32 1.1754944e-38, %v2415
        %v2417 = vsel %vm2414, %v2416, %v2412
        %v2418 = vmul.f32 %v2343, %v2375
        %v2419 = vmul.f32 %v2345, %v2389
        %v2420 = vmul.f32 %v2347, %v2403
        %v2421 = vmul.f32 %v2349, %v2417
        %2422 = vrot.lane.b32.xlu0 %v2059, 96
        %v2423 = vpop.permute.xlu0 %2422
        %2424 = vrot.lane.b32.xlu0 %v2062, 96
        %v2425 = vpop.permute.xlu0 %2424
        %2426 = vrot.lane.b32.xlu0 %v2081, 96
        %v2427 = vpop.permute.xlu0 %2426
        %2428 = vrot.lane.b32.xlu0 %v2083, 96
        %v2429 = vpop.permute.xlu0 %2428
        %2430 = vrot.lane.b32.xlu0 %v2087, 96
        %v2431 = vpop.permute.xlu0 %2430
        %2432 = vrot.lane.b32.xlu0 %v2089, 96
        %v2433 = vpop.permute.xlu0 %2432
        %2434 = vrot.lane.b32.xlu0 %v2093, 96
        %v2435 = vpop.permute.xlu0 %2434
        %2436 = vrot.lane.b32.xlu0 %v2095, 96
        %v2437 = vpop.permute.xlu0 %2436
        %2446 = vxpose.xlu0.b32.start [1/16] %v2423, 128
        %2447 = vxpose.xlu0.b32.cont [2/16] %v2425, 128
        %2448 = vxpose.xlu0.b32.cont [3/16] 0.0, 128
        %2449 = vxpose.xlu0.b32.cont [4/16] 0.0, 128
        %2450 = vxpose.xlu0.b32.cont [5/16] 0.0, 128
        %2451 = vxpose.xlu0.b32.cont [6/16] 0.0, 128
        %2452 = vxpose.xlu0.b32.cont [7/16] 0.0, 128
        %2453 = vxpose.xlu0.b32.cont [8/16] 0.0, 128
        %2454 = vxpose.xlu0.b32.cont [9/16] 0.0, 128
        %2455 = vxpose.xlu0.b32.cont [10/16] 0.0, 128
        %2456 = vxpose.xlu0.b32.cont [11/16] 0.0, 128
        %2457 = vxpose.xlu0.b32.cont [12/16] 0.0, 128
        %2458 = vxpose.xlu0.b32.cont [13/16] 0.0, 128
        %2459 = vxpose.xlu0.b32.cont [14/16] 0.0, 128
        %2460 = vxpose.xlu0.b32.cont [15/16] 0.0, 128
        %2461 = vxpose.xlu0.b32.end [16/16] 0.0, 128
        %v2462 = vpop.trf.xlu0
        %v2463 = vpop.trf.xlu0
        %v2464 = vpop.trf.xlu0
        %v2465 = vpop.trf.xlu0
        %v2466 = vpop.trf.xlu0
        %v2467 = vpop.trf.xlu0
        %v2468 = vpop.trf.xlu0
        %v2469 = vpop.trf.xlu0
        %v2470 = vpop.trf.xlu0
        %v2471 = vpop.trf.xlu0
        %v2472 = vpop.trf.xlu0
        %v2473 = vpop.trf.xlu0
        %v2474 = vpop.trf.xlu0
        %v2475 = vpop.trf.xlu0
        %v2476 = vpop.trf.xlu0
        %v2477 = vpop.trf.xlu0
        %2478 = vxpose.xlu0.b32.start [1/16] %v2427, 128
        %2479 = vxpose.xlu0.b32.cont [2/16] %v2429, 128
        %2480 = vxpose.xlu0.b32.cont [3/16] 0.0, 128
        %2481 = vxpose.xlu0.b32.cont [4/16] 0.0, 128
        %2482 = vxpose.xlu0.b32.cont [5/16] 0.0, 128
        %2483 = vxpose.xlu0.b32.cont [6/16] 0.0, 128
        %2484 = vxpose.xlu0.b32.cont [7/16] 0.0, 128
        %2485 = vxpose.xlu0.b32.cont [8/16] 0.0, 128
        %2486 = vxpose.xlu0.b32.cont [9/16] 0.0, 128
        %2487 = vxpose.xlu0.b32.cont [10/16] 0.0, 128
        %2488 = vxpose.xlu0.b32.cont [11/16] 0.0, 128
        %2489 = vxpose.xlu0.b32.cont [12/16] 0.0, 128
        %2490 = vxpose.xlu0.b32.cont [13/16] 0.0, 128
        %2491 = vxpose.xlu0.b32.cont [14/16] 0.0, 128
        %2492 = vxpose.xlu0.b32.cont [15/16] 0.0, 128
        %2493 = vxpose.xlu0.b32.end [16/16] 0.0, 128
        %v2494 = vpop.trf.xlu0
        %v2495 = vpop.trf.xlu0
        %v2496 = vpop.trf.xlu0
        %v2497 = vpop.trf.xlu0
        %v2498 = vpop.trf.xlu0
        %v2499 = vpop.trf.xlu0
        %v2500 = vpop.trf.xlu0
        %v2501 = vpop.trf.xlu0
        %v2502 = vpop.trf.xlu0
        %v2503 = vpop.trf.xlu0
        %v2504 = vpop.trf.xlu0
        %v2505 = vpop.trf.xlu0
        %v2506 = vpop.trf.xlu0
        %v2507 = vpop.trf.xlu0
        %v2508 = vpop.trf.xlu0
        %v2509 = vpop.trf.xlu0
        %2510 = vxpose.xlu0.b32.start [1/16] %v2431, 128
        %2511 = vxpose.xlu0.b32.cont [2/16] %v2433, 128
        %2512 = vxpose.xlu0.b32.cont [3/16] 0.0, 128
        %2513 = vxpose.xlu0.b32.cont [4/16] 0.0, 128
        %2514 = vxpose.xlu0.b32.cont [5/16] 0.0, 128
        %2515 = vxpose.xlu0.b32.cont [6/16] 0.0, 128
        %2516 = vxpose.xlu0.b32.cont [7/16] 0.0, 128
        %2517 = vxpose.xlu0.b32.cont [8/16] 0.0, 128
        %2518 = vxpose.xlu0.b32.cont [9/16] 0.0, 128
        %2519 = vxpose.xlu0.b32.cont [10/16] 0.0, 128
        %2520 = vxpose.xlu0.b32.cont [11/16] 0.0, 128
        %2521 = vxpose.xlu0.b32.cont [12/16] 0.0, 128
        %2522 = vxpose.xlu0.b32.cont [13/16] 0.0, 128
        %2523 = vxpose.xlu0.b32.cont [14/16] 0.0, 128
        %2524 = vxpose.xlu0.b32.cont [15/16] 0.0, 128
        %2525 = vxpose.xlu0.b32.end [16/16] 0.0, 128
        %v2526 = vpop.trf.xlu0
        %v2527 = vpop.trf.xlu0
        %v2528 = vpop.trf.xlu0
        %v2529 = vpop.trf.xlu0
        %v2530 = vpop.trf.xlu0
        %v2531 = vpop.trf.xlu0
        %v2532 = vpop.trf.xlu0
        %v2533 = vpop.trf.xlu0
        %v2534 = vpop.trf.xlu0
        %v2535 = vpop.trf.xlu0
        %v2536 = vpop.trf.xlu0
        %v2537 = vpop.trf.xlu0
        %v2538 = vpop.trf.xlu0
        %v2539 = vpop.trf.xlu0
        %v2540 = vpop.trf.xlu0
        %v2541 = vpop.trf.xlu0
        %2542 = vxpose.xlu0.b32.start [1/16] %v2435, 128
        %2543 = vxpose.xlu0.b32.cont [2/16] %v2437, 128
        %2544 = vxpose.xlu0.b32.cont [3/16] 0.0, 128
        %2545 = vxpose.xlu0.b32.cont [4/16] 0.0, 128
        %2546 = vxpose.xlu0.b32.cont [5/16] 0.0, 128
        %2547 = vxpose.xlu0.b32.cont [6/16] 0.0, 128
        %2548 = vxpose.xlu0.b32.cont [7/16] 0.0, 128
        %2549 = vxpose.xlu0.b32.cont [8/16] 0.0, 128
        %2550 = vxpose.xlu0.b32.cont [9/16] 0.0, 128
        %2551 = vxpose.xlu0.b32.cont [10/16] 0.0, 128
        %2552 = vxpose.xlu0.b32.cont [11/16] 0.0, 128
        %2553 = vxpose.xlu0.b32.cont [12/16] 0.0, 128
        %2554 = vxpose.xlu0.b32.cont [13/16] 0.0, 128
        %2555 = vxpose.xlu0.b32.cont [14/16] 0.0, 128
        %2556 = vxpose.xlu0.b32.cont [15/16] 0.0, 128
        %2557 = vxpose.xlu0.b32.end [16/16] 0.0, 128
        %v2558 = vpop.trf.xlu0
        %v2559 = vpop.trf.xlu0
        %v2560 = vpop.trf.xlu0
        %v2561 = vpop.trf.xlu0
        %v2562 = vpop.trf.xlu0
        %v2563 = vpop.trf.xlu0
        %v2564 = vpop.trf.xlu0
        %v2565 = vpop.trf.xlu0
        %v2566 = vpop.trf.xlu0
        %v2567 = vpop.trf.xlu0
        %v2568 = vpop.trf.xlu0
        %v2569 = vpop.trf.xlu0
        %v2570 = vpop.trf.xlu0
        %v2571 = vpop.trf.xlu0
        %v2572 = vpop.trf.xlu0
        %v2573 = vpop.trf.xlu0
        %v2575 = vsel %vm2325, %v2462, 0
        %v2578 = vsel %vm2325, %v2418, 0
        %2580 = vmatpush.xpose.msra.mxu0 0.0
        %2581 = vmatpush.xpose.msra.mxu0 0.0
        %2582 = vmatpush.xpose.msra.mxu0 0.0
        %2583 = vmatpush.xpose.msra.mxu0 0.0
        %2584 = vmatpush.xpose.msra.mxu0 0.0
        %2585 = vmatpush.xpose.msra.mxu0 0.0
        %2586 = vmatpush.xpose.msra.mxu0 0.0
        %2587 = vmatpush.xpose.msra.mxu0 0.0
        %2588 = vmatpush.xpose.msra.mxu0 0.0
        %2589 = vmatpush.xpose.msra.mxu0 0.0
        %2590 = vmatpush.xpose.msra.mxu0 0.0
        %2591 = vmatpush.xpose.msra.mxu0 0.0
        %2592 = vmatpush.xpose.msra.mxu0 0.0
        %2593 = vmatpush.xpose.msra.mxu0 0.0
        %2594 = vmatpush.xpose.msra.mxu0 0.0
        %2595 = vmatpush.xpose.msra.mxu0 %v2578
        %2596 = vmatmul.f32.gmra.mxu0 %v2575
        %v2597 = vpop.f32.mrf.mxu0
        %v2598 = vadd.f32 0.0, %v2597
        %2599 = vdwg.mxu0
        %v2601 = vsel %vm2325, %v2494, 0
        %v2604 = vsel %vm2325, %v2419, 0
        %2606 = vmatpush.xpose.msra.mxu0 0.0
        %2607 = vmatpush.xpose.msra.mxu0 0.0
        %2608 = vmatpush.xpose.msra.mxu0 0.0
        %2609 = vmatpush.xpose.msra.mxu0 0.0
        %2610 = vmatpush.xpose.msra.mxu0 0.0
        %2611 = vmatpush.xpose.msra.mxu0 0.0
        %2612 = vmatpush.xpose.msra.mxu0 0.0
        %2613 = vmatpush.xpose.msra.mxu0 0.0
        %2614 = vmatpush.xpose.msra.mxu0 0.0
        %2615 = vmatpush.xpose.msra.mxu0 0.0
        %2616 = vmatpush.xpose.msra.mxu0 0.0
        %2617 = vmatpush.xpose.msra.mxu0 0.0
        %2618 = vmatpush.xpose.msra.mxu0 0.0
        %2619 = vmatpush.xpose.msra.mxu0 0.0
        %2620 = vmatpush.xpose.msra.mxu0 0.0
        %2621 = vmatpush.xpose.msra.mxu0 %v2604
        %2622 = vmatmul.f32.gmra.mxu0 %v2601
        %v2623 = vpop.f32.mrf.mxu0
        %v2624 = vadd.f32 0.0, %v2623
        %2625 = vdwg.mxu0
        %v2627 = vsel %vm2325, %v2526, 0
        %v2630 = vsel %vm2325, %v2420, 0
        %2632 = vmatpush.xpose.msra.mxu0 0.0
        %2633 = vmatpush.xpose.msra.mxu0 0.0
        %2634 = vmatpush.xpose.msra.mxu0 0.0
        %2635 = vmatpush.xpose.msra.mxu0 0.0
        %2636 = vmatpush.xpose.msra.mxu0 0.0
        %2637 = vmatpush.xpose.msra.mxu0 0.0
        %2638 = vmatpush.xpose.msra.mxu0 0.0
        %2639 = vmatpush.xpose.msra.mxu0 0.0
        %2640 = vmatpush.xpose.msra.mxu0 0.0
        %2641 = vmatpush.xpose.msra.mxu0 0.0
        %2642 = vmatpush.xpose.msra.mxu0 0.0
        %2643 = vmatpush.xpose.msra.mxu0 0.0
        %2644 = vmatpush.xpose.msra.mxu0 0.0
        %2645 = vmatpush.xpose.msra.mxu0 0.0
        %2646 = vmatpush.xpose.msra.mxu0 0.0
        %2647 = vmatpush.xpose.msra.mxu0 %v2630
        %2648 = vmatmul.f32.gmra.mxu0 %v2627
        %v2649 = vpop.f32.mrf.mxu0
        %v2650 = vadd.f32 0.0, %v2649
        %2651 = vdwg.mxu0
        %v2653 = vsel %vm2325, %v2558, 0
        %v2656 = vsel %vm2325, %v2421, 0
        %2658 = vmatpush.xpose.msra.mxu0 0.0
        %2659 = vmatpush.xpose.msra.mxu0 0.0
        %2660 = vmatpush.xpose.msra.mxu0 0.0
        %2661 = vmatpush.xpose.msra.mxu0 0.0
        %2662 = vmatpush.xpose.msra.mxu0 0.0
        %2663 = vmatpush.xpose.msra.mxu0 0.0
        %2664 = vmatpush.xpose.msra.mxu0 0.0
        %2665 = vmatpush.xpose.msra.mxu0 0.0
        %2666 = vmatpush.xpose.msra.mxu0 0.0
        %2667 = vmatpush.xpose.msra.mxu0 0.0
        %2668 = vmatpush.xpose.msra.mxu0 0.0
        %2669 = vmatpush.xpose.msra.mxu0 0.0
        %2670 = vmatpush.xpose.msra.mxu0 0.0
        %2671 = vmatpush.xpose.msra.mxu0 0.0
        %2672 = vmatpush.xpose.msra.mxu0 0.0
        %2673 = vmatpush.xpose.msra.mxu0 %v2656
        %2674 = vmatmul.f32.gmra.mxu0 %v2653
        %v2675 = vpop.f32.mrf.mxu0
        %v2676 = vadd.f32 0.0, %v2675
        %2677 = vdwg.mxu0
        %2678 = vxpose.xlu0.b32.start [1/16] %v2598, 128
        %2679 = vxpose.xlu0.b32.cont [2/16] 0.0, 128
        %2680 = vxpose.xlu0.b32.cont [3/16] 0.0, 128
        %2681 = vxpose.xlu0.b32.cont [4/16] 0.0, 128
        %2682 = vxpose.xlu0.b32.cont [5/16] 0.0, 128
        %2683 = vxpose.xlu0.b32.cont [6/16] 0.0, 128
        %2684 = vxpose.xlu0.b32.cont [7/16] 0.0, 128
        %2685 = vxpose.xlu0.b32.cont [8/16] 0.0, 128
        %2686 = vxpose.xlu0.b32.cont [9/16] 0.0, 128
        %2687 = vxpose.xlu0.b32.cont [10/16] 0.0, 128
        %2688 = vxpose.xlu0.b32.cont [11/16] 0.0, 128
        %2689 = vxpose.xlu0.b32.cont [12/16] 0.0, 128
        %2690 = vxpose.xlu0.b32.cont [13/16] 0.0, 128
        %2691 = vxpose.xlu0.b32.cont [14/16] 0.0, 128
        %2692 = vxpose.xlu0.b32.cont [15/16] 0.0, 128
        %2693 = vxpose.xlu0.b32.end [16/16] 0.0, 128
        %v2694 = vpop.trf.xlu0
        %v2695 = vpop.trf.xlu0
        %v2696 = vpop.trf.xlu0
        %v2697 = vpop.trf.xlu0
        %v2698 = vpop.trf.xlu0
        %v2699 = vpop.trf.xlu0
        %v2700 = vpop.trf.xlu0
        %v2701 = vpop.trf.xlu0
        %v2702 = vpop.trf.xlu0
        %v2703 = vpop.trf.xlu0
        %v2704 = vpop.trf.xlu0
        %v2705 = vpop.trf.xlu0
        %v2706 = vpop.trf.xlu0
        %v2707 = vpop.trf.xlu0
        %v2708 = vpop.trf.xlu0
        %v2709 = vpop.trf.xlu0
        %2710 = vxpose.xlu0.b32.start [1/16] %v2624, 128
        %2711 = vxpose.xlu0.b32.cont [2/16] 0.0, 128
        %2712 = vxpose.xlu0.b32.cont [3/16] 0.0, 128
        %2713 = vxpose.xlu0.b32.cont [4/16] 0.0, 128
        %2714 = vxpose.xlu0.b32.cont [5/16] 0.0, 128
        %2715 = vxpose.xlu0.b32.cont [6/16] 0.0, 128
        %2716 = vxpose.xlu0.b32.cont [7/16] 0.0, 128
        %2717 = vxpose.xlu0.b32.cont [8/16] 0.0, 128
        %2718 = vxpose.xlu0.b32.cont [9/16] 0.0, 128
        %2719 = vxpose.xlu0.b32.cont [10/16] 0.0, 128
        %2720 = vxpose.xlu0.b32.cont [11/16] 0.0, 128
        %2721 = vxpose.xlu0.b32.cont [12/16] 0.0, 128
        %2722 = vxpose.xlu0.b32.cont [13/16] 0.0, 128
        %2723 = vxpose.xlu0.b32.cont [14/16] 0.0, 128
        %2724 = vxpose.xlu0.b32.cont [15/16] 0.0, 128
        %2725 = vxpose.xlu0.b32.end [16/16] 0.0, 128
        %v2726 = vpop.trf.xlu0
        %v2727 = vpop.trf.xlu0
        %v2728 = vpop.trf.xlu0
        %v2729 = vpop.trf.xlu0
        %v2730 = vpop.trf.xlu0
        %v2731 = vpop.trf.xlu0
        %v2732 = vpop.trf.xlu0
        %v2733 = vpop.trf.xlu0
        %v2734 = vpop.trf.xlu0
        %v2735 = vpop.trf.xlu0
        %v2736 = vpop.trf.xlu0
        %v2737 = vpop.trf.xlu0
        %v2738 = vpop.trf.xlu0
        %v2739 = vpop.trf.xlu0
        %v2740 = vpop.trf.xlu0
        %v2741 = vpop.trf.xlu0
        %2742 = vxpose.xlu0.b32.start [1/16] %v2650, 128
        %2743 = vxpose.xlu0.b32.cont [2/16] 0.0, 128
        %2744 = vxpose.xlu0.b32.cont [3/16] 0.0, 128
        %2745 = vxpose.xlu0.b32.cont [4/16] 0.0, 128
        %2746 = vxpose.xlu0.b32.cont [5/16] 0.0, 128
        %2747 = vxpose.xlu0.b32.cont [6/16] 0.0, 128
        %2748 = vxpose.xlu0.b32.cont [7/16] 0.0, 128
        %2749 = vxpose.xlu0.b32.cont [8/16] 0.0, 128
        %2750 = vxpose.xlu0.b32.cont [9/16] 0.0, 128
        %2751 = vxpose.xlu0.b32.cont [10/16] 0.0, 128
        %2752 = vxpose.xlu0.b32.cont [11/16] 0.0, 128
        %2753 = vxpose.xlu0.b32.cont [12/16] 0.0, 128
        %2754 = vxpose.xlu0.b32.cont [13/16] 0.0, 128
        %2755 = vxpose.xlu0.b32.cont [14/16] 0.0, 128
        %2756 = vxpose.xlu0.b32.cont [15/16] 0.0, 128
        %2757 = vxpose.xlu0.b32.end [16/16] 0.0, 128
        %v2758 = vpop.trf.xlu0
        %v2759 = vpop.trf.xlu0
        %v2760 = vpop.trf.xlu0
        %v2761 = vpop.trf.xlu0
        %v2762 = vpop.trf.xlu0
        %v2763 = vpop.trf.xlu0
        %v2764 = vpop.trf.xlu0
        %v2765 = vpop.trf.xlu0
        %v2766 = vpop.trf.xlu0
        %v2767 = vpop.trf.xlu0
        %v2768 = vpop.trf.xlu0
        %v2769 = vpop.trf.xlu0
        %v2770 = vpop.trf.xlu0
        %v2771 = vpop.trf.xlu0
        %v2772 = vpop.trf.xlu0
        %v2773 = vpop.trf.xlu0
        %2774 = vxpose.xlu0.b32.start [1/16] %v2676, 128
        %2775 = vxpose.xlu0.b32.cont [2/16] 0.0, 128
        %2776 = vxpose.xlu0.b32.cont [3/16] 0.0, 128
        %2777 = vxpose.xlu0.b32.cont [4/16] 0.0, 128
        %2778 = vxpose.xlu0.b32.cont [5/16] 0.0, 128
        %2779 = vxpose.xlu0.b32.cont [6/16] 0.0, 128
        %2780 = vxpose.xlu0.b32.cont [7/16] 0.0, 128
        %2781 = vxpose.xlu0.b32.cont [8/16] 0.0, 128
        %2782 = vxpose.xlu0.b32.cont [9/16] 0.0, 128
        %2783 = vxpose.xlu0.b32.cont [10/16] 0.0, 128
        %2784 = vxpose.xlu0.b32.cont [11/16] 0.0, 128
        %2785 = vxpose.xlu0.b32.cont [12/16] 0.0, 128
        %2786 = vxpose.xlu0.b32.cont [13/16] 0.0, 128
        %2787 = vxpose.xlu0.b32.cont [14/16] 0.0, 128
        %2788 = vxpose.xlu0.b32.cont [15/16] 0.0, 128
        %2789 = vxpose.xlu0.b32.end [16/16] 0.0, 128
        %v2790 = vpop.trf.xlu0
        %v2791 = vpop.trf.xlu0
        %v2792 = vpop.trf.xlu0
        %v2793 = vpop.trf.xlu0
        %v2794 = vpop.trf.xlu0
        %v2795 = vpop.trf.xlu0
        %v2796 = vpop.trf.xlu0
        %v2797 = vpop.trf.xlu0
        %v2798 = vpop.trf.xlu0
        %v2799 = vpop.trf.xlu0
        %v2800 = vpop.trf.xlu0
        %v2801 = vpop.trf.xlu0
        %v2802 = vpop.trf.xlu0
        %v2803 = vpop.trf.xlu0
        %v2804 = vpop.trf.xlu0
        %v2805 = vpop.trf.xlu0
        %v2806 = vrot.slane %v2758, 4
        %v2807 = vsel %vm1798, %v2806, %v2694
        %v2808 = vrot.slane %v2694, 4
        %v2809 = vsel %vm1798, %v2758, %v2808
        %v2811 = vunpack.c.l.s4 1983009808
        %v2812 = vunpack.c.0.s8 %v2811
        %v2813 = vperm.slane %v2807, %v2812
        %v2815 = vunpack.c.l.s4 1983009808
        %v2816 = vunpack.c.0.s8 %v2815
        %v2817 = vperm.slane %v2809, %v2816
        %v2818 = vrot.slane %v2790, 4
        %v2819 = vsel %vm1798, %v2818, %v2726
        %v2820 = vrot.slane %v2726, 4
        %v2821 = vsel %vm1798, %v2790, %v2820
        %v2823 = vunpack.c.l.s4 1983009808
        %v2824 = vunpack.c.0.s8 %v2823
        %v2825 = vperm.slane %v2819, %v2824
        %v2827 = vunpack.c.l.s4 1983009808
        %v2828 = vunpack.c.0.s8 %v2827
        %v2829 = vperm.slane %v2821, %v2828
        %v2830 = vrot.slane %v2825, 4
        %v2831 = vsel %vm1798, %v2830, %v2813
        %v2832 = vrot.slane %v2813, 4
        %v2833 = vsel %vm1798, %v2825, %v2832
        %v2835 = vunpack.c.l.s4 1934713408
        %v2836 = vunpack.c.0.s8 %v2835
        %v2837 = vperm.slane %v2831, %v2836
        %v2839 = vunpack.c.l.s4 1934713408
        %v2840 = vunpack.c.0.s8 %v2839
        %v2841 = vperm.slane %v2833, %v2840
        %v2842 = vrot.slane %v2829, 4
        %v2843 = vsel %vm1798, %v2842, %v2817
        %v2844 = vrot.slane %v2817, 4
        %v2845 = vsel %vm1798, %v2829, %v2844
        %v2847 = vunpack.c.l.s4 1934713408
        %v2848 = vunpack.c.0.s8 %v2847
        %v2849 = vperm.slane %v2843, %v2848
        %v2851 = vunpack.c.l.s4 1934713408
        %v2852 = vunpack.c.0.s8 %v2851
        %v2853 = vperm.slane %v2845, %v2852
        %v2854 = vrot.slane %v2837, 4
        %v2855 = vsel %vm1798, 0.0, %v2854
        %v2856 = vrot.slane %v2841, 4
        %v2857 = vsel %vm1798, 0.0, %v2856
        %v2858 = vrot.slane %v2849, 4
        %v2859 = vsel %vm1798, 0.0, %v2858
        %v2860 = vrot.slane %v2853, 4
        %v2861 = vsel %vm1798, 0.0, %v2860
        %v2862 = vsel %vm1798, %v2856, %v2837
        %v2864 = vunpack.c.l.s4 1983009808
        %v2865 = vunpack.c.0.s8 %v2864
        %v2866 = vperm.slane %v2862, %v2865
        %v2867 = vrot.slane %v2857, 4
        %v2868 = vsel %vm1798, %v2867, %v2855
        %v2870 = vunpack.c.l.s4 1983009808
        %v2871 = vunpack.c.0.s8 %v2870
        %v2872 = vperm.slane %v2868, %v2871
        %v2873 = vsel %vm1798, %v2860, %v2849
        %v2875 = vunpack.c.l.s4 1983009808
        %v2876 = vunpack.c.0.s8 %v2875
        %v2877 = vperm.slane %v2873, %v2876
        %v2878 = vrot.slane %v2861, 4
        %v2879 = vsel %vm1798, %v2878, %v2859
        %v2881 = vunpack.c.l.s4 1983009808
        %v2882 = vunpack.c.0.s8 %v2881
        %v2883 = vperm.slane %v2879, %v2882
        %v2884 = vrot.slane %v2872, 4
        %v2885 = vsel %vm1798, %v2884, %v2866
        %v2886 = vrot.slane %v2866, 4
        %v2887 = vsel %vm1798, %v2872, %v2886
        %v2889 = vunpack.c.l.s4 1934713408
        %v2890 = vunpack.c.0.s8 %v2889
        %v2891 = vperm.slane %v2885, %v2890
        %v2893 = vunpack.c.l.s4 1934713408
        %v2894 = vunpack.c.0.s8 %v2893
        %v2895 = vperm.slane %v2887, %v2894
        %v2896 = vrot.slane %v2883, 4
        %v2897 = vsel %vm1798, %v2896, %v2877
        %v2898 = vrot.slane %v2877, 4
        %v2899 = vsel %vm1798, %v2883, %v2898
        %v2901 = vunpack.c.l.s4 1934713408
        %v2902 = vunpack.c.0.s8 %v2901
        %v2903 = vperm.slane %v2897, %v2902
        %v2905 = vunpack.c.l.s4 1934713408
        %v2906 = vunpack.c.0.s8 %v2905
        %v2907 = vperm.slane %v2899, %v2906
        %v2908 = vrot.slane %v2903, 4
        %v2909 = vsel %vm1798, %v2908, %v2891
        %v2910 = vrot.slane %v2891, 4
        %v2911 = vsel %vm1798, %v2903, %v2910
        %v2912 = vrot.slane %v2907, 4
        %v2913 = vsel %vm1798, %v2912, %v2895
        %v2914 = vrot.slane %v2895, 4
        %v2915 = vsel %vm1798, %v2907, %v2914
        %2917 = vrot.lane.b32.xlu0 %v2911, 8
        %v2918 = vpop.permute.xlu0 %2917
        %2921 = vrot.lane.b32.xlu0 %v2913, 16
        %v2922 = vpop.permute.xlu0 %2921
        %2925 = vrot.lane.b32.xlu0 %v2915, 24
        %v2926 = vpop.permute.xlu0 %2925
        %v2928 = vsel %vm1230, %v2909, %v2918
        %v2929 = vsel %vm1921, %v2928, %v2922
        %v2930 = vsel %vm1923, %v2929, %v2926
        %v2932 = vperm.slane %v2070, 0
        %v2935 = vsel %vm913, %v2930, 0
        %2937 = vmatpush.msra.mxu0 0.0
        %2938 = vmatpush.msra.mxu0 0.0
        %2939 = vmatpush.msra.mxu0 0.0
        %2940 = vmatpush.msra.mxu0 0.0
        %2941 = vmatpush.msra.mxu0 0.0
        %2942 = vmatpush.msra.mxu0 0.0
        %2943 = vmatpush.msra.mxu0 0.0
        %2944 = vmatpush.msra.mxu0 0.0
        %2945 = vmatpush.msra.mxu0 0.0
        %2946 = vmatpush.msra.mxu0 0.0
        %2947 = vmatpush.msra.mxu0 0.0
        %2948 = vmatpush.msra.mxu0 0.0
        %2949 = vmatpush.msra.mxu0 %v2069
        %2950 = vmatpush.msra.mxu0 %v2068
        %2951 = vmatpush.msra.mxu0 %v2067
        %2952 = vmatpush.msra.mxu0 %v2066
        %2953 = vmatmul.f32.gmra.mxu0 %v2935
        %v2954 = vpop.f32.mrf.mxu0
        %v2955 = vadd.f32 %v2932, %v2954
        %2956 = vdwg.mxu0
        %v2957 = vadd.f32 %v1951, %v2955
        %v2958 = vsel %vm913, %v2957, 0.0
        %2959 = vadd.xlane.f32.xlu0 %v2958
        %v2960 = vpop.xlane.xlu0 %2959
        %v2961 = vmul.f32 %v2960, %v923
        %v2962 = vsub.f32 %v2957, %v2961
        %v2963 = vmul.f32 %v2962, %v2962
        %v2964 = vsel %vm913, %v2963, 0.0
        %2965 = vadd.xlane.f32.xlu0 %v2964
        %v2966 = vpop.xlane.xlu0 %2965
        %v2967 = vmul.f32 %v2966, %v936
        %v2968 = vperm.slane %v909, 2
        %v2969 = vmul.f32 %v2968, %v2962
        %v2970 = vrsqrt.pop %v2967
        %v2971 = vmul.f32 %v2970, %v2967
        %v2972 = vmul.f32 %v2971, %v2970
        %v2973 = vmul.f32 0.5, %v2972
        %v2974 = vsub.f32 1.5, %v2973
        %v2975 = vmul.f32 %v2970, %v2974
        %v2976 = vmul.f32 %v2967, %v2975
        %vm2977 = vcmp.eq.f32.partialorder %v2967, inf
        %v2978 = vsel %vm2977, %v2967, %v2976
        %vm2979 = vcmp.eq.f32.partialorder %v2967, 0.0
        %v2980 = vand.u32 %v2967, 2147483648
        %v2981 = vsel %vm2979, %v2980, %v2978
        %v2982 = vadd.f32 %v2981, 1e-06
        %v2983 = vrcp.pop %v2982
        %v2984 = vmul.f32 %v2982, %v2983
        %v2985 = vsub.f32 1.0, %v2984
        %v2986 = vmul.f32 %v2983, %v2985
        %v2987 = vadd.f32 %v2983, %v2986
        %vm2988 = vweird.f32 %v2982
        %vm2989 = vweird.f32 %v2983
        %vm2990 = vmor %vm2988, %vm2989
        %v2991 = vsel %vm2990, %v2983, %v2987
        %v2992 = vand.u32 2147483647, %v2982
        %vm2993 = vcmp.eq.f32.partialorder %v2992, 8.507059e+37
        %v2994 = vand.u32 %v2982, 2147483648
        %v2995 = vor.u32 1.1754944e-38, %v2994
        %v2996 = vsel %vm2993, %v2995, %v2991
        %v2997 = vmul.f32 %v2969, %v2996
        %v2998 = vperm.slane %v910, 2
        %v2999 = vadd.f32 %v2997, %v2998
        %v3000 = vld [vmem:[%s15] sm:$0xff]
        %v3001 = vld [vmem:[%s15 + $0x8] sm:$0xff]
        %v3002 = vld [vmem:[%s15 + $0x10] sm:$0xff]
        %v3003 = vld [vmem:[%s15 + $0x18] sm:$0xff]
        %v3004 = vld [vmem:[#allocation19] sm:$0x1]
        %v3006 = vperm.slane %v3004, 0
        %v3009 = vsel %vm913, %v2999, 0
        %3011 = vmatpush.msra.mxu0 0.0
        %3012 = vmatpush.msra.mxu0 0.0
        %3013 = vmatpush.msra.mxu0 0.0
        %3014 = vmatpush.msra.mxu0 0.0
        %3015 = vmatpush.msra.mxu0 0.0
        %3016 = vmatpush.msra.mxu0 0.0
        %3017 = vmatpush.msra.mxu0 0.0
        %3018 = vmatpush.msra.mxu0 0.0
        %3019 = vmatpush.msra.mxu0 0.0
        %3020 = vmatpush.msra.mxu0 0.0
        %3021 = vmatpush.msra.mxu0 0.0
        %3022 = vmatpush.msra.mxu0 0.0
        %3023 = vmatpush.msra.mxu0 %v3003
        %3024 = vmatpush.msra.mxu0 %v3002
        %3025 = vmatpush.msra.mxu0 %v3001
        %3026 = vmatpush.msra.mxu0 %v3000
        %3027 = vmatmul.f32.gmra.mxu0 %v3009
        %v3028 = vpop.f32.mrf.mxu0
        %v3029 = vadd.f32 %v3006, %v3028
        %3030 = vdwg.mxu0
        %v3031 = vmax.f32 %v3029, 0.0
        %v3032 = vld [vmem:[%s17] sm:$0xff]
        %v3033 = vld [vmem:[%s17 + $0x8] sm:$0xff]
        %v3034 = vld [vmem:[%s17 + $0x10] sm:$0xff]
        %v3035 = vld [vmem:[%s17 + $0x18] sm:$0xff]
        %v3036 = vld [vmem:[%s17 + $0x20] sm:$0xff]
        %v3037 = vld [vmem:[%s17 + $0x28] sm:$0xff]
        %v3038 = vld [vmem:[%s17 + $0x30] sm:$0xff]
        %v3039 = vld [vmem:[%s17 + $0x38] sm:$0xff]
        %vm3040 = vcmask 523264
        %v3042 = vsel %vm3040, %v3031, 0
        %3044 = vmatpush.msra.mxu0 0.0
        %3045 = vmatpush.msra.mxu0 0.0
        %3046 = vmatpush.msra.mxu0 0.0
        %3047 = vmatpush.msra.mxu0 0.0
        %3048 = vmatpush.msra.mxu0 0.0
        %3049 = vmatpush.msra.mxu0 0.0
        %3050 = vmatpush.msra.mxu0 0.0
        %3051 = vmatpush.msra.mxu0 0.0
        %3052 = vmatpush.msra.mxu0 %v3039
        %3053 = vmatpush.msra.mxu0 %v3038
        %3054 = vmatpush.msra.mxu0 %v3037
        %3055 = vmatpush.msra.mxu0 %v3036
        %3056 = vmatpush.msra.mxu0 %v3035
        %3057 = vmatpush.msra.mxu0 %v3034
        %3058 = vmatpush.msra.mxu0 %v3033
        %3059 = vmatpush.msra.mxu0 %v3032
        %3060 = vmatmul.f32.gmra.mxu0 %v3042
        %v3061 = vpop.f32.mrf.mxu0
        %v3062 = vadd.f32 0.0, %v3061
        %3063 = vdwg.mxu0
        %v3064 = vadd.f32 %v2957, %v3062
        %v3065 = vld [vmem:[#allocation20] sm:$0x1]
        %v3067 = vperm.slane %v3065, 0
        %v3069 = vadd.f32 %v3064, %v3067
        %3070 = vst.msk [vmem:[%s902] sm:$0xff] %vm913, %v3069
        %s3071 = sand.u32 %s524, 1
        %s3072 = scalar_lea.sflag [#allocation4], %s3071
        %s3073 = sand.u32 %s524, 1
        %s3074 = smul.addr %s3073, 8
        %s3075 = scalar_lea.vmem [#allocation23], %s3074
        // Predicated region
        $region157: #{tpu_custom_call.1} parent=103 // pred_check
          %p3076 = pneg %p534
        $region158: #{tpu_custom_call.1} parent=103 // pred_check_branch
          %3078 = sbr.rel (%p3076) target = $region160
        $region159: #{tpu_custom_call.1} parent=103 // pred_region
          %3080 = vsyncadd %s3072, 0
          %s3081 = sadd.s32 %s51, %s50
          %s3082 = smul.addr %s3081, 8
          %s3083 = scalar_lea.hbm %s21, %s3082
          %s3085 = sshll.u32 %s3075, 4
          %s3086 = int_to_ptr.vmem [resolvable:$true] %s3085
          %s3087 = sshll.u32 %s3083, 4
          %s3088 = int_to_ptr.hbm [resolvable:$true] %s3087
          %3090 = dma.vmem_to_hbm [thread:$0]  %s3086, 128, %s3088, %s3072
        $region160: #{tpu_custom_call.1} parent=103 // pred_fallthru
          _
      $region104: #{tpu_custom_call.1} parent=5 // pred_fallthru
        _
      %p3091 = scmp.le.s32.totalorder 2, %s41
      // Predicated region
      $region161: #{tpu_custom_call.1} parent=5 // pred_check
        %p3092 = pneg %p3091
      $region162: #{tpu_custom_call.1} parent=5 // pred_check_branch
        %3094 = sbr.rel (%p3092) target = $region164
      $region163: #{tpu_custom_call.1} parent=5 // pred_region
        %s3095 = ssub.s32 %s41, 2
        // Predicated region
        $region165: #{tpu_custom_call.1} parent=163 // pred_check
          %p3096 = pneg %p540
        $region166: #{tpu_custom_call.1} parent=163 // pred_check_branch
          %3098 = sbr.rel (%p3096) target = $region168
        $region167: #{tpu_custom_call.1} parent=163 // pred_region
          %s3099 = sand.u32 %s525, 1
          %s3100 = scalar_lea.sflag [#allocation4], %s3099
          %s3101 = sand.u32 %s525, 1
          %s3102 = smul.addr %s3101, 8
          %s3103 = scalar_lea.vmem [#allocation23], %s3102
          %3105 = dma.done %s3100, 128
        $region168: #{tpu_custom_call.1} parent=163 // pred_fallthru
          _
      $region164: #{tpu_custom_call.1} parent=5 // pred_fallthru
        _
    $region6: #{tpu_custom_call.1} parent=1 // loop_footer
      %s45 = sadd.s32 1, %s41
    $region7: #{tpu_custom_call.1} parent=1 // loop_footer_branch
      %40 = sbr.rel target = $region3
    $region8: #{tpu_custom_call.1} parent=1 // loop_exit
      _
    %3106 = vsyncpa [#allocation3], 1
    %s3107 = scalar_lea.sflag [#allocation3], 1
    %3108 = vsyncpa %s3107, 1
    %3109 = vsyncpa [#allocation6], 1
    %s3110 = scalar_lea.sflag [#allocation6], 1
    %3111 = vsyncpa %s3110, 1
    %3112 = vsyncpa [#allocation9], 1
    %3113 = vsyncpa [#allocation12], 1
    %3114 = vsyncpa [#allocation15], 1
    %3115 = vsyncpa [#allocation18], 1
    %3116 = vsyncpa [#allocation21], 1
    %3117 = vsyncpa [#allocation4], 1
    %s3118 = scalar_lea.sflag [#allocation4], 1
    %3119 = vsyncpa %s3118, 1

</llo_original>
